<compile_context>
chip_gen: v7x
topology: tpu7x:2x2x1
jax: 0.10.0
libtpu: 0.0.40
codegen_flags: <defaults>
</compile_context>

<pallas_src>
import functools

import jax
import jax.numpy as jnp
import numpy as np
from jax.experimental import pallas as pl
from jax.experimental.pallas import tpu as pltpu


# ----------------------------------------------------------------------------
# Fused kernel factory
# ----------------------------------------------------------------------------
def _make_kernel(H, W, C, eps):
    HW = H * W

    def reflect_pad(a):
        """a: (H, W, C) -> (H+2, W+2, C), ReflectionPad2d(1) semantics."""
        rows = jnp.concatenate([a[1:2], a, a[H - 2:H - 1]], axis=0)                  # (H+2, W, C)
        return jnp.concatenate([rows[:, 1:2], rows, rows[:, W - 2:W - 1]], axis=1)   # (H+2, W+2, C)

    def conv3x3(p, w_all, conv_idx):
        """p: (H+2, W+2, C) f32 padded tile; w_all: (2, 9, C, C) bf16 tap-major weights.

        Returns (H*W, C) f32. The padded tile is cast to bf16 once; the 9 taps come from
        3 column (sublane-offset) slices + cheap leading-dim slices, each feeding an
        accumulated MXU dot (bf16 operands, f32 accumulation)."""
        pb = p.astype(jnp.bfloat16)
        acc = None
        for dx in range(3):
            cols = pb[:, dx:dx + W, :]                         # (H+2, W, C) bf16
            for dy in range(3):
                tap = cols[dy:dy + H].reshape(HW, C)           # (HW, C) bf16
                part = jnp.dot(tap, w_all[conv_idx, dy * 3 + dx],
                               preferred_element_type=jnp.float32)
                acc = part if acc is None else acc + part
        return acc

    def adalin(y, rho, gamma, beta):
        """y: (H*W, C) f32; rho/gamma/beta: (1, C) f32.
        Single-pass adaLIN folded into one per-channel FMA over y (torch unbiased var)."""
        s = jnp.sum(y, axis=0, keepdims=True)           # (1, C)  per-channel sum
        ss = jnp.sum(y * y, axis=0, keepdims=True)      # (1, C)  per-channel sum of squares

        # Instance-norm branch (stats over spatial dims, per channel).
        in_mean = s * (1.0 / HW)
        in_var = (ss - in_mean * s) * (1.0 / (HW - 1))
        in_inv = jax.lax.rsqrt(in_var + eps)

        # Layer-norm branch (stats over channel + spatial) from the same partial sums.
        ts = jnp.sum(s, axis=1, keepdims=True)          # (1, 1)
        tss = jnp.sum(ss, axis=1, keepdims=True)        # (1, 1)
        ln_mean = ts * (1.0 / (HW * C))
        ln_var = (tss - ln_mean * ts) * (1.0 / (HW * C - 1))
        ln_inv = jax.lax.rsqrt(ln_var + eps)

        # Fold rho mix + affine into per-channel scale/offset, then one FMA pass.
        a = gamma * (rho * in_inv + (1.0 - rho) * ln_inv)                              # (1, C)
        b = beta - gamma * (rho * in_mean * in_inv + (1.0 - rho) * ln_mean * ln_inv)   # (1, C)
        return y * a + b

    def kernel(x_ref, w_ref, par_ref, out_ref):
        x_chw = x_ref[0]                 # (C, H*W) f32  NCHW input, flattened spatially
        w_all = w_ref[...]               # (2, 9, C, C)  bf16 conv weights (tap-major)
        par = par_ref[0]                 # (4, C)        [gamma, beta, rho1, rho2]
        gamma, beta = par[0:1], par[1:2]
        rho1, rho2 = par[2:3], par[3:4]

        # NCHW -> NHWC in VMEM (2-D transpose + free reshape) + reflection pad:
        # no XLA transpose / pad round trips through HBM on the input side.
        x_hwc = jnp.transpose(x_chw).reshape(H, W, C)    # (H, W, C)
        p1 = reflect_pad(x_hwc)                          # (H+2, W+2, C)

        # Stage 1: conv1 + adaLIN + ReLU
        y1 = conv3x3(p1, w_all, 0)                       # (HW, C) f32
        z1 = jnp.maximum(adalin(y1, rho1, gamma, beta), 0.0)

        # Stage 2: reflect-pad (in VMEM) + conv2 + adaLIN
        p2 = reflect_pad(z1.reshape(H, W, C))            # (H+2, W+2, C)
        y2 = conv3x3(p2, w_all, 1)
        z2 = adalin(y2, rho2, gamma, beta)

        # Residual add in (C, HW) form against the original input block; lane-dense store.
        out_ref[0] = jnp.transpose(z2) + x_chw

    return kernel


# ----------------------------------------------------------------------------
# Full ResnetAdaLINBlock forward
# ----------------------------------------------------------------------------
@functools.partial(jax.jit, static_argnames=("eps",))
def resnet_adalin_block(x_nchw, gamma, beta, w1, w2, rho1, rho2, eps=1e-5):
    n, c, h, w = x_nchw.shape

    # Free reshape: kernel consumes NCHW directly as (N, C, H*W).
    x_flat = x_nchw.reshape(n, c, h * w).astype(jnp.float32)

    # Conv weights (Cout, Cin, 3, 3) -> (9, Cin, Cout) tap-major, stacked, bf16 for MXU.
    def wprep(wt):
        return jnp.transpose(wt, (2, 3, 1, 0)).reshape(9, c, c)
    w_all = jnp.stack([wprep(w1), wprep(w2)]).astype(jnp.bfloat16)        # (2, 9, C, C)

    # Consolidate the small per-channel parameters into one operand.
    params = jnp.stack([
        gamma.reshape(n, c).astype(jnp.float32),
        beta.reshape(n, c).astype(jnp.float32),
        jnp.broadcast_to(rho1.reshape(1, c).astype(jnp.float32), (n, c)),
        jnp.broadcast_to(rho2.reshape(1, c).astype(jnp.float32), (n, c)),
    ], axis=1)                                                            # (N, 4, C)

    kernel = _make_kernel(h, w, c, eps)

    out_chw = pl.pallas_call(
        kernel,
        out_shape=jax.ShapeDtypeStruct((n, c, h * w), jnp.float32),
        grid=(n,),
        in_specs=[
            pl.BlockSpec((1, c, h * w), lambda i: (i, 0, 0)),
            pl.BlockSpec((2, 9, c, c), lambda i: (0, 0, 0, 0)),
            pl.BlockSpec((1, 4, c), lambda i: (i, 0, 0)),
        ],
        out_specs=pl.BlockSpec((1, c, h * w), lambda i: (i, 0, 0)),
        compiler_params=pltpu.CompilerParams(
            dimension_semantics=("parallel",),
            vmem_limit_bytes=32 * 1024 * 1024),
    )(x_flat, w_all, params)

    return out_chw.reshape(n, c, h, w)                                    # NCHW, free reshape


# ----------------------------------------------------------------------------
# Pure-JAX reference (f32 end-to-end, torch-matching math) for a sanity check
# ----------------------------------------------------------------------------
def _ref_forward(x, gamma, beta, w1, w2, rho1, rho2, eps=1e-5):
    n, c, h, w = x.shape

    def conv(z, wt):
        zp = jnp.pad(z, ((0, 0), (0, 0), (1, 1), (1, 1)), mode="reflect")
        return jax.lax.conv_general_dilated(
            zp, wt, window_strides=(1, 1), padding="VALID",
            dimension_numbers=("NCHW", "OIHW", "NCHW"))

    def adalin(y, rho):
        in_mean = jnp.mean(y, axis=(2, 3), keepdims=True)
        in_var = jnp.var(y, axis=(2, 3), keepdims=True, ddof=1)
        out_in = (y - in_mean) / jnp.sqrt(in_var + eps)
        ln_mean = jnp.mean(y, axis=(1, 2, 3), keepdims=True)
        ln_var = jnp.var(y, axis=(1, 2, 3), keepdims=True, ddof=1)
        out_ln = (y - ln_mean) / jnp.sqrt(ln_var + eps)
        r = rho.reshape(1, c, 1, 1)
        out = r * out_in + (1.0 - r) * out_ln
        return out * gamma.reshape(n, c, 1, 1) + beta.reshape(n, c, 1, 1)

    y1 = jnp.maximum(adalin(conv(x, w1), rho1), 0.0)
    y2 = adalin(conv(y1, w2), rho2)
    return y2 + x


if __name__ == "__main__":
    N, C, H, W = 2, 4, 16, 16          # dim = 4

    key = jax.random.PRNGKey(0)
    kx, kg, kb, kw1, kw2 = jax.random.split(key, 5)

    x = jax.random.normal(kx, (N, C, H, W), dtype=jnp.float32)
    gamma = jax.random.normal(kg, (N, C), dtype=jnp.float32)
    beta = jax.random.normal(kb, (N, C), dtype=jnp.float32)

    # Conv2d(dim, dim, 3, bias=False) weights, deterministic init
    w1 = jax.random.normal(kw1, (C, C, 3, 3), dtype=jnp.float32) * 0.1
    w2 = jax.random.normal(kw2, (C, C, 3, 3), dtype=jnp.float32) * 0.1

    # adaLIN rho parameters, initialized to 0.9 as in the PyTorch module
    rho1 = jnp.full((1, C, 1, 1), 0.9, dtype=jnp.float32)
    rho2 = jnp.full((1, C, 1, 1), 0.9, dtype=jnp.float32)

    out = resnet_adalin_block(x, gamma, beta, w1, w2, rho1, rho2)
    out = jax.block_until_ready(out)

    ref = _ref_forward(x, gamma, beta, w1, w2, rho1, rho2)
    # Tolerance accounts for bf16 MXU operands (f32 accumulation) in the fused kernel
    # vs. the f32 end-to-end reference.
    np.testing.assert_allclose(np.asarray(out), np.asarray(ref), rtol=2e-2, atol=2e-2)

    assert out.shape == (N, C, H, W)
    print("KERNEL_OK")
</pallas_src>

<mosaic_0001>
module attributes {stable_mosaic.version = 11 : i64} {
  func.func @kernel(%arg0: i32, %arg1: memref<1x4x256xf32, #tpu.memory_space<vmem>>, %arg2: memref<2x9x4x4xbf16, #tpu.memory_space<vmem>>, %arg3: memref<1x4x4xf32, #tpu.memory_space<vmem>>, %arg4: memref<1x4x256xf32, #tpu.memory_space<vmem>>) attributes {dimension_semantics = [#tpu.dimension_semantics<parallel>], iteration_bounds = array<i64: 2>, scalar_prefetch = 0 : i64, scratch_operands = 0 : i64, tpu.core_type = #tpu.core_type<tc>, window_params = [{transform_indices = @transform_0, window_bounds = array<i64: 1, 4, 256>}, {pipeline_mode = #tpu.pipeline_mode<synchronous>, transform_indices = @transform_1, window_bounds = array<i64: 2, 9, 4, 4>}, {transform_indices = @transform_2, window_bounds = array<i64: 1, 4, 4>}, {transform_indices = @transform_3, window_bounds = array<i64: 1, 4, 256>}]} {
    %c0 = arith.constant 0 : index
    %c0_0 = arith.constant 0 : index
    %c0_1 = arith.constant 0 : index
    %0 = vector.load %arg1[%c0, %c0_0, %c0_1] : memref<1x4x256xf32, #tpu.memory_space<vmem>>, vector<1x4x256xf32>
    %1 = vector.shape_cast %0 : vector<1x4x256xf32> to vector<4x256xf32>
    %c0_2 = arith.constant 0 : index
    %c0_3 = arith.constant 0 : index
    %c0_4 = arith.constant 0 : index
    %c0_5 = arith.constant 0 : index
    %2 = vector.load %arg2[%c0_2, %c0_3, %c0_4, %c0_5] : memref<2x9x4x4xbf16, #tpu.memory_space<vmem>>, vector<2x9x4x4xbf16>
    %c0_6 = arith.constant 0 : index
    %c0_7 = arith.constant 0 : index
    %c0_8 = arith.constant 0 : index
    %3 = vector.load %arg3[%c0_6, %c0_7, %c0_8] : memref<1x4x4xf32, #tpu.memory_space<vmem>>, vector<1x4x4xf32>
    %4 = vector.shape_cast %3 : vector<1x4x4xf32> to vector<4x4xf32>
    %5 = vector.extract_strided_slice %4 {offsets = [0, 0], sizes = [1, 4], strides = [1, 1]} : vector<4x4xf32> to vector<1x4xf32>
    %6 = vector.extract_strided_slice %4 {offsets = [1, 0], sizes = [1, 4], strides = [1, 1]} : vector<4x4xf32> to vector<1x4xf32>
    %7 = vector.extract_strided_slice %4 {offsets = [2, 0], sizes = [1, 4], strides = [1, 1]} : vector<4x4xf32> to vector<1x4xf32>
    %8 = vector.extract_strided_slice %4 {offsets = [3, 0], sizes = [1, 4], strides = [1, 1]} : vector<4x4xf32> to vector<1x4xf32>
    %9 = tpu.transpose %1, [1, 0] : vector<4x256xf32> -> vector<256x4xf32>
    %10 = vector.shape_cast %9 : vector<256x4xf32> to vector<16x16x4xf32>
    %11 = vector.extract_strided_slice %10 {offsets = [1, 0, 0], sizes = [1, 16, 4], strides = [1, 1, 1]} : vector<16x16x4xf32> to vector<1x16x4xf32>
    %12 = vector.extract_strided_slice %10 {offsets = [14, 0, 0], sizes = [1, 16, 4], strides = [1, 1, 1]} : vector<16x16x4xf32> to vector<1x16x4xf32>
    %13 = tpu.concatenate %11, %10, %12 in 0 : vector<1x16x4xf32>, vector<16x16x4xf32>, vector<1x16x4xf32> -> vector<18x16x4xf32>
    %14 = vector.extract_strided_slice %13 {offsets = [0, 1, 0], sizes = [18, 1, 4], strides = [1, 1, 1]} : vector<18x16x4xf32> to vector<18x1x4xf32>
    %15 = vector.extract_strided_slice %13 {offsets = [0, 14, 0], sizes = [18, 1, 4], strides = [1, 1, 1]} : vector<18x16x4xf32> to vector<18x1x4xf32>
    %16 = tpu.concatenate %14, %13, %15 in 1 : vector<18x1x4xf32>, vector<18x16x4xf32>, vector<18x1x4xf32> -> vector<18x18x4xf32>
    %17 = arith.truncf %16 : vector<18x18x4xf32> to vector<18x18x4xbf16>
    %18 = vector.extract_strided_slice %17 {offsets = [0, 0, 0], sizes = [18, 16, 4], strides = [1, 1, 1]} : vector<18x18x4xbf16> to vector<18x16x4xbf16>
    %19 = vector.extract_strided_slice %18 {offsets = [0, 0, 0], sizes = [16, 16, 4], strides = [1, 1, 1]} : vector<18x16x4xbf16> to vector<16x16x4xbf16>
    %20 = vector.shape_cast %19 : vector<16x16x4xbf16> to vector<256x4xbf16>
    %21 = vector.extract_strided_slice %2 {offsets = [0, 0, 0, 0], sizes = [1, 1, 4, 4], strides = [1, 1, 1, 1]} : vector<2x9x4x4xbf16> to vector<1x1x4x4xbf16>
    %22 = vector.shape_cast %21 : vector<1x1x4x4xbf16> to vector<4x4xbf16>
    %cst = arith.constant dense<0.000000e+00> : vector<256x4xf32>
    %23 = tpu.matmul %20, %22, %cst {dimension_numbers = #tpu.dot_dimension_numbers<[1], [0], [0], [1], [0, 0, 1, 1], [], []>} : vector<256x4xbf16>, vector<4x4xbf16>, vector<256x4xf32> -> vector<256x4xf32>
    %24 = vector.extract_strided_slice %18 {offsets = [1, 0, 0], sizes = [16, 16, 4], strides = [1, 1, 1]} : vector<18x16x4xbf16> to vector<16x16x4xbf16>
    %25 = vector.shape_cast %24 : vector<16x16x4xbf16> to vector<256x4xbf16>
    %26 = vector.extract_strided_slice %2 {offsets = [0, 3, 0, 0], sizes = [1, 1, 4, 4], strides = [1, 1, 1, 1]} : vector<2x9x4x4xbf16> to vector<1x1x4x4xbf16>
    %27 = vector.shape_cast %26 : vector<1x1x4x4xbf16> to vector<4x4xbf16>
    %cst_9 = arith.constant dense<0.000000e+00> : vector<256x4xf32>
    %28 = tpu.matmul %25, %27, %cst_9 {dimension_numbers = #tpu.dot_dimension_numbers<[1], [0], [0], [1], [0, 0, 1, 1], [], []>} : vector<256x4xbf16>, vector<4x4xbf16>, vector<256x4xf32> -> vector<256x4xf32>
    %29 = arith.addf %23, %28 : vector<256x4xf32>
    %30 = vector.extract_strided_slice %18 {offsets = [2, 0, 0], sizes = [16, 16, 4], strides = [1, 1, 1]} : vector<18x16x4xbf16> to vector<16x16x4xbf16>
    %31 = vector.shape_cast %30 : vector<16x16x4xbf16> to vector<256x4xbf16>
    %32 = vector.extract_strided_slice %2 {offsets = [0, 6, 0, 0], sizes = [1, 1, 4, 4], strides = [1, 1, 1, 1]} : vector<2x9x4x4xbf16> to vector<1x1x4x4xbf16>
    %33 = vector.shape_cast %32 : vector<1x1x4x4xbf16> to vector<4x4xbf16>
    %cst_10 = arith.constant dense<0.000000e+00> : vector<256x4xf32>
    %34 = tpu.matmul %31, %33, %cst_10 {dimension_numbers = #tpu.dot_dimension_numbers<[1], [0], [0], [1], [0, 0, 1, 1], [], []>} : vector<256x4xbf16>, vector<4x4xbf16>, vector<256x4xf32> -> vector<256x4xf32>
    %35 = arith.addf %29, %34 : vector<256x4xf32>
    %36 = vector.extract_strided_slice %17 {offsets = [0, 1, 0], sizes = [18, 16, 4], strides = [1, 1, 1]} : vector<18x18x4xbf16> to vector<18x16x4xbf16>
    %37 = vector.extract_strided_slice %36 {offsets = [0, 0, 0], sizes = [16, 16, 4], strides = [1, 1, 1]} : vector<18x16x4xbf16> to vector<16x16x4xbf16>
    %38 = vector.shape_cast %37 : vector<16x16x4xbf16> to vector<256x4xbf16>
    %39 = vector.extract_strided_slice %2 {offsets = [0, 1, 0, 0], sizes = [1, 1, 4, 4], strides = [1, 1, 1, 1]} : vector<2x9x4x4xbf16> to vector<1x1x4x4xbf16>
    %40 = vector.shape_cast %39 : vector<1x1x4x4xbf16> to vector<4x4xbf16>
    %cst_11 = arith.constant dense<0.000000e+00> : vector<256x4xf32>
    %41 = tpu.matmul %38, %40, %cst_11 {dimension_numbers = #tpu.dot_dimension_numbers<[1], [0], [0], [1], [0, 0, 1, 1], [], []>} : vector<256x4xbf16>, vector<4x4xbf16>, vector<256x4xf32> -> vector<256x4xf32>
    %42 = arith.addf %35, %41 : vector<256x4xf32>
    %43 = vector.extract_strided_slice %36 {offsets = [1, 0, 0], sizes = [16, 16, 4], strides = [1, 1, 1]} : vector<18x16x4xbf16> to vector<16x16x4xbf16>
    %44 = vector.shape_cast %43 : vector<16x16x4xbf16> to vector<256x4xbf16>
    %45 = vector.extract_strided_slice %2 {offsets = [0, 4, 0, 0], sizes = [1, 1, 4, 4], strides = [1, 1, 1, 1]} : vector<2x9x4x4xbf16> to vector<1x1x4x4xbf16>
    %46 = vector.shape_cast %45 : vector<1x1x4x4xbf16> to vector<4x4xbf16>
    %cst_12 = arith.constant dense<0.000000e+00> : vector<256x4xf32>
    %47 = tpu.matmul %44, %46, %cst_12 {dimension_numbers = #tpu.dot_dimension_numbers<[1], [0], [0], [1], [0, 0, 1, 1], [], []>} : vector<256x4xbf16>, vector<4x4xbf16>, vector<256x4xf32> -> vector<256x4xf32>
    %48 = arith.addf %42, %47 : vector<256x4xf32>
    %49 = vector.extract_strided_slice %36 {offsets = [2, 0, 0], sizes = [16, 16, 4], strides = [1, 1, 1]} : vector<18x16x4xbf16> to vector<16x16x4xbf16>
    %50 = vector.shape_cast %49 : vector<16x16x4xbf16> to vector<256x4xbf16>
    %51 = vector.extract_strided_slice %2 {offsets = [0, 7, 0, 0], sizes = [1, 1, 4, 4], strides = [1, 1, 1, 1]} : vector<2x9x4x4xbf16> to vector<1x1x4x4xbf16>
    %52 = vector.shape_cast %51 : vector<1x1x4x4xbf16> to vector<4x4xbf16>
    %cst_13 = arith.constant dense<0.000000e+00> : vector<256x4xf32>
    %53 = tpu.matmul %50, %52, %cst_13 {dimension_numbers = #tpu.dot_dimension_numbers<[1], [0], [0], [1], [0, 0, 1, 1], [], []>} : vector<256x4xbf16>, vector<4x4xbf16>, vector<256x4xf32> -> vector<256x4xf32>
    %54 = arith.addf %48, %53 : vector<256x4xf32>
    %55 = vector.extract_strided_slice %17 {offsets = [0, 2, 0], sizes = [18, 16, 4], strides = [1, 1, 1]} : vector<18x18x4xbf16> to vector<18x16x4xbf16>
    %56 = vector.extract_strided_slice %55 {offsets = [0, 0, 0], sizes = [16, 16, 4], strides = [1, 1, 1]} : vector<18x16x4xbf16> to vector<16x16x4xbf16>
    %57 = vector.shape_cast %56 : vector<16x16x4xbf16> to vector<256x4xbf16>
    %58 = vector.extract_strided_slice %2 {offsets = [0, 2, 0, 0], sizes = [1, 1, 4, 4], strides = [1, 1, 1, 1]} : vector<2x9x4x4xbf16> to vector<1x1x4x4xbf16>
    %59 = vector.shape_cast %58 : vector<1x1x4x4xbf16> to vector<4x4xbf16>
    %cst_14 = arith.constant dense<0.000000e+00> : vector<256x4xf32>
    %60 = tpu.matmul %57, %59, %cst_14 {dimension_numbers = #tpu.dot_dimension_numbers<[1], [0], [0], [1], [0, 0, 1, 1], [], []>} : vector<256x4xbf16>, vector<4x4xbf16>, vector<256x4xf32> -> vector<256x4xf32>
    %61 = arith.addf %54, %60 : vector<256x4xf32>
    %62 = vector.extract_strided_slice %55 {offsets = [1, 0, 0], sizes = [16, 16, 4], strides = [1, 1, 1]} : vector<18x16x4xbf16> to vector<16x16x4xbf16>
    %63 = vector.shape_cast %62 : vector<16x16x4xbf16> to vector<256x4xbf16>
    %64 = vector.extract_strided_slice %2 {offsets = [0, 5, 0, 0], sizes = [1, 1, 4, 4], strides = [1, 1, 1, 1]} : vector<2x9x4x4xbf16> to vector<1x1x4x4xbf16>
    %65 = vector.shape_cast %64 : vector<1x1x4x4xbf16> to vector<4x4xbf16>
    %cst_15 = arith.constant dense<0.000000e+00> : vector<256x4xf32>
    %66 = tpu.matmul %63, %65, %cst_15 {dimension_numbers = #tpu.dot_dimension_numbers<[1], [0], [0], [1], [0, 0, 1, 1], [], []>} : vector<256x4xbf16>, vector<4x4xbf16>, vector<256x4xf32> -> vector<256x4xf32>
    %67 = arith.addf %61, %66 : vector<256x4xf32>
    %68 = vector.extract_strided_slice %55 {offsets = [2, 0, 0], sizes = [16, 16, 4], strides = [1, 1, 1]} : vector<18x16x4xbf16> to vector<16x16x4xbf16>
    %69 = vector.shape_cast %68 : vector<16x16x4xbf16> to vector<256x4xbf16>
    %70 = vector.extract_strided_slice %2 {offsets = [0, 8, 0, 0], sizes = [1, 1, 4, 4], strides = [1, 1, 1, 1]} : vector<2x9x4x4xbf16> to vector<1x1x4x4xbf16>
    %71 = vector.shape_cast %70 : vector<1x1x4x4xbf16> to vector<4x4xbf16>
    %cst_16 = arith.constant dense<0.000000e+00> : vector<256x4xf32>
    %72 = tpu.matmul %69, %71, %cst_16 {dimension_numbers = #tpu.dot_dimension_numbers<[1], [0], [0], [1], [0, 0, 1, 1], [], []>} : vector<256x4xbf16>, vector<4x4xbf16>, vector<256x4xf32> -> vector<256x4xf32>
    %73 = arith.addf %67, %72 : vector<256x4xf32>
    %cst_17 = arith.constant dense<0.000000e+00> : vector<4xf32>
    %74 = vector.multi_reduction <add>, %73, %cst_17 [0] : vector<256x4xf32> to vector<4xf32>
    %75 = vector.shape_cast %74 : vector<4xf32> to vector<1x4xf32>
    %76 = arith.mulf %73, %73 : vector<256x4xf32>
    %cst_18 = arith.constant dense<0.000000e+00> : vector<4xf32>
    %77 = vector.multi_reduction <add>, %76, %cst_18 [0] : vector<256x4xf32> to vector<4xf32>
    %78 = vector.shape_cast %77 : vector<4xf32> to vector<1x4xf32>
    %cst_19 = arith.constant 3.906250e-03 : f32
    %79 = vector.broadcast %cst_19 : f32 to vector<1x4xf32>
    %80 = arith.mulf %75, %79 : vector<1x4xf32>
    %81 = arith.mulf %80, %75 : vector<1x4xf32>
    %82 = arith.subf %78, %81 : vector<1x4xf32>
    %cst_20 = arith.constant 0.00392156886 : f32
    %83 = vector.broadcast %cst_20 : f32 to vector<1x4xf32>
    %84 = arith.mulf %82, %83 : vector<1x4xf32>
    %cst_21 = arith.constant 9.99999974E-6 : f32
    %85 = vector.broadcast %cst_21 : f32 to vector<1x4xf32>
    %86 = arith.addf %84, %85 : vector<1x4xf32>
    %87 = math.rsqrt %86 : vector<1x4xf32>
    %cst_22 = arith.constant dense<0.000000e+00> : vector<1xf32>
    %88 = vector.multi_reduction <add>, %75, %cst_22 [1] : vector<1x4xf32> to vector<1xf32>
    %89 = vector.shape_cast %88 : vector<1xf32> to vector<1x1xf32>
    %cst_23 = arith.constant dense<0.000000e+00> : vector<1xf32>
    %90 = vector.multi_reduction <add>, %78, %cst_23 [1] : vector<1x4xf32> to vector<1xf32>
    %91 = vector.shape_cast %90 : vector<1xf32> to vector<1x1xf32>
    %cst_24 = arith.constant 9.765625E-4 : f32
    %92 = vector.broadcast %cst_24 : f32 to vector<1x1xf32>
    %93 = arith.mulf %89, %92 : vector<1x1xf32>
    %94 = arith.mulf %93, %89 : vector<1x1xf32>
    %95 = arith.subf %91, %94 : vector<1x1xf32>
    %cst_25 = arith.constant 9.77517105E-4 : f32
    %96 = vector.broadcast %cst_25 : f32 to vector<1x1xf32>
    %97 = arith.mulf %95, %96 : vector<1x1xf32>
    %cst_26 = arith.constant 9.99999974E-6 : f32
    %98 = vector.broadcast %cst_26 : f32 to vector<1x1xf32>
    %99 = arith.addf %97, %98 : vector<1x1xf32>
    %100 = math.rsqrt %99 : vector<1x1xf32>
    %101 = arith.mulf %7, %87 : vector<1x4xf32>
    %cst_27 = arith.constant 1.000000e+00 : f32
    %102 = vector.broadcast %cst_27 : f32 to vector<1x4xf32>
    %103 = arith.subf %102, %7 : vector<1x4xf32>
    %104 = vector.broadcast %100 : vector<1x1xf32> to vector<1x4xf32>
    %105 = arith.mulf %103, %104 : vector<1x4xf32>
    %106 = arith.addf %101, %105 : vector<1x4xf32>
    %107 = arith.mulf %5, %106 : vector<1x4xf32>
    %108 = arith.mulf %7, %80 : vector<1x4xf32>
    %109 = arith.mulf %108, %87 : vector<1x4xf32>
    %cst_28 = arith.constant 1.000000e+00 : f32
    %110 = vector.broadcast %cst_28 : f32 to vector<1x4xf32>
    %111 = arith.subf %110, %7 : vector<1x4xf32>
    %112 = vector.broadcast %93 : vector<1x1xf32> to vector<1x4xf32>
    %113 = arith.mulf %111, %112 : vector<1x4xf32>
    %114 = vector.broadcast %100 : vector<1x1xf32> to vector<1x4xf32>
    %115 = arith.mulf %113, %114 : vector<1x4xf32>
    %116 = arith.addf %109, %115 : vector<1x4xf32>
    %117 = arith.mulf %5, %116 : vector<1x4xf32>
    %118 = arith.subf %6, %117 : vector<1x4xf32>
    %119 = vector.broadcast %107 : vector<1x4xf32> to vector<256x4xf32>
    %120 = arith.mulf %73, %119 : vector<256x4xf32>
    %121 = vector.broadcast %118 : vector<1x4xf32> to vector<256x4xf32>
    %122 = arith.addf %120, %121 : vector<256x4xf32>
    %cst_29 = arith.constant 0.000000e+00 : f32
    %123 = vector.broadcast %cst_29 : f32 to vector<256x4xf32>
    %124 = arith.maximumf %122, %123 : vector<256x4xf32>
    %125 = vector.shape_cast %124 : vector<256x4xf32> to vector<16x16x4xf32>
    %126 = vector.extract_strided_slice %125 {offsets = [1, 0, 0], sizes = [1, 16, 4], strides = [1, 1, 1]} : vector<16x16x4xf32> to vector<1x16x4xf32>
    %127 = vector.extract_strided_slice %125 {offsets = [14, 0, 0], sizes = [1, 16, 4], strides = [1, 1, 1]} : vector<16x16x4xf32> to vector<1x16x4xf32>
    %128 = tpu.concatenate %126, %125, %127 in 0 : vector<1x16x4xf32>, vector<16x16x4xf32>, vector<1x16x4xf32> -> vector<18x16x4xf32>
    %129 = vector.extract_strided_slice %128 {offsets = [0, 1, 0], sizes = [18, 1, 4], strides = [1, 1, 1]} : vector<18x16x4xf32> to vector<18x1x4xf32>
    %130 = vector.extract_strided_slice %128 {offsets = [0, 14, 0], sizes = [18, 1, 4], strides = [1, 1, 1]} : vector<18x16x4xf32> to vector<18x1x4xf32>
    %131 = tpu.concatenate %129, %128, %130 in 1 : vector<18x1x4xf32>, vector<18x16x4xf32>, vector<18x1x4xf32> -> vector<18x18x4xf32>
    %132 = arith.truncf %131 : vector<18x18x4xf32> to vector<18x18x4xbf16>
    %133 = vector.extract_strided_slice %132 {offsets = [0, 0, 0], sizes = [18, 16, 4], strides = [1, 1, 1]} : vector<18x18x4xbf16> to vector<18x16x4xbf16>
    %134 = vector.extract_strided_slice %133 {offsets = [0, 0, 0], sizes = [16, 16, 4], strides = [1, 1, 1]} : vector<18x16x4xbf16> to vector<16x16x4xbf16>
    %135 = vector.shape_cast %134 : vector<16x16x4xbf16> to vector<256x4xbf16>
    %136 = vector.extract_strided_slice %2 {offsets = [1, 0, 0, 0], sizes = [1, 1, 4, 4], strides = [1, 1, 1, 1]} : vector<2x9x4x4xbf16> to vector<1x1x4x4xbf16>
    %137 = vector.shape_cast %136 : vector<1x1x4x4xbf16> to vector<4x4xbf16>
    %cst_30 = arith.constant dense<0.000000e+00> : vector<256x4xf32>
    %138 = tpu.matmul %135, %137, %cst_30 {dimension_numbers = #tpu.dot_dimension_numbers<[1], [0], [0], [1], [0, 0, 1, 1], [], []>} : vector<256x4xbf16>, vector<4x4xbf16>, vector<256x4xf32> -> vector<256x4xf32>
    %139 = vector.extract_strided_slice %133 {offsets = [1, 0, 0], sizes = [16, 16, 4], strides = [1, 1, 1]} : vector<18x16x4xbf16> to vector<16x16x4xbf16>
    %140 = vector.shape_cast %139 : vector<16x16x4xbf16> to vector<256x4xbf16>
    %141 = vector.extract_strided_slice %2 {offsets = [1, 3, 0, 0], sizes = [1, 1, 4, 4], strides = [1, 1, 1, 1]} : vector<2x9x4x4xbf16> to vector<1x1x4x4xbf16>
    %142 = vector.shape_cast %141 : vector<1x1x4x4xbf16> to vector<4x4xbf16>
    %cst_31 = arith.constant dense<0.000000e+00> : vector<256x4xf32>
    %143 = tpu.matmul %140, %142, %cst_31 {dimension_numbers = #tpu.dot_dimension_numbers<[1], [0], [0], [1], [0, 0, 1, 1], [], []>} : vector<256x4xbf16>, vector<4x4xbf16>, vector<256x4xf32> -> vector<256x4xf32>
    %144 = arith.addf %138, %143 : vector<256x4xf32>
    %145 = vector.extract_strided_slice %133 {offsets = [2, 0, 0], sizes = [16, 16, 4], strides = [1, 1, 1]} : vector<18x16x4xbf16> to vector<16x16x4xbf16>
    %146 = vector.shape_cast %145 : vector<16x16x4xbf16> to vector<256x4xbf16>
    %147 = vector.extract_strided_slice %2 {offsets = [1, 6, 0, 0], sizes = [1, 1, 4, 4], strides = [1, 1, 1, 1]} : vector<2x9x4x4xbf16> to vector<1x1x4x4xbf16>
    %148 = vector.shape_cast %147 : vector<1x1x4x4xbf16> to vector<4x4xbf16>
    %cst_32 = arith.constant dense<0.000000e+00> : vector<256x4xf32>
    %149 = tpu.matmul %146, %148, %cst_32 {dimension_numbers = #tpu.dot_dimension_numbers<[1], [0], [0], [1], [0, 0, 1, 1], [], []>} : vector<256x4xbf16>, vector<4x4xbf16>, vector<256x4xf32> -> vector<256x4xf32>
    %150 = arith.addf %144, %149 : vector<256x4xf32>
    %151 = vector.extract_strided_slice %132 {offsets = [0, 1, 0], sizes = [18, 16, 4], strides = [1, 1, 1]} : vector<18x18x4xbf16> to vector<18x16x4xbf16>
    %152 = vector.extract_strided_slice %151 {offsets = [0, 0, 0], sizes = [16, 16, 4], strides = [1, 1, 1]} : vector<18x16x4xbf16> to vector<16x16x4xbf16>
    %153 = vector.shape_cast %152 : vector<16x16x4xbf16> to vector<256x4xbf16>
    %154 = vector.extract_strided_slice %2 {offsets = [1, 1, 0, 0], sizes = [1, 1, 4, 4], strides = [1, 1, 1, 1]} : vector<2x9x4x4xbf16> to vector<1x1x4x4xbf16>
    %155 = vector.shape_cast %154 : vector<1x1x4x4xbf16> to vector<4x4xbf16>
    %cst_33 = arith.constant dense<0.000000e+00> : vector<256x4xf32>
    %156 = tpu.matmul %153, %155, %cst_33 {dimension_numbers = #tpu.dot_dimension_numbers<[1], [0], [0], [1], [0, 0, 1, 1], [], []>} : vector<256x4xbf16>, vector<4x4xbf16>, vector<256x4xf32> -> vector<256x4xf32>
    %157 = arith.addf %150, %156 : vector<256x4xf32>
    %158 = vector.extract_strided_slice %151 {offsets = [1, 0, 0], sizes = [16, 16, 4], strides = [1, 1, 1]} : vector<18x16x4xbf16> to vector<16x16x4xbf16>
    %159 = vector.shape_cast %158 : vector<16x16x4xbf16> to vector<256x4xbf16>
    %160 = vector.extract_strided_slice %2 {offsets = [1, 4, 0, 0], sizes = [1, 1, 4, 4], strides = [1, 1, 1, 1]} : vector<2x9x4x4xbf16> to vector<1x1x4x4xbf16>
    %161 = vector.shape_cast %160 : vector<1x1x4x4xbf16> to vector<4x4xbf16>
    %cst_34 = arith.constant dense<0.000000e+00> : vector<256x4xf32>
    %162 = tpu.matmul %159, %161, %cst_34 {dimension_numbers = #tpu.dot_dimension_numbers<[1], [0], [0], [1], [0, 0, 1, 1], [], []>} : vector<256x4xbf16>, vector<4x4xbf16>, vector<256x4xf32> -> vector<256x4xf32>
    %163 = arith.addf %157, %162 : vector<256x4xf32>
    %164 = vector.extract_strided_slice %151 {offsets = [2, 0, 0], sizes = [16, 16, 4], strides = [1, 1, 1]} : vector<18x16x4xbf16> to vector<16x16x4xbf16>
    %165 = vector.shape_cast %164 : vector<16x16x4xbf16> to vector<256x4xbf16>
    %166 = vector.extract_strided_slice %2 {offsets = [1, 7, 0, 0], sizes = [1, 1, 4, 4], strides = [1, 1, 1, 1]} : vector<2x9x4x4xbf16> to vector<1x1x4x4xbf16>
    %167 = vector.shape_cast %166 : vector<1x1x4x4xbf16> to vector<4x4xbf16>
    %cst_35 = arith.constant dense<0.000000e+00> : vector<256x4xf32>
    %168 = tpu.matmul %165, %167, %cst_35 {dimension_numbers = #tpu.dot_dimension_numbers<[1], [0], [0], [1], [0, 0, 1, 1], [], []>} : vector<256x4xbf16>, vector<4x4xbf16>, vector<256x4xf32> -> vector<256x4xf32>
    %169 = arith.addf %163, %168 : vector<256x4xf32>
    %170 = vector.extract_strided_slice %132 {offsets = [0, 2, 0], sizes = [18, 16, 4], strides = [1, 1, 1]} : vector<18x18x4xbf16> to vector<18x16x4xbf16>
    %171 = vector.extract_strided_slice %170 {offsets = [0, 0, 0], sizes = [16, 16, 4], strides = [1, 1, 1]} : vector<18x16x4xbf16> to vector<16x16x4xbf16>
    %172 = vector.shape_cast %171 : vector<16x16x4xbf16> to vector<256x4xbf16>
    %173 = vector.extract_strided_slice %2 {offsets = [1, 2, 0, 0], sizes = [1, 1, 4, 4], strides = [1, 1, 1, 1]} : vector<2x9x4x4xbf16> to vector<1x1x4x4xbf16>
    %174 = vector.shape_cast %173 : vector<1x1x4x4xbf16> to vector<4x4xbf16>
    %cst_36 = arith.constant dense<0.000000e+00> : vector<256x4xf32>
    %175 = tpu.matmul %172, %174, %cst_36 {dimension_numbers = #tpu.dot_dimension_numbers<[1], [0], [0], [1], [0, 0, 1, 1], [], []>} : vector<256x4xbf16>, vector<4x4xbf16>, vector<256x4xf32> -> vector<256x4xf32>
    %176 = arith.addf %169, %175 : vector<256x4xf32>
    %177 = vector.extract_strided_slice %170 {offsets = [1, 0, 0], sizes = [16, 16, 4], strides = [1, 1, 1]} : vector<18x16x4xbf16> to vector<16x16x4xbf16>
    %178 = vector.shape_cast %177 : vector<16x16x4xbf16> to vector<256x4xbf16>
    %179 = vector.extract_strided_slice %2 {offsets = [1, 5, 0, 0], sizes = [1, 1, 4, 4], strides = [1, 1, 1, 1]} : vector<2x9x4x4xbf16> to vector<1x1x4x4xbf16>
    %180 = vector.shape_cast %179 : vector<1x1x4x4xbf16> to vector<4x4xbf16>
    %cst_37 = arith.constant dense<0.000000e+00> : vector<256x4xf32>
    %181 = tpu.matmul %178, %180, %cst_37 {dimension_numbers = #tpu.dot_dimension_numbers<[1], [0], [0], [1], [0, 0, 1, 1], [], []>} : vector<256x4xbf16>, vector<4x4xbf16>, vector<256x4xf32> -> vector<256x4xf32>
    %182 = arith.addf %176, %181 : vector<256x4xf32>
    %183 = vector.extract_strided_slice %170 {offsets = [2, 0, 0], sizes = [16, 16, 4], strides = [1, 1, 1]} : vector<18x16x4xbf16> to vector<16x16x4xbf16>
    %184 = vector.shape_cast %183 : vector<16x16x4xbf16> to vector<256x4xbf16>
    %185 = vector.extract_strided_slice %2 {offsets = [1, 8, 0, 0], sizes = [1, 1, 4, 4], strides = [1, 1, 1, 1]} : vector<2x9x4x4xbf16> to vector<1x1x4x4xbf16>
    %186 = vector.shape_cast %185 : vector<1x1x4x4xbf16> to vector<4x4xbf16>
    %cst_38 = arith.constant dense<0.000000e+00> : vector<256x4xf32>
    %187 = tpu.matmul %184, %186, %cst_38 {dimension_numbers = #tpu.dot_dimension_numbers<[1], [0], [0], [1], [0, 0, 1, 1], [], []>} : vector<256x4xbf16>, vector<4x4xbf16>, vector<256x4xf32> -> vector<256x4xf32>
    %188 = arith.addf %182, %187 : vector<256x4xf32>
    %cst_39 = arith.constant dense<0.000000e+00> : vector<4xf32>
    %189 = vector.multi_reduction <add>, %188, %cst_39 [0] : vector<256x4xf32> to vector<4xf32>
    %190 = vector.shape_cast %189 : vector<4xf32> to vector<1x4xf32>
    %191 = arith.mulf %188, %188 : vector<256x4xf32>
    %cst_40 = arith.constant dense<0.000000e+00> : vector<4xf32>
    %192 = vector.multi_reduction <add>, %191, %cst_40 [0] : vector<256x4xf32> to vector<4xf32>
    %193 = vector.shape_cast %192 : vector<4xf32> to vector<1x4xf32>
    %cst_41 = arith.constant 3.906250e-03 : f32
    %194 = vector.broadcast %cst_41 : f32 to vector<1x4xf32>
    %195 = arith.mulf %190, %194 : vector<1x4xf32>
    %196 = arith.mulf %195, %190 : vector<1x4xf32>
    %197 = arith.subf %193, %196 : vector<1x4xf32>
    %cst_42 = arith.constant 0.00392156886 : f32
    %198 = vector.broadcast %cst_42 : f32 to vector<1x4xf32>
    %199 = arith.mulf %197, %198 : vector<1x4xf32>
    %cst_43 = arith.constant 9.99999974E-6 : f32
    %200 = vector.broadcast %cst_43 : f32 to vector<1x4xf32>
    %201 = arith.addf %199, %200 : vector<1x4xf32>
    %202 = math.rsqrt %201 : vector<1x4xf32>
    %cst_44 = arith.constant dense<0.000000e+00> : vector<1xf32>
    %203 = vector.multi_reduction <add>, %190, %cst_44 [1] : vector<1x4xf32> to vector<1xf32>
    %204 = vector.shape_cast %203 : vector<1xf32> to vector<1x1xf32>
    %cst_45 = arith.constant dense<0.000000e+00> : vector<1xf32>
    %205 = vector.multi_reduction <add>, %193, %cst_45 [1] : vector<1x4xf32> to vector<1xf32>
    %206 = vector.shape_cast %205 : vector<1xf32> to vector<1x1xf32>
    %cst_46 = arith.constant 9.765625E-4 : f32
    %207 = vector.broadcast %cst_46 : f32 to vector<1x1xf32>
    %208 = arith.mulf %204, %207 : vector<1x1xf32>
    %209 = arith.mulf %208, %204 : vector<1x1xf32>
    %210 = arith.subf %206, %209 : vector<1x1xf32>
    %cst_47 = arith.constant 9.77517105E-4 : f32
    %211 = vector.broadcast %cst_47 : f32 to vector<1x1xf32>
    %212 = arith.mulf %210, %211 : vector<1x1xf32>
    %cst_48 = arith.constant 9.99999974E-6 : f32
    %213 = vector.broadcast %cst_48 : f32 to vector<1x1xf32>
    %214 = arith.addf %212, %213 : vector<1x1xf32>
    %215 = math.rsqrt %214 : vector<1x1xf32>
    %216 = arith.mulf %8, %202 : vector<1x4xf32>
    %cst_49 = arith.constant 1.000000e+00 : f32
    %217 = vector.broadcast %cst_49 : f32 to vector<1x4xf32>
    %218 = arith.subf %217, %8 : vector<1x4xf32>
    %219 = vector.broadcast %215 : vector<1x1xf32> to vector<1x4xf32>
    %220 = arith.mulf %218, %219 : vector<1x4xf32>
    %221 = arith.addf %216, %220 : vector<1x4xf32>
    %222 = arith.mulf %5, %221 : vector<1x4xf32>
    %223 = arith.mulf %8, %195 : vector<1x4xf32>
    %224 = arith.mulf %223, %202 : vector<1x4xf32>
    %cst_50 = arith.constant 1.000000e+00 : f32
    %225 = vector.broadcast %cst_50 : f32 to vector<1x4xf32>
    %226 = arith.subf %225, %8 : vector<1x4xf32>
    %227 = vector.broadcast %208 : vector<1x1xf32> to vector<1x4xf32>
    %228 = arith.mulf %226, %227 : vector<1x4xf32>
    %229 = vector.broadcast %215 : vector<1x1xf32> to vector<1x4xf32>
    %230 = arith.mulf %228, %229 : vector<1x4xf32>
    %231 = arith.addf %224, %230 : vector<1x4xf32>
    %232 = arith.mulf %5, %231 : vector<1x4xf32>
    %233 = arith.subf %6, %232 : vector<1x4xf32>
    %234 = vector.broadcast %222 : vector<1x4xf32> to vector<256x4xf32>
    %235 = arith.mulf %188, %234 : vector<256x4xf32>
    %236 = vector.broadcast %233 : vector<1x4xf32> to vector<256x4xf32>
    %237 = arith.addf %235, %236 : vector<256x4xf32>
    %238 = tpu.transpose %237, [1, 0] : vector<256x4xf32> -> vector<4x256xf32>
    %239 = arith.addf %238, %1 : vector<4x256xf32>
    %c0_51 = arith.constant 0 : index
    %c0_52 = arith.constant 0 : index
    %c0_53 = arith.constant 0 : index
    %240 = vector.load %arg4[%c0_51, %c0_52, %c0_53] : memref<1x4x256xf32, #tpu.memory_space<vmem>>, vector<1x4x256xf32>
    %241 = vector.shape_cast %240 : vector<1x4x256xf32> to vector<4x256xf32>
    %242 = vector.shape_cast %239 : vector<4x256xf32> to vector<1x4x256xf32>
    tpu.vector_store %arg4[%c0_51, %c0_52, %c0_53], %242 {strides = array<i32>} : memref<1x4x256xf32, #tpu.memory_space<vmem>>, vector<1x4x256xf32>,
    return
  }
  func.func @transform_0(%arg0: i32) -> (i32, i32, i32) {
    %c0_i32 = arith.constant 0 : i32
    %c0_i32_0 = arith.constant 0 : i32
    %c0_i32_1 = arith.constant 0 : i32
    return %arg0, %c0_i32, %c0_i32_0 : i32, i32, i32
  }
  func.func @transform_1(%arg0: i32) -> (i32, i32, i32, i32) {
    %c0_i32 = arith.constant 0 : i32
    %c0_i32_0 = arith.constant 0 : i32
    %c0_i32_1 = arith.constant 0 : i32
    %c0_i32_2 = arith.constant 0 : i32
    %c0_i32_3 = arith.constant 0 : i32
    return %c0_i32, %c0_i32_0, %c0_i32_1, %c0_i32_2 : i32, i32, i32, i32
  }
  func.func @transform_2(%arg0: i32) -> (i32, i32, i32) {
    %c0_i32 = arith.constant 0 : i32
    %c0_i32_0 = arith.constant 0 : i32
    %c0_i32_1 = arith.constant 0 : i32
    return %arg0, %c0_i32, %c0_i32_0 : i32, i32, i32
  }
  func.func @transform_3(%arg0: i32) -> (i32, i32, i32) {
    %c0_i32 = arith.constant 0 : i32
    %c0_i32_0 = arith.constant 0 : i32
    %c0_i32_1 = arith.constant 0 : i32
    return %arg0, %c0_i32, %c0_i32_0 : i32, i32, i32
  }
}

</mosaic_0001>

<llo_original>
// kernel: resnet_adalin_block.1
$region0: #{resnet_adalin_block.1}
  #allocation0 [shape = 'u32[]', space=smem, size = 0x4, offset = 0x4, fixed_abs, tag = 'smem constant byte address 0x4 - core index']
  #allocation1 [shape = 'u32[144,128]{1,0:T(1,128)}', space=vmem, size = 0x12000, scoped, tag = 'internal scratch']
  %s0 = inlined_call_operand.vmem [shape: f32[2,4,256], index: 0, kind: input, shape index: {}]
  %s1 = inlined_call_operand.vmem [shape: bf16[2,9,4,4], index: 1, kind: input, shape index: {}]
  %s2 = inlined_call_operand.vmem [shape: f32[2,4,4], index: 2, kind: input, shape index: {}]
  %s3 = inlined_call_operand.vmem [shape: f32[2,4,256], index: 3, kind: output, shape index: {}]
  %s4 = sld [smem:[#allocation0]]
  $region45: #{resnet_adalin_block.1} parent=0
    _
  %s6 = ssub.s32 1, %s4
  %s7 = scalar_select 0, %s6, %s4
  loop: start=0, step=1, limit=4
  $region2: #{resnet_adalin_block.1} parent=0 // loop_pre_header
    _
  $region3: #{resnet_adalin_block.1} parent=0 // loop_header
    %s9 = sphi 0, %s13
    %p10 = scmp.ge.s32.totalorder %s9, 4
    %s19 = sphi 0, %s21
    %s22 = sphi 0, %s19
    %s23 = sphi 0, %s22
    %s39 = sphi 0, %s23
    %s43 = sphi 0, %s43
    %s45 = sphi 0, %s43
    %s46 = sphi 0, %s45
    %s60 = sphi 0, %s46
    %s66 = sphi 0, %s68
    %s69 = sphi 0, %s66
    %s70 = sphi 0, %s69
    %s86 = sphi 0, %s70
    %s92 = sphi 0, %s94
    %s95 = sphi 0, %s92
    %s96 = sphi 0, %s95
    %s112 = sphi 0, %s96
  $region4: #{resnet_adalin_block.1} parent=0 // loop_header_branch
    %12 = sbr.rel (%p10) target = $region8
  $region5: #{resnet_adalin_block.1} parent=0 // loop_body
    %s14 = ssub.s32 %s9, 1
    %s15 = ssub.s32 %s9, 2
    %s16 = sadd.s32 %s9, 1
    %s17 = ssub.s32 %s9, %s16
    %p18 = scmp.eq.s32.totalorder %s17, 0
    %s20 = sadd.s32 %s19, 1
    %s21 = scalar_select %p18, %s19, %s20
    %p24 = pneg %p18
    %p25 = scmp.eq.s32.totalorder %s9, 1
    %p26 = por %p24, %p25
    %p27 = scmp.ne.s32.totalorder %s19, %s22
    %p28 = scmp.eq.s32.totalorder %s9, 0
    %p29 = por %p27, %p28
    %p30 = scmp.ne.s32.totalorder %s19, %s22
    %p31 = scmp.eq.s32.totalorder %s14, 1
    %p32 = por %p30, %p31
    %p33 = scmp.ne.s32.totalorder %s22, %s23
    %p34 = scmp.eq.s32.totalorder %s14, 0
    %p35 = por %p33, %p34
    %p36 = scmp.ne.s32.totalorder %s22, %s23
    %p37 = scmp.eq.s32.totalorder %s15, 1
    %p38 = por %p36, %p37
    %p40 = scmp.ne.s32.totalorder %s23, %s39
    %p41 = scmp.eq.s32.totalorder %s15, 0
    %p42 = por %p40, %p41
    %s44 = sadd.s32 %s43, 1
    %p47 = scmp.eq.s32.totalorder %s9, 1
    %p48 = scmp.ne.s32.totalorder %s43, %s45
    %p49 = scmp.eq.s32.totalorder %s9, 0
    %p50 = por %p48, %p49
    %p51 = scmp.ne.s32.totalorder %s43, %s45
    %p52 = scmp.eq.s32.totalorder %s14, 1
    %p53 = por %p51, %p52
    %p54 = scmp.ne.s32.totalorder %s45, %s46
    %p55 = scmp.eq.s32.totalorder %s14, 0
    %p56 = por %p54, %p55
    %p57 = scmp.ne.s32.totalorder %s45, %s46
    %p58 = scmp.eq.s32.totalorder %s15, 1
    %p59 = por %p57, %p58
    %p61 = scmp.ne.s32.totalorder %s46, %s60
    %p62 = scmp.eq.s32.totalorder %s15, 0
    %p63 = por %p61, %p62
    %s64 = ssub.s32 %s9, %s16
    %p65 = scmp.eq.s32.totalorder %s64, 0
    %s67 = sadd.s32 %s66, 1
    %s68 = scalar_select %p65, %s66, %s67
    %p71 = pneg %p65
    %p72 = scmp.eq.s32.totalorder %s9, 1
    %p73 = por %p71, %p72
    %p74 = scmp.ne.s32.totalorder %s66, %s69
    %p75 = scmp.eq.s32.totalorder %s9, 0
    %p76 = por %p74, %p75
    %p77 = scmp.ne.s32.totalorder %s66, %s69
    %p78 = scmp.eq.s32.totalorder %s14, 1
    %p79 = por %p77, %p78
    %p80 = scmp.ne.s32.totalorder %s69, %s70
    %p81 = scmp.eq.s32.totalorder %s14, 0
    %p82 = por %p80, %p81
    %p83 = scmp.ne.s32.totalorder %s69, %s70
    %p84 = scmp.eq.s32.totalorder %s15, 1
    %p85 = por %p83, %p84
    %p87 = scmp.ne.s32.totalorder %s70, %s86
    %p88 = scmp.eq.s32.totalorder %s15, 0
    %p89 = por %p87, %p88
    %s90 = ssub.s32 %s9, %s16
    %p91 = scmp.eq.s32.totalorder %s90, 0
    %s93 = sadd.s32 %s92, 1
    %s94 = scalar_select %p91, %s92, %s93
    %p97 = pneg %p91
    %p98 = scmp.eq.s32.totalorder %s9, 1
    %p99 = por %p97, %p98
    %p100 = scmp.ne.s32.totalorder %s92, %s95
    %p101 = scmp.eq.s32.totalorder %s9, 0
    %p102 = por %p100, %p101
    %p103 = scmp.ne.s32.totalorder %s92, %s95
    %p104 = scmp.eq.s32.totalorder %s14, 1
    %p105 = por %p103, %p104
    %p106 = scmp.ne.s32.totalorder %s95, %s96
    %p107 = scmp.eq.s32.totalorder %s14, 0
    %p108 = por %p106, %p107
    %p109 = scmp.ne.s32.totalorder %s95, %s96
    %p110 = scmp.eq.s32.totalorder %s15, 1
    %p111 = por %p109, %p110
    %p113 = scmp.ne.s32.totalorder %s96, %s112
    %p114 = scmp.eq.s32.totalorder %s15, 0
    %p115 = por %p113, %p114
    %p116 = scmp.le.s32.totalorder 1, %s9
    %p117 = scmp.lt.s32.totalorder %s9, 3
    %p118 = pnand %p116, %p117
    %p119 = pneg %p118
    // Predicated region
    $region9: #{resnet_adalin_block.1} parent=5 // pred_check
      _
    $region10: #{resnet_adalin_block.1} parent=5 // pred_check_branch
      %121 = sbr.rel (%p118) target = $region12
    $region11: #{resnet_adalin_block.1} parent=5 // pred_region
      %s122 = ssub.s32 %s9, 1
      // Predicated region
      $region13: #{resnet_adalin_block.1} parent=11 // pred_check
        %p123 = pneg %p56
      $region14: #{resnet_adalin_block.1} parent=11 // pred_check_branch
        %125 = sbr.rel (%p123) target = $region16
      $region15: #{resnet_adalin_block.1} parent=11 // pred_region
        _
      $region16: #{resnet_adalin_block.1} parent=11 // pred_fallthru
        _
    $region12: #{resnet_adalin_block.1} parent=5 // pred_fallthru
      _
    %p126 = scmp.lt.s32.totalorder %s9, 2
    // Predicated region
    $region17: #{resnet_adalin_block.1} parent=5 // pred_check
      %p127 = pneg %p126
    $region18: #{resnet_adalin_block.1} parent=5 // pred_check_branch
      %129 = sbr.rel (%p127) target = $region20
    $region19: #{resnet_adalin_block.1} parent=5 // pred_region
      // Predicated region
      $region21: #{resnet_adalin_block.1} parent=19 // pred_check
        %p130 = pneg %p29
      $region22: #{resnet_adalin_block.1} parent=19 // pred_check_branch
        %132 = sbr.rel (%p130) target = $region24
      $region23: #{resnet_adalin_block.1} parent=19 // pred_region
        %p133 = scmp.lt.s32.totalorder %s9, 1
        %s134 = scalar_select %p133, %s9, 1
        %s135 = smul.addr %s134, 2
        %s136 = smul.addr %s135, 4
        %s137 = scalar_lea.vmem %s0, %s136
      $region24: #{resnet_adalin_block.1} parent=19 // pred_fallthru
        _
      // Predicated region
      $region25: #{resnet_adalin_block.1} parent=19 // pred_check
        %p138 = pneg %p76
      $region26: #{resnet_adalin_block.1} parent=19 // pred_check_branch
        %140 = sbr.rel (%p138) target = $region28
      $region27: #{resnet_adalin_block.1} parent=19 // pred_region
        %p141 = scmp.lt.s32.totalorder %s9, 1
        %s142 = scalar_select %p141, %s9, 1
        %s143 = smul.addr %s142, 4
        %s144 = scalar_lea.vmem %s2, %s143
      $region28: #{resnet_adalin_block.1} parent=19 // pred_fallthru
        _
    $region20: #{resnet_adalin_block.1} parent=5 // pred_fallthru
      _
    %p145 = scmp.le.s32.totalorder 1, %s9
    %p146 = scmp.lt.s32.totalorder %s9, 3
    %p147 = pnand %p145, %p146
    %p148 = pneg %p147
    // Predicated region
    $region29: #{resnet_adalin_block.1} parent=5 // pred_check
      _
    $region30: #{resnet_adalin_block.1} parent=5 // pred_check_branch
      %150 = sbr.rel (%p147) target = $region32
    $region31: #{resnet_adalin_block.1} parent=5 // pred_region
      %s151 = ssub.s32 %s9, 1
      %p152 = scmp.lt.s32.totalorder %s14, 1
      %s153 = scalar_select %p152, %s14, 1
      %s154 = smul.addr %s153, 2
      %s155 = smul.addr %s154, 4
      %s156 = scalar_lea.vmem %s0, %s155
      %p157 = pneg %p35
      %p158 = pneg %p32
      %p159 = pneg %p56
      %p160 = pneg %p53
      %p161 = scmp.lt.s32.totalorder %s14, 1
      %s162 = scalar_select %p161, %s14, 1
      %s163 = smul.addr %s162, 4
      %s164 = scalar_lea.vmem %s2, %s163
      %p165 = pneg %p82
      %p166 = pneg %p79
      %p167 = pneg %p108
      %p168 = pneg %p105
      %p169 = scmp.lt.s32.totalorder %s14, 1
      %s170 = scalar_select %p169, %s14, 1
      %s171 = smul.addr %s170, 2
      %s172 = smul.addr %s171, 4
      %s173 = scalar_lea.vmem %s3, %s172
      %p174 = scmp.lt.s32.totalorder %s14, 1
      %s175 = scalar_select %p174, %s14, 1
      %s176 = smul.addr %s175, 2
      %s177 = smul.addr %s176, 4
      %s178 = scalar_lea.vmem %s0, %s177
      %p179 = scmp.lt.s32.totalorder %s14, 1
      %s180 = scalar_select %p179, %s14, 1
      %s181 = smul.addr %s180, 4
      %s182 = scalar_lea.vmem %s2, %s181
      %p183 = scmp.lt.s32.totalorder %s14, 1
      %s184 = scalar_select %p183, %s14, 1
      %s185 = smul.addr %s184, 2
      %s186 = smul.addr %s185, 4
      %s187 = scalar_lea.vmem %s3, %s186
      %v189 = vld [vmem:[%s178] sm:$0xff]
      %v190 = vld [vmem:[%s1] sm:$0x3]
      %v191 = vld [vmem:[%s1 + $0x2] sm:$0x3]
      %v192 = vld [vmem:[%s1 + $0x4] sm:$0x3]
      %v193 = vld [vmem:[%s1 + $0x6] sm:$0x3]
      %v194 = vld [vmem:[%s1 + $0x8] sm:$0x3]
      %v195 = vld [vmem:[%s1 + $0xa] sm:$0x3]
      %v196 = vld [vmem:[%s1 + $0xc] sm:$0x3]
      %v197 = vld [vmem:[%s1 + $0xe] sm:$0x3]
      %v198 = vld [vmem:[%s1 + $0x10] sm:$0x3]
      %v199 = vld [vmem:[%s1 + $0x12] sm:$0x3]
      %v200 = vld [vmem:[%s1 + $0x14] sm:$0x3]
      %v201 = vld [vmem:[%s1 + $0x16] sm:$0x3]
      %v202 = vld [vmem:[%s1 + $0x18] sm:$0x3]
      %v203 = vld [vmem:[%s1 + $0x1a] sm:$0x3]
      %v204 = vld [vmem:[%s1 + $0x1c] sm:$0x3]
      %v205 = vld [vmem:[%s1 + $0x1e] sm:$0x3]
      %v206 = vld [vmem:[%s1 + $0x20] sm:$0x3]
      %v207 = vld [vmem:[%s1 + $0x22] sm:$0x3]
      %v208 = vld [vmem:[%s182] sm:$0xf]
      %v210 = vcombine.high %v189, %v189
      %212 = vxpose.xlu0.b32.start [1/16] %v189, 128
      %213 = vxpose.xlu0.b32.cont [2/16] 0.0, 128
      %214 = vxpose.xlu0.b32.cont [3/16] 0.0, 128
      %215 = vxpose.xlu0.b32.cont [4/16] 0.0, 128
      %216 = vxpose.xlu0.b32.cont [5/16] 0.0, 128
      %217 = vxpose.xlu0.b32.cont [6/16] 0.0, 128
      %218 = vxpose.xlu0.b32.cont [7/16] 0.0, 128
      %219 = vxpose.xlu0.b32.cont [8/16] 0.0, 128
      %220 = vxpose.xlu0.b32.cont [9/16] 0.0, 128
      %221 = vxpose.xlu0.b32.cont [10/16] 0.0, 128
      %222 = vxpose.xlu0.b32.cont [11/16] 0.0, 128
      %223 = vxpose.xlu0.b32.cont [12/16] 0.0, 128
      %224 = vxpose.xlu0.b32.cont [13/16] 0.0, 128
      %225 = vxpose.xlu0.b32.cont [14/16] 0.0, 128
      %226 = vxpose.xlu0.b32.cont [15/16] 0.0, 128
      %227 = vxpose.xlu0.b32.end [16/16] 0.0, 128
      %v228 = vpop.trf.xlu0
      %v229 = vpop.trf.xlu0
      %v230 = vpop.trf.xlu0
      %v231 = vpop.trf.xlu0
      %v232 = vpop.trf.xlu0
      %v233 = vpop.trf.xlu0
      %v234 = vpop.trf.xlu0
      %v235 = vpop.trf.xlu0
      %v236 = vpop.trf.xlu0
      %v237 = vpop.trf.xlu0
      %v238 = vpop.trf.xlu0
      %v239 = vpop.trf.xlu0
      %v240 = vpop.trf.xlu0
      %v241 = vpop.trf.xlu0
      %v242 = vpop.trf.xlu0
      %v243 = vpop.trf.xlu0
      %244 = vxpose.xlu0.b32.start [1/16] %v210, 128
      %245 = vxpose.xlu0.b32.cont [2/16] 0.0, 128
      %246 = vxpose.xlu0.b32.cont [3/16] 0.0, 128
      %247 = vxpose.xlu0.b32.cont [4/16] 0.0, 128
      %248 = vxpose.xlu0.b32.cont [5/16] 0.0, 128
      %249 = vxpose.xlu0.b32.cont [6/16] 0.0, 128
      %250 = vxpose.xlu0.b32.cont [7/16] 0.0, 128
      %251 = vxpose.xlu0.b32.cont [8/16] 0.0, 128
      %252 = vxpose.xlu0.b32.cont [9/16] 0.0, 128
      %253 = vxpose.xlu0.b32.cont [10/16] 0.0, 128
      %254 = vxpose.xlu0.b32.cont [11/16] 0.0, 128
      %255 = vxpose.xlu0.b32.cont [12/16] 0.0, 128
      %256 = vxpose.xlu0.b32.cont [13/16] 0.0, 128
      %257 = vxpose.xlu0.b32.cont [14/16] 0.0, 128
      %258 = vxpose.xlu0.b32.cont [15/16] 0.0, 128
      %259 = vxpose.xlu0.b32.end [16/16] 0.0, 128
      %v260 = vpop.trf.xlu0
      %v261 = vpop.trf.xlu0
      %v262 = vpop.trf.xlu0
      %v263 = vpop.trf.xlu0
      %v264 = vpop.trf.xlu0
      %v265 = vpop.trf.xlu0
      %v266 = vpop.trf.xlu0
      %v267 = vpop.trf.xlu0
      %v268 = vpop.trf.xlu0
      %v269 = vpop.trf.xlu0
      %v270 = vpop.trf.xlu0
      %v271 = vpop.trf.xlu0
      %v272 = vpop.trf.xlu0
      %v273 = vpop.trf.xlu0
      %v274 = vpop.trf.xlu0
      %v275 = vpop.trf.xlu0
      %v292 = vrot.slane %v230, 1
      %v293 = vrot.slane %v228, 1
      %v294 = vrot.slane %v232, 1
      %v295 = vrot.slane %v234, 1
      %v296 = vrot.slane %v236, 1
      %v297 = vrot.slane %v238, 1
      %v298 = vrot.slane %v240, 1
      %v299 = vrot.slane %v242, 1
      %v300 = vrot.slane %v260, 1
      %v301 = vrot.slane %v262, 1
      %v302 = vrot.slane %v264, 1
      %v303 = vrot.slane %v266, 1
      %v304 = vrot.slane %v268, 1
      %v305 = vrot.slane %v270, 1
      %v306 = vrot.slane %v272, 1
      %v307 = vrot.slane %v274, 1
      %vm340 = vcmask 1040384
      %v341 = vrot.slane %v230, 7
      %v342 = vrot.slane %v231, 7
      %v343 = vsel %vm340, %v341, %v342
      %v344 = vrot.slane %v228, 7
      %v345 = vrot.slane %v229, 7
      %v346 = vsel %vm340, %v344, %v345
      %v347 = vrot.slane %v232, 7
      %v348 = vrot.slane %v233, 7
      %v349 = vsel %vm340, %v347, %v348
      %v350 = vrot.slane %v234, 7
      %v351 = vrot.slane %v235, 7
      %v352 = vsel %vm340, %v350, %v351
      %v353 = vrot.slane %v236, 7
      %v354 = vrot.slane %v237, 7
      %v355 = vsel %vm340, %v353, %v354
      %v356 = vrot.slane %v238, 7
      %v357 = vrot.slane %v239, 7
      %v358 = vsel %vm340, %v356, %v357
      %v359 = vrot.slane %v240, 7
      %v360 = vrot.slane %v241, 7
      %v361 = vsel %vm340, %v359, %v360
      %v362 = vrot.slane %v242, 7
      %v363 = vrot.slane %v243, 7
      %v364 = vsel %vm340, %v362, %v363
      %v365 = vrot.slane %v260, 7
      %v366 = vrot.slane %v261, 7
      %v367 = vsel %vm340, %v365, %v366
      %v368 = vrot.slane %v262, 7
      %v369 = vrot.slane %v263, 7
      %v370 = vsel %vm340, %v368, %v369
      %v371 = vrot.slane %v264, 7
      %v372 = vrot.slane %v265, 7
      %v373 = vsel %vm340, %v371, %v372
      %v374 = vrot.slane %v266, 7
      %v375 = vrot.slane %v267, 7
      %v376 = vsel %vm340, %v374, %v375
      %v377 = vrot.slane %v268, 7
      %v378 = vrot.slane %v269, 7
      %v379 = vsel %vm340, %v377, %v378
      %v380 = vrot.slane %v270, 7
      %v381 = vrot.slane %v271, 7
      %v382 = vsel %vm340, %v380, %v381
      %v383 = vrot.slane %v272, 7
      %v384 = vrot.slane %v273, 7
      %v385 = vsel %vm340, %v383, %v384
      %v386 = vrot.slane %v274, 7
      %v387 = vrot.slane %v275, 7
      %v388 = vsel %vm340, %v386, %v387
      %v437 = vrot.slane %v231, 5
      %v438 = vrot.slane %v229, 5
      %v439 = vrot.slane %v233, 5
      %v440 = vrot.slane %v235, 5
      %v441 = vrot.slane %v237, 5
      %v442 = vrot.slane %v239, 5
      %v443 = vrot.slane %v241, 5
      %v444 = vrot.slane %v243, 5
      %v445 = vrot.slane %v261, 5
      %v446 = vrot.slane %v263, 5
      %v447 = vrot.slane %v265, 5
      %v448 = vrot.slane %v267, 5
      %v449 = vrot.slane %v269, 5
      %v450 = vrot.slane %v271, 5
      %v451 = vrot.slane %v273, 5
      %v452 = vrot.slane %v275, 5
      %v469 = vsel %vm340, %v292, %v341
      %v470 = vsel %vm340, %v293, %v344
      %v471 = vsel %vm340, %v294, %v347
      %v472 = vsel %vm340, %v295, %v350
      %v473 = vsel %vm340, %v296, %v353
      %v474 = vsel %vm340, %v297, %v356
      %v475 = vsel %vm340, %v298, %v359
      %v476 = vsel %vm340, %v299, %v362
      %v477 = vsel %vm340, %v300, %v365
      %v478 = vsel %vm340, %v301, %v368
      %v479 = vsel %vm340, %v302, %v371
      %v480 = vsel %vm340, %v303, %v374
      %v481 = vsel %vm340, %v304, %v377
      %v482 = vsel %vm340, %v305, %v380
      %v483 = vsel %vm340, %v306, %v383
      %v484 = vsel %vm340, %v307, %v386
      %v485 = vsel %vm340, %v342, %v437
      %v486 = vsel %vm340, %v345, %v438
      %v487 = vsel %vm340, %v348, %v439
      %v488 = vsel %vm340, %v351, %v440
      %v489 = vsel %vm340, %v354, %v441
      %v490 = vsel %vm340, %v357, %v442
      %v491 = vsel %vm340, %v360, %v443
      %v492 = vsel %vm340, %v363, %v444
      %v493 = vsel %vm340, %v366, %v445
      %v494 = vsel %vm340, %v369, %v446
      %v495 = vsel %vm340, %v372, %v447
      %v496 = vsel %vm340, %v375, %v448
      %v497 = vsel %vm340, %v378, %v449
      %v498 = vsel %vm340, %v381, %v450
      %v499 = vsel %vm340, %v384, %v451
      %v500 = vsel %vm340, %v387, %v452
      %v501 = vpack.c.bf16 %v343, %v469
      %v502 = vpack.c.bf16 %v485, %v485
      %v503 = vpack.c.bf16 %v346, %v470
      %v504 = vpack.c.bf16 %v486, %v486
      %v505 = vpack.c.bf16 %v349, %v471
      %v506 = vpack.c.bf16 %v487, %v487
      %v507 = vpack.c.bf16 %v352, %v472
      %v508 = vpack.c.bf16 %v488, %v488
      %v509 = vpack.c.bf16 %v355, %v473
      %v510 = vpack.c.bf16 %v489, %v489
      %v511 = vpack.c.bf16 %v358, %v474
      %v512 = vpack.c.bf16 %v490, %v490
      %v513 = vpack.c.bf16 %v361, %v475
      %v514 = vpack.c.bf16 %v491, %v491
      %v515 = vpack.c.bf16 %v364, %v476
      %v516 = vpack.c.bf16 %v492, %v492
      %v517 = vpack.c.bf16 %v367, %v477
      %v518 = vpack.c.bf16 %v493, %v493
      %v519 = vpack.c.bf16 %v370, %v478
      %v520 = vpack.c.bf16 %v494, %v494
      %v521 = vpack.c.bf16 %v373, %v479
      %v522 = vpack.c.bf16 %v495, %v495
      %v523 = vpack.c.bf16 %v376, %v480
      %v524 = vpack.c.bf16 %v496, %v496
      %v525 = vpack.c.bf16 %v379, %v481
      %v526 = vpack.c.bf16 %v497, %v497
      %v527 = vpack.c.bf16 %v382, %v482
      %v528 = vpack.c.bf16 %v498, %v498
      %v529 = vpack.c.bf16 %v385, %v483
      %v530 = vpack.c.bf16 %v499, %v499
      %v531 = vpack.c.bf16 %v388, %v484
      %v532 = vpack.c.bf16 %v500, %v500
      %vm533 = vcmask 31744
      %v535 = vsel %vm533, %v503, 0
      %v538 = vsel %vm533, %v501, 0
      %v541 = vsel %vm533, %v505, 0
      %v544 = vsel %vm533, %v507, 0
      %v547 = vsel %vm533, %v509, 0
      %v550 = vsel %vm533, %v511, 0
      %v553 = vsel %vm533, %v513, 0
      %v556 = vsel %vm533, %v515, 0
      %v559 = vsel %vm533, %v517, 0
      %v562 = vsel %vm533, %v519, 0
      %v565 = vsel %vm533, %v521, 0
      %v568 = vsel %vm533, %v523, 0
      %v571 = vsel %vm533, %v525, 0
      %v574 = vsel %vm533, %v527, 0
      %v577 = vsel %vm533, %v529, 0
      %v580 = vsel %vm533, %v531, 0
      %vm582 = vcmask 1041408
      %v584 = vsel %vm582, %v193, 0
      %586 = vmatprep.subr.bf16.mxu0 0
      %587 = vmatpush1.bf16.msra.mxu0 %v584
      %588 = vmatprep.subr.bf16.mxu0 0
      %589 = vmatpush1.bf16.msra.mxu0 0
      %590 = vmatprep.subr.bf16.mxu0 0
      %591 = vmatpush1.bf16.msra.mxu0 0
      %592 = vmatprep.subr.bf16.mxu0 0
      %593 = vmatpush1.bf16.msra.mxu0 0
      %594 = vmatprep.subr.bf16.mxu0 0
      %595 = vmatpush1.bf16.msra.mxu0 0
      %596 = vmatprep.subr.bf16.mxu0 0
      %597 = vmatpush1.bf16.msra.mxu0 0
      %598 = vmatprep.subr.bf16.mxu0 0
      %599 = vmatpush1.bf16.msra.mxu0 0
      %600 = vmatprep.subr.bf16.mxu0 0
      %601 = vmatpush1.bf16.msra.mxu0 0
      %602 = vmatprep.subr.bf16.mxu0 0
      %603 = vmatpush1.bf16.msra.mxu0 0
      %604 = vmatprep.subr.bf16.mxu0 0
      %605 = vmatpush1.bf16.msra.mxu0 0
      %606 = vmatprep.subr.bf16.mxu0 0
      %607 = vmatpush1.bf16.msra.mxu0 0
      %608 = vmatprep.subr.bf16.mxu0 0
      %609 = vmatpush1.bf16.msra.mxu0 0
      %610 = vmatprep.subr.bf16.mxu0 0
      %611 = vmatpush1.bf16.msra.mxu0 0
      %612 = vmatprep.subr.bf16.mxu0 0
      %613 = vmatpush1.bf16.msra.mxu0 0
      %614 = vmatprep.subr.bf16.mxu0 0
      %615 = vmatpush1.bf16.msra.mxu0 0
      %616 = vmatprep.subr.bf16.mxu0 0
      %617 = vmatpush1.bf16.msra.mxu0 0
      %618 = vmatprep.mubr.bf16.mxu0 0
      %619 = vmatmul.mubr.bf16.gmra.mrb[0].mxu0 %v535
      %v620 = vpop.f32.mrb[0].mxu0
      %v621 = vadd.f32 0.0, %v620
      %v622 = vpop.f32.mrb[0].mxu0
      %v623 = vpop.f32.mrb[0].mxu0
      %v624 = vadd.f32 0.0, %v623
      %v625 = vpop.f32.mrb[0].mxu0
      %626 = vmatprep.mubr.bf16.mxu0 0
      %627 = vmatmul.mubr.bf16.gmra.mrb[0].mxu0 %v538
      %v628 = vpop.f32.mrb[0].mxu0
      %v629 = vadd.f32 0.0, %v628
      %v630 = vpop.f32.mrb[0].mxu0
      %v631 = vpop.f32.mrb[0].mxu0
      %v632 = vadd.f32 0.0, %v631
      %v633 = vpop.f32.mrb[0].mxu0
      %634 = vmatprep.mubr.bf16.mxu0 0
      %635 = vmatmul.mubr.bf16.gmra.mrb[0].mxu0 %v541
      %v636 = vpop.f32.mrb[0].mxu0
      %v637 = vadd.f32 0.0, %v636
      %v638 = vpop.f32.mrb[0].mxu0
      %v639 = vpop.f32.mrb[0].mxu0
      %v640 = vadd.f32 0.0, %v639
      %v641 = vpop.f32.mrb[0].mxu0
      %642 = vmatprep.mubr.bf16.mxu0 0
      %643 = vmatmul.mubr.bf16.gmra.mrb[0].mxu0 %v544
      %v644 = vpop.f32.mrb[0].mxu0
      %v645 = vadd.f32 0.0, %v644
      %v646 = vpop.f32.mrb[0].mxu0
      %v647 = vpop.f32.mrb[0].mxu0
      %v648 = vadd.f32 0.0, %v647
      %v649 = vpop.f32.mrb[0].mxu0
      %650 = vmatprep.mubr.bf16.mxu0 0
      %651 = vmatmul.mubr.bf16.gmra.mrb[0].mxu0 %v547
      %v652 = vpop.f32.mrb[0].mxu0
      %v653 = vadd.f32 0.0, %v652
      %v654 = vpop.f32.mrb[0].mxu0
      %v655 = vpop.f32.mrb[0].mxu0
      %v656 = vadd.f32 0.0, %v655
      %v657 = vpop.f32.mrb[0].mxu0
      %658 = vmatprep.mubr.bf16.mxu0 0
      %659 = vmatmul.mubr.bf16.gmra.mrb[0].mxu0 %v550
      %v660 = vpop.f32.mrb[0].mxu0
      %v661 = vadd.f32 0.0, %v660
      %v662 = vpop.f32.mrb[0].mxu0
      %v663 = vpop.f32.mrb[0].mxu0
      %v664 = vadd.f32 0.0, %v663
      %v665 = vpop.f32.mrb[0].mxu0
      %666 = vmatprep.mubr.bf16.mxu0 0
      %667 = vmatmul.mubr.bf16.gmra.mrb[0].mxu0 %v553
      %v668 = vpop.f32.mrb[0].mxu0
      %v669 = vadd.f32 0.0, %v668
      %v670 = vpop.f32.mrb[0].mxu0
      %v671 = vpop.f32.mrb[0].mxu0
      %v672 = vadd.f32 0.0, %v671
      %v673 = vpop.f32.mrb[0].mxu0
      %674 = vmatprep.mubr.bf16.mxu0 0
      %675 = vmatmul.mubr.bf16.gmra.mrb[0].mxu0 %v556
      %v676 = vpop.f32.mrb[0].mxu0
      %v677 = vadd.f32 0.0, %v676
      %v678 = vpop.f32.mrb[0].mxu0
      %v679 = vpop.f32.mrb[0].mxu0
      %v680 = vadd.f32 0.0, %v679
      %v681 = vpop.f32.mrb[0].mxu0
      %682 = vmatprep.mubr.bf16.mxu0 0
      %683 = vmatmul.mubr.bf16.gmra.mrb[0].mxu0 %v559
      %v684 = vpop.f32.mrb[0].mxu0
      %v685 = vadd.f32 0.0, %v684
      %v686 = vpop.f32.mrb[0].mxu0
      %v687 = vpop.f32.mrb[0].mxu0
      %v688 = vadd.f32 0.0, %v687
      %v689 = vpop.f32.mrb[0].mxu0
      %690 = vmatprep.mubr.bf16.mxu0 0
      %691 = vmatmul.mubr.bf16.gmra.mrb[0].mxu0 %v562
      %v692 = vpop.f32.mrb[0].mxu0
      %v693 = vadd.f32 0.0, %v692
      %v694 = vpop.f32.mrb[0].mxu0
      %v695 = vpop.f32.mrb[0].mxu0
      %v696 = vadd.f32 0.0, %v695
      %v697 = vpop.f32.mrb[0].mxu0
      %698 = vmatprep.mubr.bf16.mxu0 0
      %699 = vmatmul.mubr.bf16.gmra.mrb[0].mxu0 %v565
      %v700 = vpop.f32.mrb[0].mxu0
      %v701 = vadd.f32 0.0, %v700
      %v702 = vpop.f32.mrb[0].mxu0
      %v703 = vpop.f32.mrb[0].mxu0
      %v704 = vadd.f32 0.0, %v703
      %v705 = vpop.f32.mrb[0].mxu0
      %706 = vmatprep.mubr.bf16.mxu0 0
      %707 = vmatmul.mubr.bf16.gmra.mrb[0].mxu0 %v568
      %v708 = vpop.f32.mrb[0].mxu0
      %v709 = vadd.f32 0.0, %v708
      %v710 = vpop.f32.mrb[0].mxu0
      %v711 = vpop.f32.mrb[0].mxu0
      %v712 = vadd.f32 0.0, %v711
      %v713 = vpop.f32.mrb[0].mxu0
      %714 = vmatprep.mubr.bf16.mxu0 0
      %715 = vmatmul.mubr.bf16.gmra.mrb[0].mxu0 %v571
      %v716 = vpop.f32.mrb[0].mxu0
      %v717 = vadd.f32 0.0, %v716
      %v718 = vpop.f32.mrb[0].mxu0
      %v719 = vpop.f32.mrb[0].mxu0
      %v720 = vadd.f32 0.0, %v719
      %v721 = vpop.f32.mrb[0].mxu0
      %722 = vmatprep.mubr.bf16.mxu0 0
      %723 = vmatmul.mubr.bf16.gmra.mrb[0].mxu0 %v574
      %v724 = vpop.f32.mrb[0].mxu0
      %v725 = vadd.f32 0.0, %v724
      %v726 = vpop.f32.mrb[0].mxu0
      %v727 = vpop.f32.mrb[0].mxu0
      %v728 = vadd.f32 0.0, %v727
      %v729 = vpop.f32.mrb[0].mxu0
      %730 = vmatprep.mubr.bf16.mxu0 0
      %731 = vmatmul.mubr.bf16.gmra.mrb[0].mxu0 %v577
      %v732 = vpop.f32.mrb[0].mxu0
      %v733 = vadd.f32 0.0, %v732
      %v734 = vpop.f32.mrb[0].mxu0
      %v735 = vpop.f32.mrb[0].mxu0
      %v736 = vadd.f32 0.0, %v735
      %v737 = vpop.f32.mrb[0].mxu0
      %738 = vmatprep.mubr.bf16.mxu0 0
      %739 = vmatmul.mubr.bf16.gmra.mrb[0].mxu0 %v580
      %v740 = vpop.f32.mrb[0].mxu0
      %v741 = vadd.f32 0.0, %v740
      %v742 = vpop.f32.mrb[0].mxu0
      %v743 = vpop.f32.mrb[0].mxu0
      %v744 = vadd.f32 0.0, %v743
      %v745 = vpop.f32.mrb[0].mxu0
      %746 = vdwg.mxu0
      %v748 = vsel %vm582, %v190, 0
      %750 = vmatprep.subr.bf16.mxu0 0
      %751 = vmatpush1.bf16.msra.mxu0 %v748
      %752 = vmatprep.subr.bf16.mxu0 0
      %753 = vmatpush1.bf16.msra.mxu0 0
      %754 = vmatprep.subr.bf16.mxu0 0
      %755 = vmatpush1.bf16.msra.mxu0 0
      %756 = vmatprep.subr.bf16.mxu0 0
      %757 = vmatpush1.bf16.msra.mxu0 0
      %758 = vmatprep.subr.bf16.mxu0 0
      %759 = vmatpush1.bf16.msra.mxu0 0
      %760 = vmatprep.subr.bf16.mxu0 0
      %761 = vmatpush1.bf16.msra.mxu0 0
      %762 = vmatprep.subr.bf16.mxu0 0
      %763 = vmatpush1.bf16.msra.mxu0 0
      %764 = vmatprep.subr.bf16.mxu0 0
      %765 = vmatpush1.bf16.msra.mxu0 0
      %766 = vmatprep.subr.bf16.mxu0 0
      %767 = vmatpush1.bf16.msra.mxu0 0
      %768 = vmatprep.subr.bf16.mxu0 0
      %769 = vmatpush1.bf16.msra.mxu0 0
      %770 = vmatprep.subr.bf16.mxu0 0
      %771 = vmatpush1.bf16.msra.mxu0 0
      %772 = vmatprep.subr.bf16.mxu0 0
      %773 = vmatpush1.bf16.msra.mxu0 0
      %774 = vmatprep.subr.bf16.mxu0 0
      %775 = vmatpush1.bf16.msra.mxu0 0
      %776 = vmatprep.subr.bf16.mxu0 0
      %777 = vmatpush1.bf16.msra.mxu0 0
      %778 = vmatprep.subr.bf16.mxu0 0
      %779 = vmatpush1.bf16.msra.mxu0 0
      %780 = vmatprep.subr.bf16.mxu0 0
      %781 = vmatpush1.bf16.msra.mxu0 0
      %782 = vmatprep.mubr.bf16.mxu0 0
      %783 = vmatmul.mubr.bf16.gmra.mrb[0].mxu0 %v538
      %v784 = vpop.f32.mrb[0].mxu0
      %v785 = vadd.f32 %v621, %v784
      %v786 = vpop.f32.mrb[0].mxu0
      %v787 = vpop.f32.mrb[0].mxu0
      %v788 = vadd.f32 %v624, %v787
      %v789 = vpop.f32.mrb[0].mxu0
      %790 = vmatprep.mubr.bf16.mxu0 0
      %791 = vmatmul.mubr.bf16.gmra.mrb[0].mxu0 %v535
      %v792 = vpop.f32.mrb[0].mxu0
      %v793 = vadd.f32 %v629, %v792
      %v794 = vpop.f32.mrb[0].mxu0
      %v795 = vpop.f32.mrb[0].mxu0
      %v796 = vadd.f32 %v632, %v795
      %v797 = vpop.f32.mrb[0].mxu0
      %798 = vmatprep.mubr.bf16.mxu0 0
      %799 = vmatmul.mubr.bf16.gmra.mrb[0].mxu0 %v538
      %v800 = vpop.f32.mrb[0].mxu0
      %v801 = vadd.f32 %v637, %v800
      %v802 = vpop.f32.mrb[0].mxu0
      %v803 = vpop.f32.mrb[0].mxu0
      %v804 = vadd.f32 %v640, %v803
      %v805 = vpop.f32.mrb[0].mxu0
      %806 = vmatprep.mubr.bf16.mxu0 0
      %807 = vmatmul.mubr.bf16.gmra.mrb[0].mxu0 %v541
      %v808 = vpop.f32.mrb[0].mxu0
      %v809 = vadd.f32 %v645, %v808
      %v810 = vpop.f32.mrb[0].mxu0
      %v811 = vpop.f32.mrb[0].mxu0
      %v812 = vadd.f32 %v648, %v811
      %v813 = vpop.f32.mrb[0].mxu0
      %814 = vmatprep.mubr.bf16.mxu0 0
      %815 = vmatmul.mubr.bf16.gmra.mrb[0].mxu0 %v544
      %v816 = vpop.f32.mrb[0].mxu0
      %v817 = vadd.f32 %v653, %v816
      %v818 = vpop.f32.mrb[0].mxu0
      %v819 = vpop.f32.mrb[0].mxu0
      %v820 = vadd.f32 %v656, %v819
      %v821 = vpop.f32.mrb[0].mxu0
      %822 = vmatprep.mubr.bf16.mxu0 0
      %823 = vmatmul.mubr.bf16.gmra.mrb[0].mxu0 %v547
      %v824 = vpop.f32.mrb[0].mxu0
      %v825 = vadd.f32 %v661, %v824
      %v826 = vpop.f32.mrb[0].mxu0
      %v827 = vpop.f32.mrb[0].mxu0
      %v828 = vadd.f32 %v664, %v827
      %v829 = vpop.f32.mrb[0].mxu0
      %830 = vmatprep.mubr.bf16.mxu0 0
      %831 = vmatmul.mubr.bf16.gmra.mrb[0].mxu0 %v550
      %v832 = vpop.f32.mrb[0].mxu0
      %v833 = vadd.f32 %v669, %v832
      %v834 = vpop.f32.mrb[0].mxu0
      %v835 = vpop.f32.mrb[0].mxu0
      %v836 = vadd.f32 %v672, %v835
      %v837 = vpop.f32.mrb[0].mxu0
      %838 = vmatprep.mubr.bf16.mxu0 0
      %839 = vmatmul.mubr.bf16.gmra.mrb[0].mxu0 %v553
      %v840 = vpop.f32.mrb[0].mxu0
      %v841 = vadd.f32 %v677, %v840
      %v842 = vpop.f32.mrb[0].mxu0
      %v843 = vpop.f32.mrb[0].mxu0
      %v844 = vadd.f32 %v680, %v843
      %v845 = vpop.f32.mrb[0].mxu0
      %846 = vmatprep.mubr.bf16.mxu0 0
      %847 = vmatmul.mubr.bf16.gmra.mrb[0].mxu0 %v556
      %v848 = vpop.f32.mrb[0].mxu0
      %v849 = vadd.f32 %v685, %v848
      %v850 = vpop.f32.mrb[0].mxu0
      %v851 = vpop.f32.mrb[0].mxu0
      %v852 = vadd.f32 %v688, %v851
      %v853 = vpop.f32.mrb[0].mxu0
      %854 = vmatprep.mubr.bf16.mxu0 0
      %855 = vmatmul.mubr.bf16.gmra.mrb[0].mxu0 %v559
      %v856 = vpop.f32.mrb[0].mxu0
      %v857 = vadd.f32 %v693, %v856
      %v858 = vpop.f32.mrb[0].mxu0
      %v859 = vpop.f32.mrb[0].mxu0
      %v860 = vadd.f32 %v696, %v859
      %v861 = vpop.f32.mrb[0].mxu0
      %862 = vmatprep.mubr.bf16.mxu0 0
      %863 = vmatmul.mubr.bf16.gmra.mrb[0].mxu0 %v562
      %v864 = vpop.f32.mrb[0].mxu0
      %v865 = vadd.f32 %v701, %v864
      %v866 = vpop.f32.mrb[0].mxu0
      %v867 = vpop.f32.mrb[0].mxu0
      %v868 = vadd.f32 %v704, %v867
      %v869 = vpop.f32.mrb[0].mxu0
      %870 = vmatprep.mubr.bf16.mxu0 0
      %871 = vmatmul.mubr.bf16.gmra.mrb[0].mxu0 %v565
      %v872 = vpop.f32.mrb[0].mxu0
      %v873 = vadd.f32 %v709, %v872
      %v874 = vpop.f32.mrb[0].mxu0
      %v875 = vpop.f32.mrb[0].mxu0
      %v876 = vadd.f32 %v712, %v875
      %v877 = vpop.f32.mrb[0].mxu0
      %878 = vmatprep.mubr.bf16.mxu0 0
      %879 = vmatmul.mubr.bf16.gmra.mrb[0].mxu0 %v568
      %v880 = vpop.f32.mrb[0].mxu0
      %v881 = vadd.f32 %v717, %v880
      %v882 = vpop.f32.mrb[0].mxu0
      %v883 = vpop.f32.mrb[0].mxu0
      %v884 = vadd.f32 %v720, %v883
      %v885 = vpop.f32.mrb[0].mxu0
      %886 = vmatprep.mubr.bf16.mxu0 0
      %887 = vmatmul.mubr.bf16.gmra.mrb[0].mxu0 %v571
      %v888 = vpop.f32.mrb[0].mxu0
      %v889 = vadd.f32 %v725, %v888
      %v890 = vpop.f32.mrb[0].mxu0
      %v891 = vpop.f32.mrb[0].mxu0
      %v892 = vadd.f32 %v728, %v891
      %v893 = vpop.f32.mrb[0].mxu0
      %894 = vmatprep.mubr.bf16.mxu0 0
      %895 = vmatmul.mubr.bf16.gmra.mrb[0].mxu0 %v574
      %v896 = vpop.f32.mrb[0].mxu0
      %v897 = vadd.f32 %v733, %v896
      %v898 = vpop.f32.mrb[0].mxu0
      %v899 = vpop.f32.mrb[0].mxu0
      %v900 = vadd.f32 %v736, %v899
      %v901 = vpop.f32.mrb[0].mxu0
      %902 = vmatprep.mubr.bf16.mxu0 0
      %903 = vmatmul.mubr.bf16.gmra.mrb[0].mxu0 %v577
      %v904 = vpop.f32.mrb[0].mxu0
      %v905 = vadd.f32 %v741, %v904
      %v906 = vpop.f32.mrb[0].mxu0
      %v907 = vpop.f32.mrb[0].mxu0
      %v908 = vadd.f32 %v744, %v907
      %v909 = vpop.f32.mrb[0].mxu0
      %910 = vdwg.mxu0
      %v912 = vsel %vm582, %v196, 0
      %914 = vmatprep.subr.bf16.mxu0 0
      %915 = vmatpush1.bf16.msra.mxu0 %v912
      %916 = vmatprep.subr.bf16.mxu0 0
      %917 = vmatpush1.bf16.msra.mxu0 0
      %918 = vmatprep.subr.bf16.mxu0 0
      %919 = vmatpush1.bf16.msra.mxu0 0
      %920 = vmatprep.subr.bf16.mxu0 0
      %921 = vmatpush1.bf16.msra.mxu0 0
      %922 = vmatprep.subr.bf16.mxu0 0
      %923 = vmatpush1.bf16.msra.mxu0 0
      %924 = vmatprep.subr.bf16.mxu0 0
      %925 = vmatpush1.bf16.msra.mxu0 0
      %926 = vmatprep.subr.bf16.mxu0 0
      %927 = vmatpush1.bf16.msra.mxu0 0
      %928 = vmatprep.subr.bf16.mxu0 0
      %929 = vmatpush1.bf16.msra.mxu0 0
      %930 = vmatprep.subr.bf16.mxu0 0
      %931 = vmatpush1.bf16.msra.mxu0 0
      %932 = vmatprep.subr.bf16.mxu0 0
      %933 = vmatpush1.bf16.msra.mxu0 0
      %934 = vmatprep.subr.bf16.mxu0 0
      %935 = vmatpush1.bf16.msra.mxu0 0
      %936 = vmatprep.subr.bf16.mxu0 0
      %937 = vmatpush1.bf16.msra.mxu0 0
      %938 = vmatprep.subr.bf16.mxu0 0
      %939 = vmatpush1.bf16.msra.mxu0 0
      %940 = vmatprep.subr.bf16.mxu0 0
      %941 = vmatpush1.bf16.msra.mxu0 0
      %942 = vmatprep.subr.bf16.mxu0 0
      %943 = vmatpush1.bf16.msra.mxu0 0
      %944 = vmatprep.subr.bf16.mxu0 0
      %945 = vmatpush1.bf16.msra.mxu0 0
      %946 = vmatprep.mubr.bf16.mxu0 0
      %947 = vmatmul.mubr.bf16.gmra.mrb[0].mxu0 %v538
      %v948 = vpop.f32.mrb[0].mxu0
      %v949 = vadd.f32 0.0, %v948
      %v950 = vpop.f32.mrb[0].mxu0
      %v951 = vpop.f32.mrb[0].mxu0
      %v952 = vadd.f32 0.0, %v951
      %v953 = vpop.f32.mrb[0].mxu0
      %954 = vmatprep.mubr.bf16.mxu0 0
      %955 = vmatmul.mubr.bf16.gmra.mrb[0].mxu0 %v541
      %v956 = vpop.f32.mrb[0].mxu0
      %v957 = vadd.f32 0.0, %v956
      %v958 = vpop.f32.mrb[0].mxu0
      %v959 = vpop.f32.mrb[0].mxu0
      %v960 = vadd.f32 0.0, %v959
      %v961 = vpop.f32.mrb[0].mxu0
      %962 = vmatprep.mubr.bf16.mxu0 0
      %963 = vmatmul.mubr.bf16.gmra.mrb[0].mxu0 %v544
      %v964 = vpop.f32.mrb[0].mxu0
      %v965 = vadd.f32 0.0, %v964
      %v966 = vpop.f32.mrb[0].mxu0
      %v967 = vpop.f32.mrb[0].mxu0
      %v968 = vadd.f32 0.0, %v967
      %v969 = vpop.f32.mrb[0].mxu0
      %970 = vmatprep.mubr.bf16.mxu0 0
      %971 = vmatmul.mubr.bf16.gmra.mrb[0].mxu0 %v547
      %v972 = vpop.f32.mrb[0].mxu0
      %v973 = vadd.f32 0.0, %v972
      %v974 = vpop.f32.mrb[0].mxu0
      %v975 = vpop.f32.mrb[0].mxu0
      %v976 = vadd.f32 0.0, %v975
      %v977 = vpop.f32.mrb[0].mxu0
      %978 = vmatprep.mubr.bf16.mxu0 0
      %979 = vmatmul.mubr.bf16.gmra.mrb[0].mxu0 %v550
      %v980 = vpop.f32.mrb[0].mxu0
      %v981 = vadd.f32 0.0, %v980
      %v982 = vpop.f32.mrb[0].mxu0
      %v983 = vpop.f32.mrb[0].mxu0
      %v984 = vadd.f32 0.0, %v983
      %v985 = vpop.f32.mrb[0].mxu0
      %986 = vmatprep.mubr.bf16.mxu0 0
      %987 = vmatmul.mubr.bf16.gmra.mrb[0].mxu0 %v553
      %v988 = vpop.f32.mrb[0].mxu0
      %v989 = vadd.f32 0.0, %v988
      %v990 = vpop.f32.mrb[0].mxu0
      %v991 = vpop.f32.mrb[0].mxu0
      %v992 = vadd.f32 0.0, %v991
      %v993 = vpop.f32.mrb[0].mxu0
      %994 = vmatprep.mubr.bf16.mxu0 0
      %995 = vmatmul.mubr.bf16.gmra.mrb[0].mxu0 %v556
      %v996 = vpop.f32.mrb[0].mxu0
      %v997 = vadd.f32 0.0, %v996
      %v998 = vpop.f32.mrb[0].mxu0
      %v999 = vpop.f32.mrb[0].mxu0
      %v1000 = vadd.f32 0.0, %v999
      %v1001 = vpop.f32.mrb[0].mxu0
      %1002 = vmatprep.mubr.bf16.mxu0 0
      %1003 = vmatmul.mubr.bf16.gmra.mrb[0].mxu0 %v559
      %v1004 = vpop.f32.mrb[0].mxu0
      %v1005 = vadd.f32 0.0, %v1004
      %v1006 = vpop.f32.mrb[0].mxu0
      %v1007 = vpop.f32.mrb[0].mxu0
      %v1008 = vadd.f32 0.0, %v1007
      %v1009 = vpop.f32.mrb[0].mxu0
      %1010 = vmatprep.mubr.bf16.mxu0 0
      %1011 = vmatmul.mubr.bf16.gmra.mrb[0].mxu0 %v562
      %v1012 = vpop.f32.mrb[0].mxu0
      %v1013 = vadd.f32 0.0, %v1012
      %v1014 = vpop.f32.mrb[0].mxu0
      %v1015 = vpop.f32.mrb[0].mxu0
      %v1016 = vadd.f32 0.0, %v1015
      %v1017 = vpop.f32.mrb[0].mxu0
      %1018 = vmatprep.mubr.bf16.mxu0 0
      %1019 = vmatmul.mubr.bf16.gmra.mrb[0].mxu0 %v565
      %v1020 = vpop.f32.mrb[0].mxu0
      %v1021 = vadd.f32 0.0, %v1020
      %v1022 = vpop.f32.mrb[0].mxu0
      %v1023 = vpop.f32.mrb[0].mxu0
      %v1024 = vadd.f32 0.0, %v1023
      %v1025 = vpop.f32.mrb[0].mxu0
      %1026 = vmatprep.mubr.bf16.mxu0 0
      %1027 = vmatmul.mubr.bf16.gmra.mrb[0].mxu0 %v568
      %v1028 = vpop.f32.mrb[0].mxu0
      %v1029 = vadd.f32 0.0, %v1028
      %v1030 = vpop.f32.mrb[0].mxu0
      %v1031 = vpop.f32.mrb[0].mxu0
      %v1032 = vadd.f32 0.0, %v1031
      %v1033 = vpop.f32.mrb[0].mxu0
      %1034 = vmatprep.mubr.bf16.mxu0 0
      %1035 = vmatmul.mubr.bf16.gmra.mrb[0].mxu0 %v571
      %v1036 = vpop.f32.mrb[0].mxu0
      %v1037 = vadd.f32 0.0, %v1036
      %v1038 = vpop.f32.mrb[0].mxu0
      %v1039 = vpop.f32.mrb[0].mxu0
      %v1040 = vadd.f32 0.0, %v1039
      %v1041 = vpop.f32.mrb[0].mxu0
      %1042 = vmatprep.mubr.bf16.mxu0 0
      %1043 = vmatmul.mubr.bf16.gmra.mrb[0].mxu0 %v574
      %v1044 = vpop.f32.mrb[0].mxu0
      %v1045 = vadd.f32 0.0, %v1044
      %v1046 = vpop.f32.mrb[0].mxu0
      %v1047 = vpop.f32.mrb[0].mxu0
      %v1048 = vadd.f32 0.0, %v1047
      %v1049 = vpop.f32.mrb[0].mxu0
      %1050 = vmatprep.mubr.bf16.mxu0 0
      %1051 = vmatmul.mubr.bf16.gmra.mrb[0].mxu0 %v577
      %v1052 = vpop.f32.mrb[0].mxu0
      %v1053 = vadd.f32 0.0, %v1052
      %v1054 = vpop.f32.mrb[0].mxu0
      %v1055 = vpop.f32.mrb[0].mxu0
      %v1056 = vadd.f32 0.0, %v1055
      %v1057 = vpop.f32.mrb[0].mxu0
      %1058 = vmatprep.mubr.bf16.mxu0 0
      %1059 = vmatmul.mubr.bf16.gmra.mrb[0].mxu0 %v580
      %v1060 = vpop.f32.mrb[0].mxu0
      %v1061 = vadd.f32 0.0, %v1060
      %v1062 = vpop.f32.mrb[0].mxu0
      %v1063 = vpop.f32.mrb[0].mxu0
      %v1064 = vadd.f32 0.0, %v1063
      %v1065 = vpop.f32.mrb[0].mxu0
      %1066 = vmatprep.mubr.bf16.mxu0 0
      %1067 = vmatmul.mubr.bf16.gmra.mrb[0].mxu0 %v577
      %v1068 = vpop.f32.mrb[0].mxu0
      %v1069 = vadd.f32 0.0, %v1068
      %v1070 = vpop.f32.mrb[0].mxu0
      %v1071 = vpop.f32.mrb[0].mxu0
      %v1072 = vadd.f32 0.0, %v1071
      %v1073 = vpop.f32.mrb[0].mxu0
      %1074 = vdwg.mxu0
      %v1075 = vadd.f32 %v785, %v949
      %v1076 = vadd.f32 %v788, %v952
      %v1077 = vadd.f32 %v793, %v957
      %v1078 = vadd.f32 %v796, %v960
      %v1079 = vadd.f32 %v801, %v965
      %v1080 = vadd.f32 %v804, %v968
      %v1081 = vadd.f32 %v809, %v973
      %v1082 = vadd.f32 %v812, %v976
      %v1083 = vadd.f32 %v817, %v981
      %v1084 = vadd.f32 %v820, %v984
      %v1085 = vadd.f32 %v825, %v989
      %v1086 = vadd.f32 %v828, %v992
      %v1087 = vadd.f32 %v833, %v997
      %v1088 = vadd.f32 %v836, %v1000
      %v1089 = vadd.f32 %v841, %v1005
      %v1090 = vadd.f32 %v844, %v1008
      %v1091 = vadd.f32 %v849, %v1013
      %v1092 = vadd.f32 %v852, %v1016
      %v1093 = vadd.f32 %v857, %v1021
      %v1094 = vadd.f32 %v860, %v1024
      %v1095 = vadd.f32 %v865, %v1029
      %v1096 = vadd.f32 %v868, %v1032
      %v1097 = vadd.f32 %v873, %v1037
      %v1098 = vadd.f32 %v876, %v1040
      %v1099 = vadd.f32 %v881, %v1045
      %v1100 = vadd.f32 %v884, %v1048
      %v1101 = vadd.f32 %v889, %v1053
      %v1102 = vadd.f32 %v892, %v1056
      %v1103 = vadd.f32 %v897, %v1061
      %v1104 = vadd.f32 %v900, %v1064
      %v1105 = vadd.f32 %v905, %v1069
      %v1106 = vadd.f32 %v908, %v1072
      %vm1107 = vsmask.f32 7424
      %v1108 = vshrl.u32 %v501, 16
      %v1110 = vshll.u32 %v501, 16
      %v1112 = vrot.slane %v1110, 1
      %v1113 = vor.u32 %v1108, %v1112
      %v1115 = vshll.u32 %v502, 16
      %v1117 = vrot.slane %v1115, 1
      %v1118 = vsel %vm1107, %v1113, %v1117
      %v1119 = vshrl.u32 %v503, 16
      %v1121 = vshll.u32 %v503, 16
      %v1123 = vrot.slane %v1121, 1
      %v1124 = vor.u32 %v1119, %v1123
      %v1126 = vshll.u32 %v504, 16
      %v1128 = vrot.slane %v1126, 1
      %v1129 = vsel %vm1107, %v1124, %v1128
      %v1130 = vshrl.u32 %v505, 16
      %v1132 = vshll.u32 %v505, 16
      %v1134 = vrot.slane %v1132, 1
      %v1135 = vor.u32 %v1130, %v1134
      %v1137 = vshll.u32 %v506, 16
      %v1139 = vrot.slane %v1137, 1
      %v1140 = vsel %vm1107, %v1135, %v1139
      %v1141 = vshrl.u32 %v507, 16
      %v1143 = vshll.u32 %v507, 16
      %v1145 = vrot.slane %v1143, 1
      %v1146 = vor.u32 %v1141, %v1145
      %v1148 = vshll.u32 %v508, 16
      %v1150 = vrot.slane %v1148, 1
      %v1151 = vsel %vm1107, %v1146, %v1150
      %v1152 = vshrl.u32 %v509, 16
      %v1154 = vshll.u32 %v509, 16
      %v1156 = vrot.slane %v1154, 1
      %v1157 = vor.u32 %v1152, %v1156
      %v1159 = vshll.u32 %v510, 16
      %v1161 = vrot.slane %v1159, 1
      %v1162 = vsel %vm1107, %v1157, %v1161
      %v1163 = vshrl.u32 %v511, 16
      %v1165 = vshll.u32 %v511, 16
      %v1167 = vrot.slane %v1165, 1
      %v1168 = vor.u32 %v1163, %v1167
      %v1170 = vshll.u32 %v512, 16
      %v1172 = vrot.slane %v1170, 1
      %v1173 = vsel %vm1107, %v1168, %v1172
      %v1174 = vshrl.u32 %v513, 16
      %v1176 = vshll.u32 %v513, 16
      %v1178 = vrot.slane %v1176, 1
      %v1179 = vor.u32 %v1174, %v1178
      %v1181 = vshll.u32 %v514, 16
      %v1183 = vrot.slane %v1181, 1
      %v1184 = vsel %vm1107, %v1179, %v1183
      %v1185 = vshrl.u32 %v515, 16
      %v1187 = vshll.u32 %v515, 16
      %v1189 = vrot.slane %v1187, 1
      %v1190 = vor.u32 %v1185, %v1189
      %v1192 = vshll.u32 %v516, 16
      %v1194 = vrot.slane %v1192, 1
      %v1195 = vsel %vm1107, %v1190, %v1194
      %v1196 = vshrl.u32 %v517, 16
      %v1198 = vshll.u32 %v517, 16
      %v1200 = vrot.slane %v1198, 1
      %v1201 = vor.u32 %v1196, %v1200
      %v1203 = vshll.u32 %v518, 16
      %v1205 = vrot.slane %v1203, 1
      %v1206 = vsel %vm1107, %v1201, %v1205
      %v1207 = vshrl.u32 %v519, 16
      %v1209 = vshll.u32 %v519, 16
      %v1211 = vrot.slane %v1209, 1
      %v1212 = vor.u32 %v1207, %v1211
      %v1214 = vshll.u32 %v520, 16
      %v1216 = vrot.slane %v1214, 1
      %v1217 = vsel %vm1107, %v1212, %v1216
      %v1218 = vshrl.u32 %v521, 16
      %v1220 = vshll.u32 %v521, 16
      %v1222 = vrot.slane %v1220, 1
      %v1223 = vor.u32 %v1218, %v1222
      %v1225 = vshll.u32 %v522, 16
      %v1227 = vrot.slane %v1225, 1
      %v1228 = vsel %vm1107, %v1223, %v1227
      %v1229 = vshrl.u32 %v523, 16
      %v1231 = vshll.u32 %v523, 16
      %v1233 = vrot.slane %v1231, 1
      %v1234 = vor.u32 %v1229, %v1233
      %v1236 = vshll.u32 %v524, 16
      %v1238 = vrot.slane %v1236, 1
      %v1239 = vsel %vm1107, %v1234, %v1238
      %v1240 = vshrl.u32 %v525, 16
      %v1242 = vshll.u32 %v525, 16
      %v1244 = vrot.slane %v1242, 1
      %v1245 = vor.u32 %v1240, %v1244
      %v1247 = vshll.u32 %v526, 16
      %v1249 = vrot.slane %v1247, 1
      %v1250 = vsel %vm1107, %v1245, %v1249
      %v1251 = vshrl.u32 %v527, 16
      %v1253 = vshll.u32 %v527, 16
      %v1255 = vrot.slane %v1253, 1
      %v1256 = vor.u32 %v1251, %v1255
      %v1258 = vshll.u32 %v528, 16
      %v1260 = vrot.slane %v1258, 1
      %v1261 = vsel %vm1107, %v1256, %v1260
      %v1262 = vshrl.u32 %v529, 16
      %v1264 = vshll.u32 %v529, 16
      %v1266 = vrot.slane %v1264, 1
      %v1267 = vor.u32 %v1262, %v1266
      %v1269 = vshll.u32 %v530, 16
      %v1271 = vrot.slane %v1269, 1
      %v1272 = vsel %vm1107, %v1267, %v1271
      %v1274 = vsel %vm533, %v1118, 0
      %v1277 = vsel %vm533, %v1129, 0
      %v1280 = vsel %vm533, %v1140, 0
      %v1283 = vsel %vm533, %v1151, 0
      %v1286 = vsel %vm533, %v1162, 0
      %v1289 = vsel %vm533, %v1173, 0
      %v1292 = vsel %vm533, %v1184, 0
      %v1295 = vsel %vm533, %v1195, 0
      %v1298 = vsel %vm533, %v1206, 0
      %v1301 = vsel %vm533, %v1217, 0
      %v1304 = vsel %vm533, %v1228, 0
      %v1307 = vsel %vm533, %v1239, 0
      %v1310 = vsel %vm533, %v1250, 0
      %v1313 = vsel %vm533, %v1261, 0
      %v1316 = vsel %vm533, %v1272, 0
      %v1319 = vsel %vm582, %v191, 0
      %1321 = vmatprep.subr.bf16.mxu0 0
      %1322 = vmatpush1.bf16.msra.mxu0 %v1319
      %1323 = vmatprep.subr.bf16.mxu0 0
      %1324 = vmatpush1.bf16.msra.mxu0 0
      %1325 = vmatprep.subr.bf16.mxu0 0
      %1326 = vmatpush1.bf16.msra.mxu0 0
      %1327 = vmatprep.subr.bf16.mxu0 0
      %1328 = vmatpush1.bf16.msra.mxu0 0
      %1329 = vmatprep.subr.bf16.mxu0 0
      %1330 = vmatpush1.bf16.msra.mxu0 0
      %1331 = vmatprep.subr.bf16.mxu0 0
      %1332 = vmatpush1.bf16.msra.mxu0 0
      %1333 = vmatprep.subr.bf16.mxu0 0
      %1334 = vmatpush1.bf16.msra.mxu0 0
      %1335 = vmatprep.subr.bf16.mxu0 0
      %1336 = vmatpush1.bf16.msra.mxu0 0
      %1337 = vmatprep.subr.bf16.mxu0 0
      %1338 = vmatpush1.bf16.msra.mxu0 0
      %1339 = vmatprep.subr.bf16.mxu0 0
      %1340 = vmatpush1.bf16.msra.mxu0 0
      %1341 = vmatprep.subr.bf16.mxu0 0
      %1342 = vmatpush1.bf16.msra.mxu0 0
      %1343 = vmatprep.subr.bf16.mxu0 0
      %1344 = vmatpush1.bf16.msra.mxu0 0
      %1345 = vmatprep.subr.bf16.mxu0 0
      %1346 = vmatpush1.bf16.msra.mxu0 0
      %1347 = vmatprep.subr.bf16.mxu0 0
      %1348 = vmatpush1.bf16.msra.mxu0 0
      %1349 = vmatprep.subr.bf16.mxu0 0
      %1350 = vmatpush1.bf16.msra.mxu0 0
      %1351 = vmatprep.subr.bf16.mxu0 0
      %1352 = vmatpush1.bf16.msra.mxu0 0
      %1353 = vmatprep.mubr.bf16.mxu0 0
      %1354 = vmatmul.mubr.bf16.gmra.mrb[0].mxu0 %v1274
      %v1355 = vpop.f32.mrb[0].mxu0
      %v1356 = vadd.f32 0.0, %v1355
      %v1357 = vpop.f32.mrb[0].mxu0
      %v1358 = vpop.f32.mrb[0].mxu0
      %v1359 = vadd.f32 0.0, %v1358
      %v1360 = vpop.f32.mrb[0].mxu0
      %1361 = vmatprep.mubr.bf16.mxu0 0
      %1362 = vmatmul.mubr.bf16.gmra.mrb[0].mxu0 %v1277
      %v1363 = vpop.f32.mrb[0].mxu0
      %v1364 = vadd.f32 0.0, %v1363
      %v1365 = vpop.f32.mrb[0].mxu0
      %v1366 = vpop.f32.mrb[0].mxu0
      %v1367 = vadd.f32 0.0, %v1366
      %v1368 = vpop.f32.mrb[0].mxu0
      %1369 = vmatprep.mubr.bf16.mxu0 0
      %1370 = vmatmul.mubr.bf16.gmra.mrb[0].mxu0 %v1274
      %v1371 = vpop.f32.mrb[0].mxu0
      %v1372 = vadd.f32 0.0, %v1371
      %v1373 = vpop.f32.mrb[0].mxu0
      %v1374 = vpop.f32.mrb[0].mxu0
      %v1375 = vadd.f32 0.0, %v1374
      %v1376 = vpop.f32.mrb[0].mxu0
      %1377 = vmatprep.mubr.bf16.mxu0 0
      %1378 = vmatmul.mubr.bf16.gmra.mrb[0].mxu0 %v1280
      %v1379 = vpop.f32.mrb[0].mxu0
      %v1380 = vadd.f32 0.0, %v1379
      %v1381 = vpop.f32.mrb[0].mxu0
      %v1382 = vpop.f32.mrb[0].mxu0
      %v1383 = vadd.f32 0.0, %v1382
      %v1384 = vpop.f32.mrb[0].mxu0
      %1385 = vmatprep.mubr.bf16.mxu0 0
      %1386 = vmatmul.mubr.bf16.gmra.mrb[0].mxu0 %v1283
      %v1387 = vpop.f32.mrb[0].mxu0
      %v1388 = vadd.f32 0.0, %v1387
      %v1389 = vpop.f32.mrb[0].mxu0
      %v1390 = vpop.f32.mrb[0].mxu0
      %v1391 = vadd.f32 0.0, %v1390
      %v1392 = vpop.f32.mrb[0].mxu0
      %1393 = vmatprep.mubr.bf16.mxu0 0
      %1394 = vmatmul.mubr.bf16.gmra.mrb[0].mxu0 %v1286
      %v1395 = vpop.f32.mrb[0].mxu0
      %v1396 = vadd.f32 0.0, %v1395
      %v1397 = vpop.f32.mrb[0].mxu0
      %v1398 = vpop.f32.mrb[0].mxu0
      %v1399 = vadd.f32 0.0, %v1398
      %v1400 = vpop.f32.mrb[0].mxu0
      %1401 = vmatprep.mubr.bf16.mxu0 0
      %1402 = vmatmul.mubr.bf16.gmra.mrb[0].mxu0 %v1289
      %v1403 = vpop.f32.mrb[0].mxu0
      %v1404 = vadd.f32 0.0, %v1403
      %v1405 = vpop.f32.mrb[0].mxu0
      %v1406 = vpop.f32.mrb[0].mxu0
      %v1407 = vadd.f32 0.0, %v1406
      %v1408 = vpop.f32.mrb[0].mxu0
      %1409 = vmatprep.mubr.bf16.mxu0 0
      %1410 = vmatmul.mubr.bf16.gmra.mrb[0].mxu0 %v1292
      %v1411 = vpop.f32.mrb[0].mxu0
      %v1412 = vadd.f32 0.0, %v1411
      %v1413 = vpop.f32.mrb[0].mxu0
      %v1414 = vpop.f32.mrb[0].mxu0
      %v1415 = vadd.f32 0.0, %v1414
      %v1416 = vpop.f32.mrb[0].mxu0
      %1417 = vmatprep.mubr.bf16.mxu0 0
      %1418 = vmatmul.mubr.bf16.gmra.mrb[0].mxu0 %v1295
      %v1419 = vpop.f32.mrb[0].mxu0
      %v1420 = vadd.f32 0.0, %v1419
      %v1421 = vpop.f32.mrb[0].mxu0
      %v1422 = vpop.f32.mrb[0].mxu0
      %v1423 = vadd.f32 0.0, %v1422
      %v1424 = vpop.f32.mrb[0].mxu0
      %1425 = vmatprep.mubr.bf16.mxu0 0
      %1426 = vmatmul.mubr.bf16.gmra.mrb[0].mxu0 %v1298
      %v1427 = vpop.f32.mrb[0].mxu0
      %v1428 = vadd.f32 0.0, %v1427
      %v1429 = vpop.f32.mrb[0].mxu0
      %v1430 = vpop.f32.mrb[0].mxu0
      %v1431 = vadd.f32 0.0, %v1430
      %v1432 = vpop.f32.mrb[0].mxu0
      %1433 = vmatprep.mubr.bf16.mxu0 0
      %1434 = vmatmul.mubr.bf16.gmra.mrb[0].mxu0 %v1301
      %v1435 = vpop.f32.mrb[0].mxu0
      %v1436 = vadd.f32 0.0, %v1435
      %v1437 = vpop.f32.mrb[0].mxu0
      %v1438 = vpop.f32.mrb[0].mxu0
      %v1439 = vadd.f32 0.0, %v1438
      %v1440 = vpop.f32.mrb[0].mxu0
      %1441 = vmatprep.mubr.bf16.mxu0 0
      %1442 = vmatmul.mubr.bf16.gmra.mrb[0].mxu0 %v1304
      %v1443 = vpop.f32.mrb[0].mxu0
      %v1444 = vadd.f32 0.0, %v1443
      %v1445 = vpop.f32.mrb[0].mxu0
      %v1446 = vpop.f32.mrb[0].mxu0
      %v1447 = vadd.f32 0.0, %v1446
      %v1448 = vpop.f32.mrb[0].mxu0
      %1449 = vmatprep.mubr.bf16.mxu0 0
      %1450 = vmatmul.mubr.bf16.gmra.mrb[0].mxu0 %v1307
      %v1451 = vpop.f32.mrb[0].mxu0
      %v1452 = vadd.f32 0.0, %v1451
      %v1453 = vpop.f32.mrb[0].mxu0
      %v1454 = vpop.f32.mrb[0].mxu0
      %v1455 = vadd.f32 0.0, %v1454
      %v1456 = vpop.f32.mrb[0].mxu0
      %1457 = vmatprep.mubr.bf16.mxu0 0
      %1458 = vmatmul.mubr.bf16.gmra.mrb[0].mxu0 %v1310
      %v1459 = vpop.f32.mrb[0].mxu0
      %v1460 = vadd.f32 0.0, %v1459
      %v1461 = vpop.f32.mrb[0].mxu0
      %v1462 = vpop.f32.mrb[0].mxu0
      %v1463 = vadd.f32 0.0, %v1462
      %v1464 = vpop.f32.mrb[0].mxu0
      %1465 = vmatprep.mubr.bf16.mxu0 0
      %1466 = vmatmul.mubr.bf16.gmra.mrb[0].mxu0 %v1313
      %v1467 = vpop.f32.mrb[0].mxu0
      %v1468 = vadd.f32 0.0, %v1467
      %v1469 = vpop.f32.mrb[0].mxu0
      %v1470 = vpop.f32.mrb[0].mxu0
      %v1471 = vadd.f32 0.0, %v1470
      %v1472 = vpop.f32.mrb[0].mxu0
      %1473 = vmatprep.mubr.bf16.mxu0 0
      %1474 = vmatmul.mubr.bf16.gmra.mrb[0].mxu0 %v1316
      %v1475 = vpop.f32.mrb[0].mxu0
      %v1476 = vadd.f32 0.0, %v1475
      %v1477 = vpop.f32.mrb[0].mxu0
      %v1478 = vpop.f32.mrb[0].mxu0
      %v1479 = vadd.f32 0.0, %v1478
      %v1480 = vpop.f32.mrb[0].mxu0
      %1481 = vdwg.mxu0
      %v1482 = vadd.f32 %v1075, %v1356
      %v1483 = vadd.f32 %v1076, %v1359
      %v1484 = vadd.f32 %v1077, %v1364
      %v1485 = vadd.f32 %v1078, %v1367
      %v1486 = vadd.f32 %v1079, %v1372
      %v1487 = vadd.f32 %v1080, %v1375
      %v1488 = vadd.f32 %v1081, %v1380
      %v1489 = vadd.f32 %v1082, %v1383
      %v1490 = vadd.f32 %v1083, %v1388
      %v1491 = vadd.f32 %v1084, %v1391
      %v1492 = vadd.f32 %v1085, %v1396
      %v1493 = vadd.f32 %v1086, %v1399
      %v1494 = vadd.f32 %v1087, %v1404
      %v1495 = vadd.f32 %v1088, %v1407
      %v1496 = vadd.f32 %v1089, %v1412
      %v1497 = vadd.f32 %v1090, %v1415
      %v1498 = vadd.f32 %v1091, %v1420
      %v1499 = vadd.f32 %v1092, %v1423
      %v1500 = vadd.f32 %v1093, %v1428
      %v1501 = vadd.f32 %v1094, %v1431
      %v1502 = vadd.f32 %v1095, %v1436
      %v1503 = vadd.f32 %v1096, %v1439
      %v1504 = vadd.f32 %v1097, %v1444
      %v1505 = vadd.f32 %v1098, %v1447
      %v1506 = vadd.f32 %v1099, %v1452
      %v1507 = vadd.f32 %v1100, %v1455
      %v1508 = vadd.f32 %v1101, %v1460
      %v1509 = vadd.f32 %v1102, %v1463
      %v1510 = vadd.f32 %v1103, %v1468
      %v1511 = vadd.f32 %v1104, %v1471
      %v1512 = vadd.f32 %v1105, %v1476
      %v1513 = vadd.f32 %v1106, %v1479
      %v1514 = vshrl.u32 %v531, 16
      %v1516 = vshll.u32 %v531, 16
      %v1518 = vrot.slane %v1516, 1
      %v1519 = vor.u32 %v1514, %v1518
      %v1521 = vshll.u32 %v532, 16
      %v1523 = vrot.slane %v1521, 1
      %v1524 = vsel %vm1107, %v1519, %v1523
      %v1526 = vsel %vm533, %v1524, 0
      %v1529 = vsel %vm582, %v194, 0
      %1531 = vmatprep.subr.bf16.mxu0 0
      %1532 = vmatpush1.bf16.msra.mxu0 %v1529
      %1533 = vmatprep.subr.bf16.mxu0 0
      %1534 = vmatpush1.bf16.msra.mxu0 0
      %1535 = vmatprep.subr.bf16.mxu0 0
      %1536 = vmatpush1.bf16.msra.mxu0 0
      %1537 = vmatprep.subr.bf16.mxu0 0
      %1538 = vmatpush1.bf16.msra.mxu0 0
      %1539 = vmatprep.subr.bf16.mxu0 0
      %1540 = vmatpush1.bf16.msra.mxu0 0
      %1541 = vmatprep.subr.bf16.mxu0 0
      %1542 = vmatpush1.bf16.msra.mxu0 0
      %1543 = vmatprep.subr.bf16.mxu0 0
      %1544 = vmatpush1.bf16.msra.mxu0 0
      %1545 = vmatprep.subr.bf16.mxu0 0
      %1546 = vmatpush1.bf16.msra.mxu0 0
      %1547 = vmatprep.subr.bf16.mxu0 0
      %1548 = vmatpush1.bf16.msra.mxu0 0
      %1549 = vmatprep.subr.bf16.mxu0 0
      %1550 = vmatpush1.bf16.msra.mxu0 0
      %1551 = vmatprep.subr.bf16.mxu0 0
      %1552 = vmatpush1.bf16.msra.mxu0 0
      %1553 = vmatprep.subr.bf16.mxu0 0
      %1554 = vmatpush1.bf16.msra.mxu0 0
      %1555 = vmatprep.subr.bf16.mxu0 0
      %1556 = vmatpush1.bf16.msra.mxu0 0
      %1557 = vmatprep.subr.bf16.mxu0 0
      %1558 = vmatpush1.bf16.msra.mxu0 0
      %1559 = vmatprep.subr.bf16.mxu0 0
      %1560 = vmatpush1.bf16.msra.mxu0 0
      %1561 = vmatprep.subr.bf16.mxu0 0
      %1562 = vmatpush1.bf16.msra.mxu0 0
      %1563 = vmatprep.mubr.bf16.mxu0 0
      %1564 = vmatmul.mubr.bf16.gmra.mrb[0].mxu0 %v1277
      %v1565 = vpop.f32.mrb[0].mxu0
      %v1566 = vadd.f32 0.0, %v1565
      %v1567 = vpop.f32.mrb[0].mxu0
      %v1568 = vpop.f32.mrb[0].mxu0
      %v1569 = vadd.f32 0.0, %v1568
      %v1570 = vpop.f32.mrb[0].mxu0
      %1571 = vmatprep.mubr.bf16.mxu0 0
      %1572 = vmatmul.mubr.bf16.gmra.mrb[0].mxu0 %v1274
      %v1573 = vpop.f32.mrb[0].mxu0
      %v1574 = vadd.f32 0.0, %v1573
      %v1575 = vpop.f32.mrb[0].mxu0
      %v1576 = vpop.f32.mrb[0].mxu0
      %v1577 = vadd.f32 0.0, %v1576
      %v1578 = vpop.f32.mrb[0].mxu0
      %1579 = vmatprep.mubr.bf16.mxu0 0
      %1580 = vmatmul.mubr.bf16.gmra.mrb[0].mxu0 %v1280
      %v1581 = vpop.f32.mrb[0].mxu0
      %v1582 = vadd.f32 0.0, %v1581
      %v1583 = vpop.f32.mrb[0].mxu0
      %v1584 = vpop.f32.mrb[0].mxu0
      %v1585 = vadd.f32 0.0, %v1584
      %v1586 = vpop.f32.mrb[0].mxu0
      %1587 = vmatprep.mubr.bf16.mxu0 0
      %1588 = vmatmul.mubr.bf16.gmra.mrb[0].mxu0 %v1283
      %v1589 = vpop.f32.mrb[0].mxu0
      %v1590 = vadd.f32 0.0, %v1589
      %v1591 = vpop.f32.mrb[0].mxu0
      %v1592 = vpop.f32.mrb[0].mxu0
      %v1593 = vadd.f32 0.0, %v1592
      %v1594 = vpop.f32.mrb[0].mxu0
      %1595 = vmatprep.mubr.bf16.mxu0 0
      %1596 = vmatmul.mubr.bf16.gmra.mrb[0].mxu0 %v1286
      %v1597 = vpop.f32.mrb[0].mxu0
      %v1598 = vadd.f32 0.0, %v1597
      %v1599 = vpop.f32.mrb[0].mxu0
      %v1600 = vpop.f32.mrb[0].mxu0
      %v1601 = vadd.f32 0.0, %v1600
      %v1602 = vpop.f32.mrb[0].mxu0
      %1603 = vmatprep.mubr.bf16.mxu0 0
      %1604 = vmatmul.mubr.bf16.gmra.mrb[0].mxu0 %v1289
      %v1605 = vpop.f32.mrb[0].mxu0
      %v1606 = vadd.f32 0.0, %v1605
      %v1607 = vpop.f32.mrb[0].mxu0
      %v1608 = vpop.f32.mrb[0].mxu0
      %v1609 = vadd.f32 0.0, %v1608
      %v1610 = vpop.f32.mrb[0].mxu0
      %1611 = vmatprep.mubr.bf16.mxu0 0
      %1612 = vmatmul.mubr.bf16.gmra.mrb[0].mxu0 %v1292
      %v1613 = vpop.f32.mrb[0].mxu0
      %v1614 = vadd.f32 0.0, %v1613
      %v1615 = vpop.f32.mrb[0].mxu0
      %v1616 = vpop.f32.mrb[0].mxu0
      %v1617 = vadd.f32 0.0, %v1616
      %v1618 = vpop.f32.mrb[0].mxu0
      %1619 = vmatprep.mubr.bf16.mxu0 0
      %1620 = vmatmul.mubr.bf16.gmra.mrb[0].mxu0 %v1295
      %v1621 = vpop.f32.mrb[0].mxu0
      %v1622 = vadd.f32 0.0, %v1621
      %v1623 = vpop.f32.mrb[0].mxu0
      %v1624 = vpop.f32.mrb[0].mxu0
      %v1625 = vadd.f32 0.0, %v1624
      %v1626 = vpop.f32.mrb[0].mxu0
      %1627 = vmatprep.mubr.bf16.mxu0 0
      %1628 = vmatmul.mubr.bf16.gmra.mrb[0].mxu0 %v1298
      %v1629 = vpop.f32.mrb[0].mxu0
      %v1630 = vadd.f32 0.0, %v1629
      %v1631 = vpop.f32.mrb[0].mxu0
      %v1632 = vpop.f32.mrb[0].mxu0
      %v1633 = vadd.f32 0.0, %v1632
      %v1634 = vpop.f32.mrb[0].mxu0
      %1635 = vmatprep.mubr.bf16.mxu0 0
      %1636 = vmatmul.mubr.bf16.gmra.mrb[0].mxu0 %v1301
      %v1637 = vpop.f32.mrb[0].mxu0
      %v1638 = vadd.f32 0.0, %v1637
      %v1639 = vpop.f32.mrb[0].mxu0
      %v1640 = vpop.f32.mrb[0].mxu0
      %v1641 = vadd.f32 0.0, %v1640
      %v1642 = vpop.f32.mrb[0].mxu0
      %1643 = vmatprep.mubr.bf16.mxu0 0
      %1644 = vmatmul.mubr.bf16.gmra.mrb[0].mxu0 %v1304
      %v1645 = vpop.f32.mrb[0].mxu0
      %v1646 = vadd.f32 0.0, %v1645
      %v1647 = vpop.f32.mrb[0].mxu0
      %v1648 = vpop.f32.mrb[0].mxu0
      %v1649 = vadd.f32 0.0, %v1648
      %v1650 = vpop.f32.mrb[0].mxu0
      %1651 = vmatprep.mubr.bf16.mxu0 0
      %1652 = vmatmul.mubr.bf16.gmra.mrb[0].mxu0 %v1307
      %v1653 = vpop.f32.mrb[0].mxu0
      %v1654 = vadd.f32 0.0, %v1653
      %v1655 = vpop.f32.mrb[0].mxu0
      %v1656 = vpop.f32.mrb[0].mxu0
      %v1657 = vadd.f32 0.0, %v1656
      %v1658 = vpop.f32.mrb[0].mxu0
      %1659 = vmatprep.mubr.bf16.mxu0 0
      %1660 = vmatmul.mubr.bf16.gmra.mrb[0].mxu0 %v1310
      %v1661 = vpop.f32.mrb[0].mxu0
      %v1662 = vadd.f32 0.0, %v1661
      %v1663 = vpop.f32.mrb[0].mxu0
      %v1664 = vpop.f32.mrb[0].mxu0
      %v1665 = vadd.f32 0.0, %v1664
      %v1666 = vpop.f32.mrb[0].mxu0
      %1667 = vmatprep.mubr.bf16.mxu0 0
      %1668 = vmatmul.mubr.bf16.gmra.mrb[0].mxu0 %v1313
      %v1669 = vpop.f32.mrb[0].mxu0
      %v1670 = vadd.f32 0.0, %v1669
      %v1671 = vpop.f32.mrb[0].mxu0
      %v1672 = vpop.f32.mrb[0].mxu0
      %v1673 = vadd.f32 0.0, %v1672
      %v1674 = vpop.f32.mrb[0].mxu0
      %1675 = vmatprep.mubr.bf16.mxu0 0
      %1676 = vmatmul.mubr.bf16.gmra.mrb[0].mxu0 %v1316
      %v1677 = vpop.f32.mrb[0].mxu0
      %v1678 = vadd.f32 0.0, %v1677
      %v1679 = vpop.f32.mrb[0].mxu0
      %v1680 = vpop.f32.mrb[0].mxu0
      %v1681 = vadd.f32 0.0, %v1680
      %v1682 = vpop.f32.mrb[0].mxu0
      %1683 = vmatprep.mubr.bf16.mxu0 0
      %1684 = vmatmul.mubr.bf16.gmra.mrb[0].mxu0 %v1526
      %v1685 = vpop.f32.mrb[0].mxu0
      %v1686 = vadd.f32 0.0, %v1685
      %v1687 = vpop.f32.mrb[0].mxu0
      %v1688 = vpop.f32.mrb[0].mxu0
      %v1689 = vadd.f32 0.0, %v1688
      %v1690 = vpop.f32.mrb[0].mxu0
      %1691 = vdwg.mxu0
      %v1692 = vadd.f32 %v1482, %v1566
      %v1693 = vadd.f32 %v1483, %v1569
      %v1694 = vadd.f32 %v1484, %v1574
      %v1695 = vadd.f32 %v1485, %v1577
      %v1696 = vadd.f32 %v1486, %v1582
      %v1697 = vadd.f32 %v1487, %v1585
      %v1698 = vadd.f32 %v1488, %v1590
      %v1699 = vadd.f32 %v1489, %v1593
      %v1700 = vadd.f32 %v1490, %v1598
      %v1701 = vadd.f32 %v1491, %v1601
      %v1702 = vadd.f32 %v1492, %v1606
      %v1703 = vadd.f32 %v1493, %v1609
      %v1704 = vadd.f32 %v1494, %v1614
      %v1705 = vadd.f32 %v1495, %v1617
      %v1706 = vadd.f32 %v1496, %v1622
      %v1707 = vadd.f32 %v1497, %v1625
      %v1708 = vadd.f32 %v1498, %v1630
      %v1709 = vadd.f32 %v1499, %v1633
      %v1710 = vadd.f32 %v1500, %v1638
      %v1711 = vadd.f32 %v1501, %v1641
      %v1712 = vadd.f32 %v1502, %v1646
      %v1713 = vadd.f32 %v1503, %v1649
      %v1714 = vadd.f32 %v1504, %v1654
      %v1715 = vadd.f32 %v1505, %v1657
      %v1716 = vadd.f32 %v1506, %v1662
      %v1717 = vadd.f32 %v1507, %v1665
      %v1718 = vadd.f32 %v1508, %v1670
      %v1719 = vadd.f32 %v1509, %v1673
      %v1720 = vadd.f32 %v1510, %v1678
      %v1721 = vadd.f32 %v1511, %v1681
      %v1722 = vadd.f32 %v1512, %v1686
      %v1723 = vadd.f32 %v1513, %v1689
      %v1725 = vsel %vm582, %v197, 0
      %1727 = vmatprep.subr.bf16.mxu0 0
      %1728 = vmatpush1.bf16.msra.mxu0 %v1725
      %1729 = vmatprep.subr.bf16.mxu0 0
      %1730 = vmatpush1.bf16.msra.mxu0 0
      %1731 = vmatprep.subr.bf16.mxu0 0
      %1732 = vmatpush1.bf16.msra.mxu0 0
      %1733 = vmatprep.subr.bf16.mxu0 0
      %1734 = vmatpush1.bf16.msra.mxu0 0
      %1735 = vmatprep.subr.bf16.mxu0 0
      %1736 = vmatpush1.bf16.msra.mxu0 0
      %1737 = vmatprep.subr.bf16.mxu0 0
      %1738 = vmatpush1.bf16.msra.mxu0 0
      %1739 = vmatprep.subr.bf16.mxu0 0
      %1740 = vmatpush1.bf16.msra.mxu0 0
      %1741 = vmatprep.subr.bf16.mxu0 0
      %1742 = vmatpush1.bf16.msra.mxu0 0
      %1743 = vmatprep.subr.bf16.mxu0 0
      %1744 = vmatpush1.bf16.msra.mxu0 0
      %1745 = vmatprep.subr.bf16.mxu0 0
      %1746 = vmatpush1.bf16.msra.mxu0 0
      %1747 = vmatprep.subr.bf16.mxu0 0
      %1748 = vmatpush1.bf16.msra.mxu0 0
      %1749 = vmatprep.subr.bf16.mxu0 0
      %1750 = vmatpush1.bf16.msra.mxu0 0
      %1751 = vmatprep.subr.bf16.mxu0 0
      %1752 = vmatpush1.bf16.msra.mxu0 0
      %1753 = vmatprep.subr.bf16.mxu0 0
      %1754 = vmatpush1.bf16.msra.mxu0 0
      %1755 = vmatprep.subr.bf16.mxu0 0
      %1756 = vmatpush1.bf16.msra.mxu0 0
      %1757 = vmatprep.subr.bf16.mxu0 0
      %1758 = vmatpush1.bf16.msra.mxu0 0
      %1759 = vmatprep.mubr.bf16.mxu0 0
      %1760 = vmatmul.mubr.bf16.gmra.mrb[0].mxu0 %v1274
      %v1761 = vpop.f32.mrb[0].mxu0
      %v1762 = vadd.f32 0.0, %v1761
      %v1763 = vpop.f32.mrb[0].mxu0
      %v1764 = vpop.f32.mrb[0].mxu0
      %v1765 = vadd.f32 0.0, %v1764
      %v1766 = vpop.f32.mrb[0].mxu0
      %1767 = vmatprep.mubr.bf16.mxu0 0
      %1768 = vmatmul.mubr.bf16.gmra.mrb[0].mxu0 %v1280
      %v1769 = vpop.f32.mrb[0].mxu0
      %v1770 = vadd.f32 0.0, %v1769
      %v1771 = vpop.f32.mrb[0].mxu0
      %v1772 = vpop.f32.mrb[0].mxu0
      %v1773 = vadd.f32 0.0, %v1772
      %v1774 = vpop.f32.mrb[0].mxu0
      %1775 = vmatprep.mubr.bf16.mxu0 0
      %1776 = vmatmul.mubr.bf16.gmra.mrb[0].mxu0 %v1283
      %v1777 = vpop.f32.mrb[0].mxu0
      %v1778 = vadd.f32 0.0, %v1777
      %v1779 = vpop.f32.mrb[0].mxu0
      %v1780 = vpop.f32.mrb[0].mxu0
      %v1781 = vadd.f32 0.0, %v1780
      %v1782 = vpop.f32.mrb[0].mxu0
      %1783 = vmatprep.mubr.bf16.mxu0 0
      %1784 = vmatmul.mubr.bf16.gmra.mrb[0].mxu0 %v1286
      %v1785 = vpop.f32.mrb[0].mxu0
      %v1786 = vadd.f32 0.0, %v1785
      %v1787 = vpop.f32.mrb[0].mxu0
      %v1788 = vpop.f32.mrb[0].mxu0
      %v1789 = vadd.f32 0.0, %v1788
      %v1790 = vpop.f32.mrb[0].mxu0
      %1791 = vmatprep.mubr.bf16.mxu0 0
      %1792 = vmatmul.mubr.bf16.gmra.mrb[0].mxu0 %v1289
      %v1793 = vpop.f32.mrb[0].mxu0
      %v1794 = vadd.f32 0.0, %v1793
      %v1795 = vpop.f32.mrb[0].mxu0
      %v1796 = vpop.f32.mrb[0].mxu0
      %v1797 = vadd.f32 0.0, %v1796
      %v1798 = vpop.f32.mrb[0].mxu0
      %1799 = vmatprep.mubr.bf16.mxu0 0
      %1800 = vmatmul.mubr.bf16.gmra.mrb[0].mxu0 %v1292
      %v1801 = vpop.f32.mrb[0].mxu0
      %v1802 = vadd.f32 0.0, %v1801
      %v1803 = vpop.f32.mrb[0].mxu0
      %v1804 = vpop.f32.mrb[0].mxu0
      %v1805 = vadd.f32 0.0, %v1804
      %v1806 = vpop.f32.mrb[0].mxu0
      %1807 = vmatprep.mubr.bf16.mxu0 0
      %1808 = vmatmul.mubr.bf16.gmra.mrb[0].mxu0 %v1295
      %v1809 = vpop.f32.mrb[0].mxu0
      %v1810 = vadd.f32 0.0, %v1809
      %v1811 = vpop.f32.mrb[0].mxu0
      %v1812 = vpop.f32.mrb[0].mxu0
      %v1813 = vadd.f32 0.0, %v1812
      %v1814 = vpop.f32.mrb[0].mxu0
      %1815 = vmatprep.mubr.bf16.mxu0 0
      %1816 = vmatmul.mubr.bf16.gmra.mrb[0].mxu0 %v1298
      %v1817 = vpop.f32.mrb[0].mxu0
      %v1818 = vadd.f32 0.0, %v1817
      %v1819 = vpop.f32.mrb[0].mxu0
      %v1820 = vpop.f32.mrb[0].mxu0
      %v1821 = vadd.f32 0.0, %v1820
      %v1822 = vpop.f32.mrb[0].mxu0
      %1823 = vmatprep.mubr.bf16.mxu0 0
      %1824 = vmatmul.mubr.bf16.gmra.mrb[0].mxu0 %v1301
      %v1825 = vpop.f32.mrb[0].mxu0
      %v1826 = vadd.f32 0.0, %v1825
      %v1827 = vpop.f32.mrb[0].mxu0
      %v1828 = vpop.f32.mrb[0].mxu0
      %v1829 = vadd.f32 0.0, %v1828
      %v1830 = vpop.f32.mrb[0].mxu0
      %1831 = vmatprep.mubr.bf16.mxu0 0
      %1832 = vmatmul.mubr.bf16.gmra.mrb[0].mxu0 %v1304
      %v1833 = vpop.f32.mrb[0].mxu0
      %v1834 = vadd.f32 0.0, %v1833
      %v1835 = vpop.f32.mrb[0].mxu0
      %v1836 = vpop.f32.mrb[0].mxu0
      %v1837 = vadd.f32 0.0, %v1836
      %v1838 = vpop.f32.mrb[0].mxu0
      %1839 = vmatprep.mubr.bf16.mxu0 0
      %1840 = vmatmul.mubr.bf16.gmra.mrb[0].mxu0 %v1307
      %v1841 = vpop.f32.mrb[0].mxu0
      %v1842 = vadd.f32 0.0, %v1841
      %v1843 = vpop.f32.mrb[0].mxu0
      %v1844 = vpop.f32.mrb[0].mxu0
      %v1845 = vadd.f32 0.0, %v1844
      %v1846 = vpop.f32.mrb[0].mxu0
      %1847 = vmatprep.mubr.bf16.mxu0 0
      %1848 = vmatmul.mubr.bf16.gmra.mrb[0].mxu0 %v1310
      %v1849 = vpop.f32.mrb[0].mxu0
      %v1850 = vadd.f32 0.0, %v1849
      %v1851 = vpop.f32.mrb[0].mxu0
      %v1852 = vpop.f32.mrb[0].mxu0
      %v1853 = vadd.f32 0.0, %v1852
      %v1854 = vpop.f32.mrb[0].mxu0
      %1855 = vmatprep.mubr.bf16.mxu0 0
      %1856 = vmatmul.mubr.bf16.gmra.mrb[0].mxu0 %v1313
      %v1857 = vpop.f32.mrb[0].mxu0
      %v1858 = vadd.f32 0.0, %v1857
      %v1859 = vpop.f32.mrb[0].mxu0
      %v1860 = vpop.f32.mrb[0].mxu0
      %v1861 = vadd.f32 0.0, %v1860
      %v1862 = vpop.f32.mrb[0].mxu0
      %1863 = vmatprep.mubr.bf16.mxu0 0
      %1864 = vmatmul.mubr.bf16.gmra.mrb[0].mxu0 %v1316
      %v1865 = vpop.f32.mrb[0].mxu0
      %v1866 = vadd.f32 0.0, %v1865
      %v1867 = vpop.f32.mrb[0].mxu0
      %v1868 = vpop.f32.mrb[0].mxu0
      %v1869 = vadd.f32 0.0, %v1868
      %v1870 = vpop.f32.mrb[0].mxu0
      %1871 = vmatprep.mubr.bf16.mxu0 0
      %1872 = vmatmul.mubr.bf16.gmra.mrb[0].mxu0 %v1526
      %v1873 = vpop.f32.mrb[0].mxu0
      %v1874 = vadd.f32 0.0, %v1873
      %v1875 = vpop.f32.mrb[0].mxu0
      %v1876 = vpop.f32.mrb[0].mxu0
      %v1877 = vadd.f32 0.0, %v1876
      %v1878 = vpop.f32.mrb[0].mxu0
      %1879 = vmatprep.mubr.bf16.mxu0 0
      %1880 = vmatmul.mubr.bf16.gmra.mrb[0].mxu0 %v1316
      %v1881 = vpop.f32.mrb[0].mxu0
      %v1882 = vadd.f32 0.0, %v1881
      %v1883 = vpop.f32.mrb[0].mxu0
      %v1884 = vpop.f32.mrb[0].mxu0
      %v1885 = vadd.f32 0.0, %v1884
      %v1886 = vpop.f32.mrb[0].mxu0
      %1887 = vdwg.mxu0
      %v1888 = vadd.f32 %v1692, %v1762
      %v1889 = vadd.f32 %v1693, %v1765
      %v1890 = vadd.f32 %v1694, %v1770
      %v1891 = vadd.f32 %v1695, %v1773
      %v1892 = vadd.f32 %v1696, %v1778
      %v1893 = vadd.f32 %v1697, %v1781
      %v1894 = vadd.f32 %v1698, %v1786
      %v1895 = vadd.f32 %v1699, %v1789
      %v1896 = vadd.f32 %v1700, %v1794
      %v1897 = vadd.f32 %v1701, %v1797
      %v1898 = vadd.f32 %v1702, %v1802
      %v1899 = vadd.f32 %v1703, %v1805
      %v1900 = vadd.f32 %v1704, %v1810
      %v1901 = vadd.f32 %v1705, %v1813
      %v1902 = vadd.f32 %v1706, %v1818
      %v1903 = vadd.f32 %v1707, %v1821
      %v1904 = vadd.f32 %v1708, %v1826
      %v1905 = vadd.f32 %v1709, %v1829
      %v1906 = vadd.f32 %v1710, %v1834
      %v1907 = vadd.f32 %v1711, %v1837
      %v1908 = vadd.f32 %v1712, %v1842
      %v1909 = vadd.f32 %v1713, %v1845
      %v1910 = vadd.f32 %v1714, %v1850
      %v1911 = vadd.f32 %v1715, %v1853
      %v1912 = vadd.f32 %v1716, %v1858
      %v1913 = vadd.f32 %v1717, %v1861
      %v1914 = vadd.f32 %v1718, %v1866
      %v1915 = vadd.f32 %v1719, %v1869
      %v1916 = vadd.f32 %v1720, %v1874
      %v1917 = vadd.f32 %v1721, %v1877
      %v1918 = vadd.f32 %v1722, %v1882
      %v1919 = vadd.f32 %v1723, %v1885
      %vm1950 = vcmask 1046528
      %v1951 = vrot.slane %v501, 1
      %v1952 = vrot.slane %v502, 1
      %v1953 = vsel %vm1950, %v1951, %v1952
      %v1954 = vrot.slane %v503, 1
      %v1955 = vrot.slane %v504, 1
      %v1956 = vsel %vm1950, %v1954, %v1955
      %v1957 = vrot.slane %v505, 1
      %v1958 = vrot.slane %v506, 1
      %v1959 = vsel %vm1950, %v1957, %v1958
      %v1960 = vrot.slane %v507, 1
      %v1961 = vrot.slane %v508, 1
      %v1962 = vsel %vm1950, %v1960, %v1961
      %v1963 = vrot.slane %v509, 1
      %v1964 = vrot.slane %v510, 1
      %v1965 = vsel %vm1950, %v1963, %v1964
      %v1966 = vrot.slane %v511, 1
      %v1967 = vrot.slane %v512, 1
      %v1968 = vsel %vm1950, %v1966, %v1967
      %v1969 = vrot.slane %v513, 1
      %v1970 = vrot.slane %v514, 1
      %v1971 = vsel %vm1950, %v1969, %v1970
      %v1972 = vrot.slane %v515, 1
      %v1973 = vrot.slane %v516, 1
      %v1974 = vsel %vm1950, %v1972, %v1973
      %v1975 = vrot.slane %v517, 1
      %v1976 = vrot.slane %v518, 1
      %v1977 = vsel %vm1950, %v1975, %v1976
      %v1978 = vrot.slane %v519, 1
      %v1979 = vrot.slane %v520, 1
      %v1980 = vsel %vm1950, %v1978, %v1979
      %v1981 = vrot.slane %v521, 1
      %v1982 = vrot.slane %v522, 1
      %v1983 = vsel %vm1950, %v1981, %v1982
      %v1984 = vrot.slane %v523, 1
      %v1985 = vrot.slane %v524, 1
      %v1986 = vsel %vm1950, %v1984, %v1985
      %v1987 = vrot.slane %v525, 1
      %v1988 = vrot.slane %v526, 1
      %v1989 = vsel %vm1950, %v1987, %v1988
      %v1990 = vrot.slane %v527, 1
      %v1991 = vrot.slane %v528, 1
      %v1992 = vsel %vm1950, %v1990, %v1991
      %v1993 = vrot.slane %v529, 1
      %v1994 = vrot.slane %v530, 1
      %v1995 = vsel %vm1950, %v1993, %v1994
      %v1997 = vsel %vm533, %v1953, 0
      %v2000 = vsel %vm533, %v1956, 0
      %v2003 = vsel %vm533, %v1959, 0
      %v2006 = vsel %vm533, %v1962, 0
      %v2009 = vsel %vm533, %v1965, 0
      %v2012 = vsel %vm533, %v1968, 0
      %v2015 = vsel %vm533, %v1971, 0
      %v2018 = vsel %vm533, %v1974, 0
      %v2021 = vsel %vm533, %v1977, 0
      %v2024 = vsel %vm533, %v1980, 0
      %v2027 = vsel %vm533, %v1983, 0
      %v2030 = vsel %vm533, %v1986, 0
      %v2033 = vsel %vm533, %v1989, 0
      %v2036 = vsel %vm533, %v1992, 0
      %v2039 = vsel %vm533, %v1995, 0
      %v2042 = vsel %vm582, %v192, 0
      %2044 = vmatprep.subr.bf16.mxu0 0
      %2045 = vmatpush1.bf16.msra.mxu0 %v2042
      %2046 = vmatprep.subr.bf16.mxu0 0
      %2047 = vmatpush1.bf16.msra.mxu0 0
      %2048 = vmatprep.subr.bf16.mxu0 0
      %2049 = vmatpush1.bf16.msra.mxu0 0
      %2050 = vmatprep.subr.bf16.mxu0 0
      %2051 = vmatpush1.bf16.msra.mxu0 0
      %2052 = vmatprep.subr.bf16.mxu0 0
      %2053 = vmatpush1.bf16.msra.mxu0 0
      %2054 = vmatprep.subr.bf16.mxu0 0
      %2055 = vmatpush1.bf16.msra.mxu0 0
      %2056 = vmatprep.subr.bf16.mxu0 0
      %2057 = vmatpush1.bf16.msra.mxu0 0
      %2058 = vmatprep.subr.bf16.mxu0 0
      %2059 = vmatpush1.bf16.msra.mxu0 0
      %2060 = vmatprep.subr.bf16.mxu0 0
      %2061 = vmatpush1.bf16.msra.mxu0 0
      %2062 = vmatprep.subr.bf16.mxu0 0
      %2063 = vmatpush1.bf16.msra.mxu0 0
      %2064 = vmatprep.subr.bf16.mxu0 0
      %2065 = vmatpush1.bf16.msra.mxu0 0
      %2066 = vmatprep.subr.bf16.mxu0 0
      %2067 = vmatpush1.bf16.msra.mxu0 0
      %2068 = vmatprep.subr.bf16.mxu0 0
      %2069 = vmatpush1.bf16.msra.mxu0 0
      %2070 = vmatprep.subr.bf16.mxu0 0
      %2071 = vmatpush1.bf16.msra.mxu0 0
      %2072 = vmatprep.subr.bf16.mxu0 0
      %2073 = vmatpush1.bf16.msra.mxu0 0
      %2074 = vmatprep.subr.bf16.mxu0 0
      %2075 = vmatpush1.bf16.msra.mxu0 0
      %2076 = vmatprep.mubr.bf16.mxu0 0
      %2077 = vmatmul.mubr.bf16.gmra.mrb[0].mxu0 %v1997
      %v2078 = vpop.f32.mrb[0].mxu0
      %v2079 = vadd.f32 0.0, %v2078
      %v2080 = vpop.f32.mrb[0].mxu0
      %v2081 = vpop.f32.mrb[0].mxu0
      %v2082 = vadd.f32 0.0, %v2081
      %v2083 = vpop.f32.mrb[0].mxu0
      %2084 = vmatprep.mubr.bf16.mxu0 0
      %2085 = vmatmul.mubr.bf16.gmra.mrb[0].mxu0 %v2000
      %v2086 = vpop.f32.mrb[0].mxu0
      %v2087 = vadd.f32 0.0, %v2086
      %v2088 = vpop.f32.mrb[0].mxu0
      %v2089 = vpop.f32.mrb[0].mxu0
      %v2090 = vadd.f32 0.0, %v2089
      %v2091 = vpop.f32.mrb[0].mxu0
      %2092 = vmatprep.mubr.bf16.mxu0 0
      %2093 = vmatmul.mubr.bf16.gmra.mrb[0].mxu0 %v1997
      %v2094 = vpop.f32.mrb[0].mxu0
      %v2095 = vadd.f32 0.0, %v2094
      %v2096 = vpop.f32.mrb[0].mxu0
      %v2097 = vpop.f32.mrb[0].mxu0
      %v2098 = vadd.f32 0.0, %v2097
      %v2099 = vpop.f32.mrb[0].mxu0
      %2100 = vmatprep.mubr.bf16.mxu0 0
      %2101 = vmatmul.mubr.bf16.gmra.mrb[0].mxu0 %v2003
      %v2102 = vpop.f32.mrb[0].mxu0
      %v2103 = vadd.f32 0.0, %v2102
      %v2104 = vpop.f32.mrb[0].mxu0
      %v2105 = vpop.f32.mrb[0].mxu0
      %v2106 = vadd.f32 0.0, %v2105
      %v2107 = vpop.f32.mrb[0].mxu0
      %2108 = vmatprep.mubr.bf16.mxu0 0
      %2109 = vmatmul.mubr.bf16.gmra.mrb[0].mxu0 %v2006
      %v2110 = vpop.f32.mrb[0].mxu0
      %v2111 = vadd.f32 0.0, %v2110
      %v2112 = vpop.f32.mrb[0].mxu0
      %v2113 = vpop.f32.mrb[0].mxu0
      %v2114 = vadd.f32 0.0, %v2113
      %v2115 = vpop.f32.mrb[0].mxu0
      %2116 = vmatprep.mubr.bf16.mxu0 0
      %2117 = vmatmul.mubr.bf16.gmra.mrb[0].mxu0 %v2009
      %v2118 = vpop.f32.mrb[0].mxu0
      %v2119 = vadd.f32 0.0, %v2118
      %v2120 = vpop.f32.mrb[0].mxu0
      %v2121 = vpop.f32.mrb[0].mxu0
      %v2122 = vadd.f32 0.0, %v2121
      %v2123 = vpop.f32.mrb[0].mxu0
      %2124 = vmatprep.mubr.bf16.mxu0 0
      %2125 = vmatmul.mubr.bf16.gmra.mrb[0].mxu0 %v2012
      %v2126 = vpop.f32.mrb[0].mxu0
      %v2127 = vadd.f32 0.0, %v2126
      %v2128 = vpop.f32.mrb[0].mxu0
      %v2129 = vpop.f32.mrb[0].mxu0
      %v2130 = vadd.f32 0.0, %v2129
      %v2131 = vpop.f32.mrb[0].mxu0
      %2132 = vmatprep.mubr.bf16.mxu0 0
      %2133 = vmatmul.mubr.bf16.gmra.mrb[0].mxu0 %v2015
      %v2134 = vpop.f32.mrb[0].mxu0
      %v2135 = vadd.f32 0.0, %v2134
      %v2136 = vpop.f32.mrb[0].mxu0
      %v2137 = vpop.f32.mrb[0].mxu0
      %v2138 = vadd.f32 0.0, %v2137
      %v2139 = vpop.f32.mrb[0].mxu0
      %2140 = vmatprep.mubr.bf16.mxu0 0
      %2141 = vmatmul.mubr.bf16.gmra.mrb[0].mxu0 %v2018
      %v2142 = vpop.f32.mrb[0].mxu0
      %v2143 = vadd.f32 0.0, %v2142
      %v2144 = vpop.f32.mrb[0].mxu0
      %v2145 = vpop.f32.mrb[0].mxu0
      %v2146 = vadd.f32 0.0, %v2145
      %v2147 = vpop.f32.mrb[0].mxu0
      %2148 = vmatprep.mubr.bf16.mxu0 0
      %2149 = vmatmul.mubr.bf16.gmra.mrb[0].mxu0 %v2021
      %v2150 = vpop.f32.mrb[0].mxu0
      %v2151 = vadd.f32 0.0, %v2150
      %v2152 = vpop.f32.mrb[0].mxu0
      %v2153 = vpop.f32.mrb[0].mxu0
      %v2154 = vadd.f32 0.0, %v2153
      %v2155 = vpop.f32.mrb[0].mxu0
      %2156 = vmatprep.mubr.bf16.mxu0 0
      %2157 = vmatmul.mubr.bf16.gmra.mrb[0].mxu0 %v2024
      %v2158 = vpop.f32.mrb[0].mxu0
      %v2159 = vadd.f32 0.0, %v2158
      %v2160 = vpop.f32.mrb[0].mxu0
      %v2161 = vpop.f32.mrb[0].mxu0
      %v2162 = vadd.f32 0.0, %v2161
      %v2163 = vpop.f32.mrb[0].mxu0
      %2164 = vmatprep.mubr.bf16.mxu0 0
      %2165 = vmatmul.mubr.bf16.gmra.mrb[0].mxu0 %v2027
      %v2166 = vpop.f32.mrb[0].mxu0
      %v2167 = vadd.f32 0.0, %v2166
      %v2168 = vpop.f32.mrb[0].mxu0
      %v2169 = vpop.f32.mrb[0].mxu0
      %v2170 = vadd.f32 0.0, %v2169
      %v2171 = vpop.f32.mrb[0].mxu0
      %2172 = vmatprep.mubr.bf16.mxu0 0
      %2173 = vmatmul.mubr.bf16.gmra.mrb[0].mxu0 %v2030
      %v2174 = vpop.f32.mrb[0].mxu0
      %v2175 = vadd.f32 0.0, %v2174
      %v2176 = vpop.f32.mrb[0].mxu0
      %v2177 = vpop.f32.mrb[0].mxu0
      %v2178 = vadd.f32 0.0, %v2177
      %v2179 = vpop.f32.mrb[0].mxu0
      %2180 = vmatprep.mubr.bf16.mxu0 0
      %2181 = vmatmul.mubr.bf16.gmra.mrb[0].mxu0 %v2033
      %v2182 = vpop.f32.mrb[0].mxu0
      %v2183 = vadd.f32 0.0, %v2182
      %v2184 = vpop.f32.mrb[0].mxu0
      %v2185 = vpop.f32.mrb[0].mxu0
      %v2186 = vadd.f32 0.0, %v2185
      %v2187 = vpop.f32.mrb[0].mxu0
      %2188 = vmatprep.mubr.bf16.mxu0 0
      %2189 = vmatmul.mubr.bf16.gmra.mrb[0].mxu0 %v2036
      %v2190 = vpop.f32.mrb[0].mxu0
      %v2191 = vadd.f32 0.0, %v2190
      %v2192 = vpop.f32.mrb[0].mxu0
      %v2193 = vpop.f32.mrb[0].mxu0
      %v2194 = vadd.f32 0.0, %v2193
      %v2195 = vpop.f32.mrb[0].mxu0
      %2196 = vmatprep.mubr.bf16.mxu0 0
      %2197 = vmatmul.mubr.bf16.gmra.mrb[0].mxu0 %v2039
      %v2198 = vpop.f32.mrb[0].mxu0
      %v2199 = vadd.f32 0.0, %v2198
      %v2200 = vpop.f32.mrb[0].mxu0
      %v2201 = vpop.f32.mrb[0].mxu0
      %v2202 = vadd.f32 0.0, %v2201
      %v2203 = vpop.f32.mrb[0].mxu0
      %2204 = vdwg.mxu0
      %v2205 = vadd.f32 %v1888, %v2079
      %v2206 = vadd.f32 %v1889, %v2082
      %v2207 = vadd.f32 %v1890, %v2087
      %v2208 = vadd.f32 %v1891, %v2090
      %v2209 = vadd.f32 %v1892, %v2095
      %v2210 = vadd.f32 %v1893, %v2098
      %v2211 = vadd.f32 %v1894, %v2103
      %v2212 = vadd.f32 %v1895, %v2106
      %v2213 = vadd.f32 %v1896, %v2111
      %v2214 = vadd.f32 %v1897, %v2114
      %v2215 = vadd.f32 %v1898, %v2119
      %v2216 = vadd.f32 %v1899, %v2122
      %v2217 = vadd.f32 %v1900, %v2127
      %v2218 = vadd.f32 %v1901, %v2130
      %v2219 = vadd.f32 %v1902, %v2135
      %v2220 = vadd.f32 %v1903, %v2138
      %v2221 = vadd.f32 %v1904, %v2143
      %v2222 = vadd.f32 %v1905, %v2146
      %v2223 = vadd.f32 %v1906, %v2151
      %v2224 = vadd.f32 %v1907, %v2154
      %v2225 = vadd.f32 %v1908, %v2159
      %v2226 = vadd.f32 %v1909, %v2162
      %v2227 = vadd.f32 %v1910, %v2167
      %v2228 = vadd.f32 %v1911, %v2170
      %v2229 = vadd.f32 %v1912, %v2175
      %v2230 = vadd.f32 %v1913, %v2178
      %v2231 = vadd.f32 %v1914, %v2183
      %v2232 = vadd.f32 %v1915, %v2186
      %v2233 = vadd.f32 %v1916, %v2191
      %v2234 = vadd.f32 %v1917, %v2194
      %v2235 = vadd.f32 %v1918, %v2199
      %v2236 = vadd.f32 %v1919, %v2202
      %v2239 = vrot.slane %v531, 1
      %v2240 = vrot.slane %v532, 1
      %v2241 = vsel %vm1950, %v2239, %v2240
      %v2243 = vsel %vm533, %v2241, 0
      %v2246 = vsel %vm582, %v195, 0
      %2248 = vmatprep.subr.bf16.mxu0 0
      %2249 = vmatpush1.bf16.msra.mxu0 %v2246
      %2250 = vmatprep.subr.bf16.mxu0 0
      %2251 = vmatpush1.bf16.msra.mxu0 0
      %2252 = vmatprep.subr.bf16.mxu0 0
      %2253 = vmatpush1.bf16.msra.mxu0 0
      %2254 = vmatprep.subr.bf16.mxu0 0
      %2255 = vmatpush1.bf16.msra.mxu0 0
      %2256 = vmatprep.subr.bf16.mxu0 0
      %2257 = vmatpush1.bf16.msra.mxu0 0
      %2258 = vmatprep.subr.bf16.mxu0 0
      %2259 = vmatpush1.bf16.msra.mxu0 0
      %2260 = vmatprep.subr.bf16.mxu0 0
      %2261 = vmatpush1.bf16.msra.mxu0 0
      %2262 = vmatprep.subr.bf16.mxu0 0
      %2263 = vmatpush1.bf16.msra.mxu0 0
      %2264 = vmatprep.subr.bf16.mxu0 0
      %2265 = vmatpush1.bf16.msra.mxu0 0
      %2266 = vmatprep.subr.bf16.mxu0 0
      %2267 = vmatpush1.bf16.msra.mxu0 0
      %2268 = vmatprep.subr.bf16.mxu0 0
      %2269 = vmatpush1.bf16.msra.mxu0 0
      %2270 = vmatprep.subr.bf16.mxu0 0
      %2271 = vmatpush1.bf16.msra.mxu0 0
      %2272 = vmatprep.subr.bf16.mxu0 0
      %2273 = vmatpush1.bf16.msra.mxu0 0
      %2274 = vmatprep.subr.bf16.mxu0 0
      %2275 = vmatpush1.bf16.msra.mxu0 0
      %2276 = vmatprep.subr.bf16.mxu0 0
      %2277 = vmatpush1.bf16.msra.mxu0 0
      %2278 = vmatprep.subr.bf16.mxu0 0
      %2279 = vmatpush1.bf16.msra.mxu0 0
      %2280 = vmatprep.mubr.bf16.mxu0 0
      %2281 = vmatmul.mubr.bf16.gmra.mrb[0].mxu0 %v2000
      %v2282 = vpop.f32.mrb[0].mxu0
      %v2283 = vadd.f32 0.0, %v2282
      %v2284 = vpop.f32.mrb[0].mxu0
      %v2285 = vpop.f32.mrb[0].mxu0
      %v2286 = vadd.f32 0.0, %v2285
      %v2287 = vpop.f32.mrb[0].mxu0
      %2288 = vmatprep.mubr.bf16.mxu0 0
      %2289 = vmatmul.mubr.bf16.gmra.mrb[0].mxu0 %v1997
      %v2290 = vpop.f32.mrb[0].mxu0
      %v2291 = vadd.f32 0.0, %v2290
      %v2292 = vpop.f32.mrb[0].mxu0
      %v2293 = vpop.f32.mrb[0].mxu0
      %v2294 = vadd.f32 0.0, %v2293
      %v2295 = vpop.f32.mrb[0].mxu0
      %2296 = vmatprep.mubr.bf16.mxu0 0
      %2297 = vmatmul.mubr.bf16.gmra.mrb[0].mxu0 %v2003
      %v2298 = vpop.f32.mrb[0].mxu0
      %v2299 = vadd.f32 0.0, %v2298
      %v2300 = vpop.f32.mrb[0].mxu0
      %v2301 = vpop.f32.mrb[0].mxu0
      %v2302 = vadd.f32 0.0, %v2301
      %v2303 = vpop.f32.mrb[0].mxu0
      %2304 = vmatprep.mubr.bf16.mxu0 0
      %2305 = vmatmul.mubr.bf16.gmra.mrb[0].mxu0 %v2006
      %v2306 = vpop.f32.mrb[0].mxu0
      %v2307 = vadd.f32 0.0, %v2306
      %v2308 = vpop.f32.mrb[0].mxu0
      %v2309 = vpop.f32.mrb[0].mxu0
      %v2310 = vadd.f32 0.0, %v2309
      %v2311 = vpop.f32.mrb[0].mxu0
      %2312 = vmatprep.mubr.bf16.mxu0 0
      %2313 = vmatmul.mubr.bf16.gmra.mrb[0].mxu0 %v2009
      %v2314 = vpop.f32.mrb[0].mxu0
      %v2315 = vadd.f32 0.0, %v2314
      %v2316 = vpop.f32.mrb[0].mxu0
      %v2317 = vpop.f32.mrb[0].mxu0
      %v2318 = vadd.f32 0.0, %v2317
      %v2319 = vpop.f32.mrb[0].mxu0
      %2320 = vmatprep.mubr.bf16.mxu0 0
      %2321 = vmatmul.mubr.bf16.gmra.mrb[0].mxu0 %v2012
      %v2322 = vpop.f32.mrb[0].mxu0
      %v2323 = vadd.f32 0.0, %v2322
      %v2324 = vpop.f32.mrb[0].mxu0
      %v2325 = vpop.f32.mrb[0].mxu0
      %v2326 = vadd.f32 0.0, %v2325
      %v2327 = vpop.f32.mrb[0].mxu0
      %2328 = vmatprep.mubr.bf16.mxu0 0
      %2329 = vmatmul.mubr.bf16.gmra.mrb[0].mxu0 %v2015
      %v2330 = vpop.f32.mrb[0].mxu0
      %v2331 = vadd.f32 0.0, %v2330
      %v2332 = vpop.f32.mrb[0].mxu0
      %v2333 = vpop.f32.mrb[0].mxu0
      %v2334 = vadd.f32 0.0, %v2333
      %v2335 = vpop.f32.mrb[0].mxu0
      %2336 = vmatprep.mubr.bf16.mxu0 0
      %2337 = vmatmul.mubr.bf16.gmra.mrb[0].mxu0 %v2018
      %v2338 = vpop.f32.mrb[0].mxu0
      %v2339 = vadd.f32 0.0, %v2338
      %v2340 = vpop.f32.mrb[0].mxu0
      %v2341 = vpop.f32.mrb[0].mxu0
      %v2342 = vadd.f32 0.0, %v2341
      %v2343 = vpop.f32.mrb[0].mxu0
      %2344 = vmatprep.mubr.bf16.mxu0 0
      %2345 = vmatmul.mubr.bf16.gmra.mrb[0].mxu0 %v2021
      %v2346 = vpop.f32.mrb[0].mxu0
      %v2347 = vadd.f32 0.0, %v2346
      %v2348 = vpop.f32.mrb[0].mxu0
      %v2349 = vpop.f32.mrb[0].mxu0
      %v2350 = vadd.f32 0.0, %v2349
      %v2351 = vpop.f32.mrb[0].mxu0
      %2352 = vmatprep.mubr.bf16.mxu0 0
      %2353 = vmatmul.mubr.bf16.gmra.mrb[0].mxu0 %v2024
      %v2354 = vpop.f32.mrb[0].mxu0
      %v2355 = vadd.f32 0.0, %v2354
      %v2356 = vpop.f32.mrb[0].mxu0
      %v2357 = vpop.f32.mrb[0].mxu0
      %v2358 = vadd.f32 0.0, %v2357
      %v2359 = vpop.f32.mrb[0].mxu0
      %2360 = vmatprep.mubr.bf16.mxu0 0
      %2361 = vmatmul.mubr.bf16.gmra.mrb[0].mxu0 %v2027
      %v2362 = vpop.f32.mrb[0].mxu0
      %v2363 = vadd.f32 0.0, %v2362
      %v2364 = vpop.f32.mrb[0].mxu0
      %v2365 = vpop.f32.mrb[0].mxu0
      %v2366 = vadd.f32 0.0, %v2365
      %v2367 = vpop.f32.mrb[0].mxu0
      %2368 = vmatprep.mubr.bf16.mxu0 0
      %2369 = vmatmul.mubr.bf16.gmra.mrb[0].mxu0 %v2030
      %v2370 = vpop.f32.mrb[0].mxu0
      %v2371 = vadd.f32 0.0, %v2370
      %v2372 = vpop.f32.mrb[0].mxu0
      %v2373 = vpop.f32.mrb[0].mxu0
      %v2374 = vadd.f32 0.0, %v2373
      %v2375 = vpop.f32.mrb[0].mxu0
      %2376 = vmatprep.mubr.bf16.mxu0 0
      %2377 = vmatmul.mubr.bf16.gmra.mrb[0].mxu0 %v2033
      %v2378 = vpop.f32.mrb[0].mxu0
      %v2379 = vadd.f32 0.0, %v2378
      %v2380 = vpop.f32.mrb[0].mxu0
      %v2381 = vpop.f32.mrb[0].mxu0
      %v2382 = vadd.f32 0.0, %v2381
      %v2383 = vpop.f32.mrb[0].mxu0
      %2384 = vmatprep.mubr.bf16.mxu0 0
      %2385 = vmatmul.mubr.bf16.gmra.mrb[0].mxu0 %v2036
      %v2386 = vpop.f32.mrb[0].mxu0
      %v2387 = vadd.f32 0.0, %v2386
      %v2388 = vpop.f32.mrb[0].mxu0
      %v2389 = vpop.f32.mrb[0].mxu0
      %v2390 = vadd.f32 0.0, %v2389
      %v2391 = vpop.f32.mrb[0].mxu0
      %2392 = vmatprep.mubr.bf16.mxu0 0
      %2393 = vmatmul.mubr.bf16.gmra.mrb[0].mxu0 %v2039
      %v2394 = vpop.f32.mrb[0].mxu0
      %v2395 = vadd.f32 0.0, %v2394
      %v2396 = vpop.f32.mrb[0].mxu0
      %v2397 = vpop.f32.mrb[0].mxu0
      %v2398 = vadd.f32 0.0, %v2397
      %v2399 = vpop.f32.mrb[0].mxu0
      %2400 = vmatprep.mubr.bf16.mxu0 0
      %2401 = vmatmul.mubr.bf16.gmra.mrb[0].mxu0 %v2243
      %v2402 = vpop.f32.mrb[0].mxu0
      %v2403 = vadd.f32 0.0, %v2402
      %v2404 = vpop.f32.mrb[0].mxu0
      %v2405 = vpop.f32.mrb[0].mxu0
      %v2406 = vadd.f32 0.0, %v2405
      %v2407 = vpop.f32.mrb[0].mxu0
      %2408 = vdwg.mxu0
      %v2409 = vadd.f32 %v2205, %v2283
      %v2410 = vadd.f32 %v2206, %v2286
      %v2411 = vadd.f32 %v2207, %v2291
      %v2412 = vadd.f32 %v2208, %v2294
      %v2413 = vadd.f32 %v2209, %v2299
      %v2414 = vadd.f32 %v2210, %v2302
      %v2415 = vadd.f32 %v2211, %v2307
      %v2416 = vadd.f32 %v2212, %v2310
      %v2417 = vadd.f32 %v2213, %v2315
      %v2418 = vadd.f32 %v2214, %v2318
      %v2419 = vadd.f32 %v2215, %v2323
      %v2420 = vadd.f32 %v2216, %v2326
      %v2421 = vadd.f32 %v2217, %v2331
      %v2422 = vadd.f32 %v2218, %v2334
      %v2423 = vadd.f32 %v2219, %v2339
      %v2424 = vadd.f32 %v2220, %v2342
      %v2425 = vadd.f32 %v2221, %v2347
      %v2426 = vadd.f32 %v2222, %v2350
      %v2427 = vadd.f32 %v2223, %v2355
      %v2428 = vadd.f32 %v2224, %v2358
      %v2429 = vadd.f32 %v2225, %v2363
      %v2430 = vadd.f32 %v2226, %v2366
      %v2431 = vadd.f32 %v2227, %v2371
      %v2432 = vadd.f32 %v2228, %v2374
      %v2433 = vadd.f32 %v2229, %v2379
      %v2434 = vadd.f32 %v2230, %v2382
      %v2435 = vadd.f32 %v2231, %v2387
      %v2436 = vadd.f32 %v2232, %v2390
      %v2437 = vadd.f32 %v2233, %v2395
      %v2438 = vadd.f32 %v2234, %v2398
      %v2439 = vadd.f32 %v2235, %v2403
      %v2440 = vadd.f32 %v2236, %v2406
      %v2442 = vsel %vm582, %v198, 0
      %2444 = vmatprep.subr.bf16.mxu0 0
      %2445 = vmatpush1.bf16.msra.mxu0 %v2442
      %2446 = vmatprep.subr.bf16.mxu0 0
      %2447 = vmatpush1.bf16.msra.mxu0 0
      %2448 = vmatprep.subr.bf16.mxu0 0
      %2449 = vmatpush1.bf16.msra.mxu0 0
      %2450 = vmatprep.subr.bf16.mxu0 0
      %2451 = vmatpush1.bf16.msra.mxu0 0
      %2452 = vmatprep.subr.bf16.mxu0 0
      %2453 = vmatpush1.bf16.msra.mxu0 0
      %2454 = vmatprep.subr.bf16.mxu0 0
      %2455 = vmatpush1.bf16.msra.mxu0 0
      %2456 = vmatprep.subr.bf16.mxu0 0
      %2457 = vmatpush1.bf16.msra.mxu0 0
      %2458 = vmatprep.subr.bf16.mxu0 0
      %2459 = vmatpush1.bf16.msra.mxu0 0
      %2460 = vmatprep.subr.bf16.mxu0 0
      %2461 = vmatpush1.bf16.msra.mxu0 0
      %2462 = vmatprep.subr.bf16.mxu0 0
      %2463 = vmatpush1.bf16.msra.mxu0 0
      %2464 = vmatprep.subr.bf16.mxu0 0
      %2465 = vmatpush1.bf16.msra.mxu0 0
      %2466 = vmatprep.subr.bf16.mxu0 0
      %2467 = vmatpush1.bf16.msra.mxu0 0
      %2468 = vmatprep.subr.bf16.mxu0 0
      %2469 = vmatpush1.bf16.msra.mxu0 0
      %2470 = vmatprep.subr.bf16.mxu0 0
      %2471 = vmatpush1.bf16.msra.mxu0 0
      %2472 = vmatprep.subr.bf16.mxu0 0
      %2473 = vmatpush1.bf16.msra.mxu0 0
      %2474 = vmatprep.subr.bf16.mxu0 0
      %2475 = vmatpush1.bf16.msra.mxu0 0
      %2476 = vmatprep.mubr.bf16.mxu0 0
      %2477 = vmatmul.mubr.bf16.gmra.mrb[0].mxu0 %v1997
      %v2478 = vpop.f32.mrb[0].mxu0
      %v2479 = vadd.f32 0.0, %v2478
      %v2480 = vpop.f32.mrb[0].mxu0
      %v2481 = vpop.f32.mrb[0].mxu0
      %v2482 = vadd.f32 0.0, %v2481
      %v2483 = vpop.f32.mrb[0].mxu0
      %2484 = vmatprep.mubr.bf16.mxu0 0
      %2485 = vmatmul.mubr.bf16.gmra.mrb[0].mxu0 %v2003
      %v2486 = vpop.f32.mrb[0].mxu0
      %v2487 = vadd.f32 0.0, %v2486
      %v2488 = vpop.f32.mrb[0].mxu0
      %v2489 = vpop.f32.mrb[0].mxu0
      %v2490 = vadd.f32 0.0, %v2489
      %v2491 = vpop.f32.mrb[0].mxu0
      %2492 = vmatprep.mubr.bf16.mxu0 0
      %2493 = vmatmul.mubr.bf16.gmra.mrb[0].mxu0 %v2006
      %v2494 = vpop.f32.mrb[0].mxu0
      %v2495 = vadd.f32 0.0, %v2494
      %v2496 = vpop.f32.mrb[0].mxu0
      %v2497 = vpop.f32.mrb[0].mxu0
      %v2498 = vadd.f32 0.0, %v2497
      %v2499 = vpop.f32.mrb[0].mxu0
      %2500 = vmatprep.mubr.bf16.mxu0 0
      %2501 = vmatmul.mubr.bf16.gmra.mrb[0].mxu0 %v2009
      %v2502 = vpop.f32.mrb[0].mxu0
      %v2503 = vadd.f32 0.0, %v2502
      %v2504 = vpop.f32.mrb[0].mxu0
      %v2505 = vpop.f32.mrb[0].mxu0
      %v2506 = vadd.f32 0.0, %v2505
      %v2507 = vpop.f32.mrb[0].mxu0
      %2508 = vmatprep.mubr.bf16.mxu0 0
      %2509 = vmatmul.mubr.bf16.gmra.mrb[0].mxu0 %v2012
      %v2510 = vpop.f32.mrb[0].mxu0
      %v2511 = vadd.f32 0.0, %v2510
      %v2512 = vpop.f32.mrb[0].mxu0
      %v2513 = vpop.f32.mrb[0].mxu0
      %v2514 = vadd.f32 0.0, %v2513
      %v2515 = vpop.f32.mrb[0].mxu0
      %2516 = vmatprep.mubr.bf16.mxu0 0
      %2517 = vmatmul.mubr.bf16.gmra.mrb[0].mxu0 %v2015
      %v2518 = vpop.f32.mrb[0].mxu0
      %v2519 = vadd.f32 0.0, %v2518
      %v2520 = vpop.f32.mrb[0].mxu0
      %v2521 = vpop.f32.mrb[0].mxu0
      %v2522 = vadd.f32 0.0, %v2521
      %v2523 = vpop.f32.mrb[0].mxu0
      %2524 = vmatprep.mubr.bf16.mxu0 0
      %2525 = vmatmul.mubr.bf16.gmra.mrb[0].mxu0 %v2018
      %v2526 = vpop.f32.mrb[0].mxu0
      %v2527 = vadd.f32 0.0, %v2526
      %v2528 = vpop.f32.mrb[0].mxu0
      %v2529 = vpop.f32.mrb[0].mxu0
      %v2530 = vadd.f32 0.0, %v2529
      %v2531 = vpop.f32.mrb[0].mxu0
      %2532 = vmatprep.mubr.bf16.mxu0 0
      %2533 = vmatmul.mubr.bf16.gmra.mrb[0].mxu0 %v2021
      %v2534 = vpop.f32.mrb[0].mxu0
      %v2535 = vadd.f32 0.0, %v2534
      %v2536 = vpop.f32.mrb[0].mxu0
      %v2537 = vpop.f32.mrb[0].mxu0
      %v2538 = vadd.f32 0.0, %v2537
      %v2539 = vpop.f32.mrb[0].mxu0
      %2540 = vmatprep.mubr.bf16.mxu0 0
      %2541 = vmatmul.mubr.bf16.gmra.mrb[0].mxu0 %v2024
      %v2542 = vpop.f32.mrb[0].mxu0
      %v2543 = vadd.f32 0.0, %v2542
      %v2544 = vpop.f32.mrb[0].mxu0
      %v2545 = vpop.f32.mrb[0].mxu0
      %v2546 = vadd.f32 0.0, %v2545
      %v2547 = vpop.f32.mrb[0].mxu0
      %2548 = vmatprep.mubr.bf16.mxu0 0
      %2549 = vmatmul.mubr.bf16.gmra.mrb[0].mxu0 %v2027
      %v2550 = vpop.f32.mrb[0].mxu0
      %v2551 = vadd.f32 0.0, %v2550
      %v2552 = vpop.f32.mrb[0].mxu0
      %v2553 = vpop.f32.mrb[0].mxu0
      %v2554 = vadd.f32 0.0, %v2553
      %v2555 = vpop.f32.mrb[0].mxu0
      %2556 = vmatprep.mubr.bf16.mxu0 0
      %2557 = vmatmul.mubr.bf16.gmra.mrb[0].mxu0 %v2030
      %v2558 = vpop.f32.mrb[0].mxu0
      %v2559 = vadd.f32 0.0, %v2558
      %v2560 = vpop.f32.mrb[0].mxu0
      %v2561 = vpop.f32.mrb[0].mxu0
      %v2562 = vadd.f32 0.0, %v2561
      %v2563 = vpop.f32.mrb[0].mxu0
      %2564 = vmatprep.mubr.bf16.mxu0 0
      %2565 = vmatmul.mubr.bf16.gmra.mrb[0].mxu0 %v2033
      %v2566 = vpop.f32.mrb[0].mxu0
      %v2567 = vadd.f32 0.0, %v2566
      %v2568 = vpop.f32.mrb[0].mxu0
      %v2569 = vpop.f32.mrb[0].mxu0
      %v2570 = vadd.f32 0.0, %v2569
      %v2571 = vpop.f32.mrb[0].mxu0
      %2572 = vmatprep.mubr.bf16.mxu0 0
      %2573 = vmatmul.mubr.bf16.gmra.mrb[0].mxu0 %v2036
      %v2574 = vpop.f32.mrb[0].mxu0
      %v2575 = vadd.f32 0.0, %v2574
      %v2576 = vpop.f32.mrb[0].mxu0
      %v2577 = vpop.f32.mrb[0].mxu0
      %v2578 = vadd.f32 0.0, %v2577
      %v2579 = vpop.f32.mrb[0].mxu0
      %2580 = vmatprep.mubr.bf16.mxu0 0
      %2581 = vmatmul.mubr.bf16.gmra.mrb[0].mxu0 %v2039
      %v2582 = vpop.f32.mrb[0].mxu0
      %v2583 = vadd.f32 0.0, %v2582
      %v2584 = vpop.f32.mrb[0].mxu0
      %v2585 = vpop.f32.mrb[0].mxu0
      %v2586 = vadd.f32 0.0, %v2585
      %v2587 = vpop.f32.mrb[0].mxu0
      %2588 = vmatprep.mubr.bf16.mxu0 0
      %2589 = vmatmul.mubr.bf16.gmra.mrb[0].mxu0 %v2243
      %v2590 = vpop.f32.mrb[0].mxu0
      %v2591 = vadd.f32 0.0, %v2590
      %v2592 = vpop.f32.mrb[0].mxu0
      %v2593 = vpop.f32.mrb[0].mxu0
      %v2594 = vadd.f32 0.0, %v2593
      %v2595 = vpop.f32.mrb[0].mxu0
      %2596 = vmatprep.mubr.bf16.mxu0 0
      %2597 = vmatmul.mubr.bf16.gmra.mrb[0].mxu0 %v2039
      %v2598 = vpop.f32.mrb[0].mxu0
      %v2599 = vadd.f32 0.0, %v2598
      %v2600 = vpop.f32.mrb[0].mxu0
      %v2601 = vpop.f32.mrb[0].mxu0
      %v2602 = vadd.f32 0.0, %v2601
      %v2603 = vpop.f32.mrb[0].mxu0
      %2604 = vdwg.mxu0
      %v2605 = vadd.f32 %v2409, %v2479
      %v2606 = vadd.f32 %v2410, %v2482
      %v2607 = vadd.f32 %v2411, %v2487
      %v2608 = vadd.f32 %v2412, %v2490
      %v2609 = vadd.f32 %v2413, %v2495
      %v2610 = vadd.f32 %v2414, %v2498
      %v2611 = vadd.f32 %v2415, %v2503
      %v2612 = vadd.f32 %v2416, %v2506
      %v2613 = vadd.f32 %v2417, %v2511
      %v2614 = vadd.f32 %v2418, %v2514
      %v2615 = vadd.f32 %v2419, %v2519
      %v2616 = vadd.f32 %v2420, %v2522
      %v2617 = vadd.f32 %v2421, %v2527
      %v2618 = vadd.f32 %v2422, %v2530
      %v2619 = vadd.f32 %v2423, %v2535
      %v2620 = vadd.f32 %v2424, %v2538
      %v2621 = vadd.f32 %v2425, %v2543
      %v2622 = vadd.f32 %v2426, %v2546
      %v2623 = vadd.f32 %v2427, %v2551
      %v2624 = vadd.f32 %v2428, %v2554
      %v2625 = vadd.f32 %v2429, %v2559
      %v2626 = vadd.f32 %v2430, %v2562
      %v2627 = vadd.f32 %v2431, %v2567
      %v2628 = vadd.f32 %v2432, %v2570
      %v2629 = vadd.f32 %v2433, %v2575
      %v2630 = vadd.f32 %v2434, %v2578
      %v2631 = vadd.f32 %v2435, %v2583
      %v2632 = vadd.f32 %v2436, %v2586
      %v2633 = vadd.f32 %v2437, %v2591
      %v2634 = vadd.f32 %v2438, %v2594
      %v2635 = vadd.f32 %v2439, %v2599
      %v2636 = vadd.f32 %v2440, %v2602
      %v2637 = vsel %vm533, %v2605, 0.0
      %v2638 = vsel %vm533, %v2606, 0.0
      %v2639 = vadd.f32 %v2637, %v2638
      %v2640 = vsel %vm533, %v2607, 0.0
      %v2641 = vadd.f32 %v2639, %v2640
      %v2642 = vsel %vm533, %v2608, 0.0
      %v2643 = vadd.f32 %v2641, %v2642
      %v2644 = vsel %vm533, %v2609, 0.0
      %v2645 = vadd.f32 %v2643, %v2644
      %v2646 = vsel %vm533, %v2610, 0.0
      %v2647 = vadd.f32 %v2645, %v2646
      %v2648 = vsel %vm533, %v2611, 0.0
      %v2649 = vadd.f32 %v2647, %v2648
      %v2650 = vsel %vm533, %v2612, 0.0
      %v2651 = vadd.f32 %v2649, %v2650
      %v2652 = vsel %vm533, %v2613, 0.0
      %v2653 = vadd.f32 %v2651, %v2652
      %v2654 = vsel %vm533, %v2614, 0.0
      %v2655 = vadd.f32 %v2653, %v2654
      %v2656 = vsel %vm533, %v2615, 0.0
      %v2657 = vadd.f32 %v2655, %v2656
      %v2658 = vsel %vm533, %v2616, 0.0
      %v2659 = vadd.f32 %v2657, %v2658
      %v2660 = vsel %vm533, %v2617, 0.0
      %v2661 = vadd.f32 %v2659, %v2660
      %v2662 = vsel %vm533, %v2618, 0.0
      %v2663 = vadd.f32 %v2661, %v2662
      %v2664 = vsel %vm533, %v2619, 0.0
      %v2665 = vadd.f32 %v2663, %v2664
      %v2666 = vsel %vm533, %v2620, 0.0
      %v2667 = vadd.f32 %v2665, %v2666
      %v2668 = vsel %vm533, %v2621, 0.0
      %v2669 = vadd.f32 %v2667, %v2668
      %v2670 = vsel %vm533, %v2622, 0.0
      %v2671 = vadd.f32 %v2669, %v2670
      %v2672 = vsel %vm533, %v2623, 0.0
      %v2673 = vadd.f32 %v2671, %v2672
      %v2674 = vsel %vm533, %v2624, 0.0
      %v2675 = vadd.f32 %v2673, %v2674
      %v2676 = vsel %vm533, %v2625, 0.0
      %v2677 = vadd.f32 %v2675, %v2676
      %v2678 = vsel %vm533, %v2626, 0.0
      %v2679 = vadd.f32 %v2677, %v2678
      %v2680 = vsel %vm533, %v2627, 0.0
      %v2681 = vadd.f32 %v2679, %v2680
      %v2682 = vsel %vm533, %v2628, 0.0
      %v2683 = vadd.f32 %v2681, %v2682
      %v2684 = vsel %vm533, %v2629, 0.0
      %v2685 = vadd.f32 %v2683, %v2684
      %v2686 = vsel %vm533, %v2630, 0.0
      %v2687 = vadd.f32 %v2685, %v2686
      %v2688 = vsel %vm533, %v2631, 0.0
      %v2689 = vadd.f32 %v2687, %v2688
      %v2690 = vsel %vm533, %v2632, 0.0
      %v2691 = vadd.f32 %v2689, %v2690
      %v2692 = vsel %vm533, %v2633, 0.0
      %v2693 = vadd.f32 %v2691, %v2692
      %v2694 = vsel %vm533, %v2634, 0.0
      %v2695 = vadd.f32 %v2693, %v2694
      %v2696 = vsel %vm533, %v2635, 0.0
      %v2697 = vadd.f32 %v2695, %v2696
      %v2698 = vsel %vm533, %v2636, 0.0
      %v2699 = vadd.f32 %v2697, %v2698
      %v2700 = vrot.slane %v2699, 4
      %v2701 = vadd.f32 %v2699, %v2700
      %v2702 = vrot.slane %v2701, 2
      %v2703 = vadd.f32 %v2701, %v2702
      %v2704 = vrot.slane %v2703, 1
      %v2705 = vadd.f32 %v2703, %v2704
      %v2706 = vmul.f32 %v2605, %v2605
      %v2707 = vmul.f32 %v2606, %v2606
      %v2708 = vmul.f32 %v2607, %v2607
      %v2709 = vmul.f32 %v2608, %v2608
      %v2710 = vmul.f32 %v2609, %v2609
      %v2711 = vmul.f32 %v2610, %v2610
      %v2712 = vmul.f32 %v2611, %v2611
      %v2713 = vmul.f32 %v2612, %v2612
      %v2714 = vmul.f32 %v2613, %v2613
      %v2715 = vmul.f32 %v2614, %v2614
      %v2716 = vmul.f32 %v2615, %v2615
      %v2717 = vmul.f32 %v2616, %v2616
      %v2718 = vmul.f32 %v2617, %v2617
      %v2719 = vmul.f32 %v2618, %v2618
      %v2720 = vmul.f32 %v2619, %v2619
      %v2721 = vmul.f32 %v2620, %v2620
      %v2722 = vmul.f32 %v2621, %v2621
      %v2723 = vmul.f32 %v2622, %v2622
      %v2724 = vmul.f32 %v2623, %v2623
      %v2725 = vmul.f32 %v2624, %v2624
      %v2726 = vmul.f32 %v2625, %v2625
      %v2727 = vmul.f32 %v2626, %v2626
      %v2728 = vmul.f32 %v2627, %v2627
      %v2729 = vmul.f32 %v2628, %v2628
      %v2730 = vmul.f32 %v2629, %v2629
      %v2731 = vmul.f32 %v2630, %v2630
      %v2732 = vmul.f32 %v2631, %v2631
      %v2733 = vmul.f32 %v2632, %v2632
      %v2734 = vmul.f32 %v2633, %v2633
      %v2735 = vmul.f32 %v2634, %v2634
      %v2736 = vmul.f32 %v2635, %v2635
      %v2737 = vmul.f32 %v2636, %v2636
      %v2738 = vsel %vm533, %v2706, 0.0
      %v2739 = vsel %vm533, %v2707, 0.0
      %v2740 = vadd.f32 %v2738, %v2739
      %v2741 = vsel %vm533, %v2708, 0.0
      %v2742 = vadd.f32 %v2740, %v2741
      %v2743 = vsel %vm533, %v2709, 0.0
      %v2744 = vadd.f32 %v2742, %v2743
      %v2745 = vsel %vm533, %v2710, 0.0
      %v2746 = vadd.f32 %v2744, %v2745
      %v2747 = vsel %vm533, %v2711, 0.0
      %v2748 = vadd.f32 %v2746, %v2747
      %v2749 = vsel %vm533, %v2712, 0.0
      %v2750 = vadd.f32 %v2748, %v2749
      %v2751 = vsel %vm533, %v2713, 0.0
      %v2752 = vadd.f32 %v2750, %v2751
      %v2753 = vsel %vm533, %v2714, 0.0
      %v2754 = vadd.f32 %v2752, %v2753
      %v2755 = vsel %vm533, %v2715, 0.0
      %v2756 = vadd.f32 %v2754, %v2755
      %v2757 = vsel %vm533, %v2716, 0.0
      %v2758 = vadd.f32 %v2756, %v2757
      %v2759 = vsel %vm533, %v2717, 0.0
      %v2760 = vadd.f32 %v2758, %v2759
      %v2761 = vsel %vm533, %v2718, 0.0
      %v2762 = vadd.f32 %v2760, %v2761
      %v2763 = vsel %vm533, %v2719, 0.0
      %v2764 = vadd.f32 %v2762, %v2763
      %v2765 = vsel %vm533, %v2720, 0.0
      %v2766 = vadd.f32 %v2764, %v2765
      %v2767 = vsel %vm533, %v2721, 0.0
      %v2768 = vadd.f32 %v2766, %v2767
      %v2769 = vsel %vm533, %v2722, 0.0
      %v2770 = vadd.f32 %v2768, %v2769
      %v2771 = vsel %vm533, %v2723, 0.0
      %v2772 = vadd.f32 %v2770, %v2771
      %v2773 = vsel %vm533, %v2724, 0.0
      %v2774 = vadd.f32 %v2772, %v2773
      %v2775 = vsel %vm533, %v2725, 0.0
      %v2776 = vadd.f32 %v2774, %v2775
      %v2777 = vsel %vm533, %v2726, 0.0
      %v2778 = vadd.f32 %v2776, %v2777
      %v2779 = vsel %vm533, %v2727, 0.0
      %v2780 = vadd.f32 %v2778, %v2779
      %v2781 = vsel %vm533, %v2728, 0.0
      %v2782 = vadd.f32 %v2780, %v2781
      %v2783 = vsel %vm533, %v2729, 0.0
      %v2784 = vadd.f32 %v2782, %v2783
      %v2785 = vsel %vm533, %v2730, 0.0
      %v2786 = vadd.f32 %v2784, %v2785
      %v2787 = vsel %vm533, %v2731, 0.0
      %v2788 = vadd.f32 %v2786, %v2787
      %v2789 = vsel %vm533, %v2732, 0.0
      %v2790 = vadd.f32 %v2788, %v2789
      %v2791 = vsel %vm533, %v2733, 0.0
      %v2792 = vadd.f32 %v2790, %v2791
      %v2793 = vsel %vm533, %v2734, 0.0
      %v2794 = vadd.f32 %v2792, %v2793
      %v2795 = vsel %vm533, %v2735, 0.0
      %v2796 = vadd.f32 %v2794, %v2795
      %v2797 = vsel %vm533, %v2736, 0.0
      %v2798 = vadd.f32 %v2796, %v2797
      %v2799 = vsel %vm533, %v2737, 0.0
      %v2800 = vadd.f32 %v2798, %v2799
      %v2801 = vrot.slane %v2800, 4
      %v2802 = vadd.f32 %v2800, %v2801
      %v2803 = vrot.slane %v2802, 2
      %v2804 = vadd.f32 %v2802, %v2803
      %v2805 = vrot.slane %v2804, 1
      %v2806 = vadd.f32 %v2804, %v2805
      %v2807 = vmul.f32 %v2705, 0.00390625
      %v2808 = vmul.f32 %v2807, %v2705
      %v2809 = vsub.f32 %v2806, %v2808
      %v2810 = vmul.f32 %v2809, 0.003921569
      %v2811 = vadd.f32 %v2810, 1e-05
      %v2812 = vrsqrt.pop %v2811
      %v2813 = vsel %vm533, %v2705, 0.0
      %2814 = vadd.xlane.f32.xlu0 %v2813
      %v2815 = vpop.xlane.xlu0 %2814
      %v2816 = vsel %vm533, %v2806, 0.0
      %2817 = vadd.xlane.f32.xlu0 %v2816
      %v2818 = vpop.xlane.xlu0 %2817
      %v2819 = vmul.f32 %v2815, 0.0009765625
      %v2820 = vmul.f32 %v2819, %v2815
      %v2821 = vsub.f32 %v2818, %v2820
      %v2822 = vmul.f32 %v2821, 0.0009775171
      %v2823 = vadd.f32 %v2822, 1e-05
      %v2824 = vrsqrt.pop %v2823
      %v2825 = vmul.f32 %v208, %v2812
      %v2826 = vsub.f32 1.0, %v208
      %v2827 = vmul.f32 %v2826, %v2824
      %v2828 = vadd.f32 %v2825, %v2827
      %v2830 = vrot.slane %v2828, 2
      %v2832 = vmul.f32 %v208, %v2830
      %v2833 = vmul.f32 %v208, %v2807
      %v2834 = vmul.f32 %v2833, %v2812
      %v2835 = vmul.f32 %v2826, %v2819
      %v2836 = vmul.f32 %v2835, %v2824
      %v2837 = vadd.f32 %v2834, %v2836
      %v2839 = vrot.slane %v2837, 2
      %v2841 = vmul.f32 %v208, %v2839
      %v2843 = vrot.slane %v2841, 7
      %v2845 = vsub.f32 %v208, %v2843
      %v2846 = vlaneseq
      %v2847 = vshrl.u32 %v2846, 7
      %v2848 = vsub.s32 0, %v2847
      %v2849 = vrot.slane %v2832, %v2848
      %v2850 = vmul.f32 %v2605, %v2849
      %v2851 = vmul.f32 %v2606, %v2849
      %v2852 = vmul.f32 %v2607, %v2849
      %v2853 = vmul.f32 %v2608, %v2849
      %v2854 = vmul.f32 %v2609, %v2849
      %v2855 = vmul.f32 %v2610, %v2849
      %v2856 = vmul.f32 %v2611, %v2849
      %v2857 = vmul.f32 %v2612, %v2849
      %v2858 = vmul.f32 %v2613, %v2849
      %v2859 = vmul.f32 %v2614, %v2849
      %v2860 = vmul.f32 %v2615, %v2849
      %v2861 = vmul.f32 %v2616, %v2849
      %v2862 = vmul.f32 %v2617, %v2849
      %v2863 = vmul.f32 %v2618, %v2849
      %v2864 = vmul.f32 %v2619, %v2849
      %v2865 = vmul.f32 %v2620, %v2849
      %v2866 = vmul.f32 %v2621, %v2849
      %v2867 = vmul.f32 %v2622, %v2849
      %v2868 = vmul.f32 %v2623, %v2849
      %v2869 = vmul.f32 %v2624, %v2849
      %v2870 = vmul.f32 %v2625, %v2849
      %v2871 = vmul.f32 %v2626, %v2849
      %v2872 = vmul.f32 %v2627, %v2849
      %v2873 = vmul.f32 %v2628, %v2849
      %v2874 = vmul.f32 %v2629, %v2849
      %v2875 = vmul.f32 %v2630, %v2849
      %v2876 = vmul.f32 %v2631, %v2849
      %v2877 = vmul.f32 %v2632, %v2849
      %v2878 = vmul.f32 %v2633, %v2849
      %v2879 = vmul.f32 %v2634, %v2849
      %v2880 = vmul.f32 %v2635, %v2849
      %v2881 = vmul.f32 %v2636, %v2849
      %v2882 = vlaneseq
      %v2883 = vshrl.u32 %v2882, 7
      %v2884 = vsub.s32 1, %v2883
      %v2885 = vrot.slane %v2845, %v2884
      %v2886 = vadd.f32 %v2850, %v2885
      %v2887 = vadd.f32 %v2851, %v2885
      %v2888 = vadd.f32 %v2852, %v2885
      %v2889 = vadd.f32 %v2853, %v2885
      %v2890 = vadd.f32 %v2854, %v2885
      %v2891 = vadd.f32 %v2855, %v2885
      %v2892 = vadd.f32 %v2856, %v2885
      %v2893 = vadd.f32 %v2857, %v2885
      %v2894 = vadd.f32 %v2858, %v2885
      %v2895 = vadd.f32 %v2859, %v2885
      %v2896 = vadd.f32 %v2860, %v2885
      %v2897 = vadd.f32 %v2861, %v2885
      %v2898 = vadd.f32 %v2862, %v2885
      %v2899 = vadd.f32 %v2863, %v2885
      %v2900 = vadd.f32 %v2864, %v2885
      %v2901 = vadd.f32 %v2865, %v2885
      %v2902 = vadd.f32 %v2866, %v2885
      %v2903 = vadd.f32 %v2867, %v2885
      %v2904 = vadd.f32 %v2868, %v2885
      %v2905 = vadd.f32 %v2869, %v2885
      %v2906 = vadd.f32 %v2870, %v2885
      %v2907 = vadd.f32 %v2871, %v2885
      %v2908 = vadd.f32 %v2872, %v2885
      %v2909 = vadd.f32 %v2873, %v2885
      %v2910 = vadd.f32 %v2874, %v2885
      %v2911 = vadd.f32 %v2875, %v2885
      %v2912 = vadd.f32 %v2876, %v2885
      %v2913 = vadd.f32 %v2877, %v2885
      %v2914 = vadd.f32 %v2878, %v2885
      %v2915 = vadd.f32 %v2879, %v2885
      %v2916 = vadd.f32 %v2880, %v2885
      %v2917 = vadd.f32 %v2881, %v2885
      %v2918 = vmax.f32 %v2886, 0.0
      %v2919 = vmax.f32 %v2887, 0.0
      %v2920 = vmax.f32 %v2888, 0.0
      %v2921 = vmax.f32 %v2889, 0.0
      %v2922 = vmax.f32 %v2890, 0.0
      %v2923 = vmax.f32 %v2891, 0.0
      %v2924 = vmax.f32 %v2892, 0.0
      %v2925 = vmax.f32 %v2893, 0.0
      %v2926 = vmax.f32 %v2894, 0.0
      %v2927 = vmax.f32 %v2895, 0.0
      %v2928 = vmax.f32 %v2896, 0.0
      %v2929 = vmax.f32 %v2897, 0.0
      %v2930 = vmax.f32 %v2898, 0.0
      %v2931 = vmax.f32 %v2899, 0.0
      %v2932 = vmax.f32 %v2900, 0.0
      %v2933 = vmax.f32 %v2901, 0.0
      %v2934 = vmax.f32 %v2902, 0.0
      %v2935 = vmax.f32 %v2903, 0.0
      %v2936 = vmax.f32 %v2904, 0.0
      %v2937 = vmax.f32 %v2905, 0.0
      %v2938 = vmax.f32 %v2906, 0.0
      %v2939 = vmax.f32 %v2907, 0.0
      %v2940 = vmax.f32 %v2908, 0.0
      %v2941 = vmax.f32 %v2909, 0.0
      %v2942 = vmax.f32 %v2910, 0.0
      %v2943 = vmax.f32 %v2911, 0.0
      %v2944 = vmax.f32 %v2912, 0.0
      %v2945 = vmax.f32 %v2913, 0.0
      %v2946 = vmax.f32 %v2914, 0.0
      %v2947 = vmax.f32 %v2915, 0.0
      %v2948 = vmax.f32 %v2916, 0.0
      %v2949 = vmax.f32 %v2917, 0.0
      %v2966 = vrot.slane %v2920, 1
      %v2967 = vrot.slane %v2918, 1
      %v2968 = vrot.slane %v2922, 1
      %v2969 = vrot.slane %v2924, 1
      %v2970 = vrot.slane %v2926, 1
      %v2971 = vrot.slane %v2928, 1
      %v2972 = vrot.slane %v2930, 1
      %v2973 = vrot.slane %v2932, 1
      %v2974 = vrot.slane %v2934, 1
      %v2975 = vrot.slane %v2936, 1
      %v2976 = vrot.slane %v2938, 1
      %v2977 = vrot.slane %v2940, 1
      %v2978 = vrot.slane %v2942, 1
      %v2979 = vrot.slane %v2944, 1
      %v2980 = vrot.slane %v2946, 1
      %v2981 = vrot.slane %v2948, 1
      %v3014 = vrot.slane %v2920, 7
      %v3015 = vrot.slane %v2921, 7
      %v3016 = vsel %vm340, %v3014, %v3015
      %v3017 = vrot.slane %v2918, 7
      %v3018 = vrot.slane %v2919, 7
      %v3019 = vsel %vm340, %v3017, %v3018
      %v3020 = vrot.slane %v2922, 7
      %v3021 = vrot.slane %v2923, 7
      %v3022 = vsel %vm340, %v3020, %v3021
      %v3023 = vrot.slane %v2924, 7
      %v3024 = vrot.slane %v2925, 7
      %v3025 = vsel %vm340, %v3023, %v3024
      %v3026 = vrot.slane %v2926, 7
      %v3027 = vrot.slane %v2927, 7
      %v3028 = vsel %vm340, %v3026, %v3027
      %v3029 = vrot.slane %v2928, 7
      %v3030 = vrot.slane %v2929, 7
      %v3031 = vsel %vm340, %v3029, %v3030
      %v3032 = vrot.slane %v2930, 7
      %v3033 = vrot.slane %v2931, 7
      %v3034 = vsel %vm340, %v3032, %v3033
      %v3035 = vrot.slane %v2932, 7
      %v3036 = vrot.slane %v2933, 7
      %v3037 = vsel %vm340, %v3035, %v3036
      %v3038 = vrot.slane %v2934, 7
      %v3039 = vrot.slane %v2935, 7
      %v3040 = vsel %vm340, %v3038, %v3039
      %v3041 = vrot.slane %v2936, 7
      %v3042 = vrot.slane %v2937, 7
      %v3043 = vsel %vm340, %v3041, %v3042
      %v3044 = vrot.slane %v2938, 7
      %v3045 = vrot.slane %v2939, 7
      %v3046 = vsel %vm340, %v3044, %v3045
      %v3047 = vrot.slane %v2940, 7
      %v3048 = vrot.slane %v2941, 7
      %v3049 = vsel %vm340, %v3047, %v3048
      %v3050 = vrot.slane %v2942, 7
      %v3051 = vrot.slane %v2943, 7
      %v3052 = vsel %vm340, %v3050, %v3051
      %v3053 = vrot.slane %v2944, 7
      %v3054 = vrot.slane %v2945, 7
      %v3055 = vsel %vm340, %v3053, %v3054
      %v3056 = vrot.slane %v2946, 7
      %v3057 = vrot.slane %v2947, 7
      %v3058 = vsel %vm340, %v3056, %v3057
      %v3059 = vrot.slane %v2948, 7
      %v3060 = vrot.slane %v2949, 7
      %v3061 = vsel %vm340, %v3059, %v3060
      %v3110 = vrot.slane %v2921, 5
      %v3111 = vrot.slane %v2919, 5
      %v3112 = vrot.slane %v2923, 5
      %v3113 = vrot.slane %v2925, 5
      %v3114 = vrot.slane %v2927, 5
      %v3115 = vrot.slane %v2929, 5
      %v3116 = vrot.slane %v2931, 5
      %v3117 = vrot.slane %v2933, 5
      %v3118 = vrot.slane %v2935, 5
      %v3119 = vrot.slane %v2937, 5
      %v3120 = vrot.slane %v2939, 5
      %v3121 = vrot.slane %v2941, 5
      %v3122 = vrot.slane %v2943, 5
      %v3123 = vrot.slane %v2945, 5
      %v3124 = vrot.slane %v2947, 5
      %v3125 = vrot.slane %v2949, 5
      %v3142 = vsel %vm340, %v2966, %v3014
      %v3143 = vsel %vm340, %v2967, %v3017
      %v3144 = vsel %vm340, %v2968, %v3020
      %v3145 = vsel %vm340, %v2969, %v3023
      %v3146 = vsel %vm340, %v2970, %v3026
      %v3147 = vsel %vm340, %v2971, %v3029
      %v3148 = vsel %vm340, %v2972, %v3032
      %v3149 = vsel %vm340, %v2973, %v3035
      %v3150 = vsel %vm340, %v2974, %v3038
      %v3151 = vsel %vm340, %v2975, %v3041
      %v3152 = vsel %vm340, %v2976, %v3044
      %v3153 = vsel %vm340, %v2977, %v3047
      %v3154 = vsel %vm340, %v2978, %v3050
      %v3155 = vsel %vm340, %v2979, %v3053
      %v3156 = vsel %vm340, %v2980, %v3056
      %v3157 = vsel %vm340, %v2981, %v3059
      %v3158 = vsel %vm340, %v3015, %v3110
      %v3159 = vsel %vm340, %v3018, %v3111
      %v3160 = vsel %vm340, %v3021, %v3112
      %v3161 = vsel %vm340, %v3024, %v3113
      %v3162 = vsel %vm340, %v3027, %v3114
      %v3163 = vsel %vm340, %v3030, %v3115
      %v3164 = vsel %vm340, %v3033, %v3116
      %v3165 = vsel %vm340, %v3036, %v3117
      %v3166 = vsel %vm340, %v3039, %v3118
      %v3167 = vsel %vm340, %v3042, %v3119
      %v3168 = vsel %vm340, %v3045, %v3120
      %v3169 = vsel %vm340, %v3048, %v3121
      %v3170 = vsel %vm340, %v3051, %v3122
      %v3171 = vsel %vm340, %v3054, %v3123
      %v3172 = vsel %vm340, %v3057, %v3124
      %v3173 = vsel %vm340, %v3060, %v3125
      %v3174 = vpack.c.bf16 %v3016, %v3142
      %v3175 = vpack.c.bf16 %v3158, %v3158
      %v3176 = vpack.c.bf16 %v3019, %v3143
      %v3177 = vpack.c.bf16 %v3159, %v3159
      %v3178 = vpack.c.bf16 %v3022, %v3144
      %v3179 = vpack.c.bf16 %v3160, %v3160
      %v3180 = vpack.c.bf16 %v3025, %v3145
      %v3181 = vpack.c.bf16 %v3161, %v3161
      %v3182 = vpack.c.bf16 %v3028, %v3146
      %v3183 = vpack.c.bf16 %v3162, %v3162
      %v3184 = vpack.c.bf16 %v3031, %v3147
      %v3185 = vpack.c.bf16 %v3163, %v3163
      %v3186 = vpack.c.bf16 %v3034, %v3148
      %v3187 = vpack.c.bf16 %v3164, %v3164
      %v3188 = vpack.c.bf16 %v3037, %v3149
      %v3189 = vpack.c.bf16 %v3165, %v3165
      %v3190 = vpack.c.bf16 %v3040, %v3150
      %v3191 = vpack.c.bf16 %v3166, %v3166
      %v3192 = vpack.c.bf16 %v3043, %v3151
      %v3193 = vpack.c.bf16 %v3167, %v3167
      %v3194 = vpack.c.bf16 %v3046, %v3152
      %v3195 = vpack.c.bf16 %v3168, %v3168
      %v3196 = vpack.c.bf16 %v3049, %v3153
      %v3197 = vpack.c.bf16 %v3169, %v3169
      %v3198 = vpack.c.bf16 %v3052, %v3154
      %v3199 = vpack.c.bf16 %v3170, %v3170
      %v3200 = vpack.c.bf16 %v3055, %v3155
      %v3201 = vpack.c.bf16 %v3171, %v3171
      %v3202 = vpack.c.bf16 %v3058, %v3156
      %v3203 = vpack.c.bf16 %v3172, %v3172
      %v3204 = vpack.c.bf16 %v3061, %v3157
      %v3205 = vpack.c.bf16 %v3173, %v3173
      %v3207 = vsel %vm533, %v3176, 0
      %v3210 = vsel %vm533, %v3174, 0
      %v3213 = vsel %vm533, %v3178, 0
      %v3216 = vsel %vm533, %v3180, 0
      %v3219 = vsel %vm533, %v3182, 0
      %v3222 = vsel %vm533, %v3184, 0
      %v3225 = vsel %vm533, %v3186, 0
      %v3228 = vsel %vm533, %v3188, 0
      %v3231 = vsel %vm533, %v3190, 0
      %v3234 = vsel %vm533, %v3192, 0
      %v3237 = vsel %vm533, %v3194, 0
      %v3240 = vsel %vm533, %v3196, 0
      %v3243 = vsel %vm533, %v3198, 0
      %v3246 = vsel %vm533, %v3200, 0
      %v3249 = vsel %vm533, %v3202, 0
      %v3252 = vsel %vm533, %v3204, 0
      %v3255 = vsel %vm582, %v202, 0
      %3257 = vmatprep.subr.bf16.mxu0 0
      %3258 = vmatpush1.bf16.msra.mxu0 %v3255
      %3259 = vmatprep.subr.bf16.mxu0 0
      %3260 = vmatpush1.bf16.msra.mxu0 0
      %3261 = vmatprep.subr.bf16.mxu0 0
      %3262 = vmatpush1.bf16.msra.mxu0 0
      %3263 = vmatprep.subr.bf16.mxu0 0
      %3264 = vmatpush1.bf16.msra.mxu0 0
      %3265 = vmatprep.subr.bf16.mxu0 0
      %3266 = vmatpush1.bf16.msra.mxu0 0
      %3267 = vmatprep.subr.bf16.mxu0 0
      %3268 = vmatpush1.bf16.msra.mxu0 0
      %3269 = vmatprep.subr.bf16.mxu0 0
      %3270 = vmatpush1.bf16.msra.mxu0 0
      %3271 = vmatprep.subr.bf16.mxu0 0
      %3272 = vmatpush1.bf16.msra.mxu0 0
      %3273 = vmatprep.subr.bf16.mxu0 0
      %3274 = vmatpush1.bf16.msra.mxu0 0
      %3275 = vmatprep.subr.bf16.mxu0 0
      %3276 = vmatpush1.bf16.msra.mxu0 0
      %3277 = vmatprep.subr.bf16.mxu0 0
      %3278 = vmatpush1.bf16.msra.mxu0 0
      %3279 = vmatprep.subr.bf16.mxu0 0
      %3280 = vmatpush1.bf16.msra.mxu0 0
      %3281 = vmatprep.subr.bf16.mxu0 0
      %3282 = vmatpush1.bf16.msra.mxu0 0
      %3283 = vmatprep.subr.bf16.mxu0 0
      %3284 = vmatpush1.bf16.msra.mxu0 0
      %3285 = vmatprep.subr.bf16.mxu0 0
      %3286 = vmatpush1.bf16.msra.mxu0 0
      %3287 = vmatprep.subr.bf16.mxu0 0
      %3288 = vmatpush1.bf16.msra.mxu0 0
      %3289 = vmatprep.mubr.bf16.mxu0 0
      %3290 = vmatmul.mubr.bf16.gmra.mrb[0].mxu0 %v3207
      %v3291 = vpop.f32.mrb[0].mxu0
      %v3292 = vadd.f32 0.0, %v3291
      %v3293 = vpop.f32.mrb[0].mxu0
      %v3294 = vpop.f32.mrb[0].mxu0
      %v3295 = vadd.f32 0.0, %v3294
      %v3296 = vpop.f32.mrb[0].mxu0
      %3297 = vmatprep.mubr.bf16.mxu0 0
      %3298 = vmatmul.mubr.bf16.gmra.mrb[0].mxu0 %v3210
      %v3299 = vpop.f32.mrb[0].mxu0
      %v3300 = vadd.f32 0.0, %v3299
      %v3301 = vpop.f32.mrb[0].mxu0
      %v3302 = vpop.f32.mrb[0].mxu0
      %v3303 = vadd.f32 0.0, %v3302
      %v3304 = vpop.f32.mrb[0].mxu0
      %3305 = vmatprep.mubr.bf16.mxu0 0
      %3306 = vmatmul.mubr.bf16.gmra.mrb[0].mxu0 %v3213
      %v3307 = vpop.f32.mrb[0].mxu0
      %v3308 = vadd.f32 0.0, %v3307
      %v3309 = vpop.f32.mrb[0].mxu0
      %v3310 = vpop.f32.mrb[0].mxu0
      %v3311 = vadd.f32 0.0, %v3310
      %v3312 = vpop.f32.mrb[0].mxu0
      %3313 = vmatprep.mubr.bf16.mxu0 0
      %3314 = vmatmul.mubr.bf16.gmra.mrb[0].mxu0 %v3216
      %v3315 = vpop.f32.mrb[0].mxu0
      %v3316 = vadd.f32 0.0, %v3315
      %v3317 = vpop.f32.mrb[0].mxu0
      %v3318 = vpop.f32.mrb[0].mxu0
      %v3319 = vadd.f32 0.0, %v3318
      %v3320 = vpop.f32.mrb[0].mxu0
      %3321 = vmatprep.mubr.bf16.mxu0 0
      %3322 = vmatmul.mubr.bf16.gmra.mrb[0].mxu0 %v3219
      %v3323 = vpop.f32.mrb[0].mxu0
      %v3324 = vadd.f32 0.0, %v3323
      %v3325 = vpop.f32.mrb[0].mxu0
      %v3326 = vpop.f32.mrb[0].mxu0
      %v3327 = vadd.f32 0.0, %v3326
      %v3328 = vpop.f32.mrb[0].mxu0
      %3329 = vmatprep.mubr.bf16.mxu0 0
      %3330 = vmatmul.mubr.bf16.gmra.mrb[0].mxu0 %v3222
      %v3331 = vpop.f32.mrb[0].mxu0
      %v3332 = vadd.f32 0.0, %v3331
      %v3333 = vpop.f32.mrb[0].mxu0
      %v3334 = vpop.f32.mrb[0].mxu0
      %v3335 = vadd.f32 0.0, %v3334
      %v3336 = vpop.f32.mrb[0].mxu0
      %3337 = vmatprep.mubr.bf16.mxu0 0
      %3338 = vmatmul.mubr.bf16.gmra.mrb[0].mxu0 %v3225
      %v3339 = vpop.f32.mrb[0].mxu0
      %v3340 = vadd.f32 0.0, %v3339
      %v3341 = vpop.f32.mrb[0].mxu0
      %v3342 = vpop.f32.mrb[0].mxu0
      %v3343 = vadd.f32 0.0, %v3342
      %v3344 = vpop.f32.mrb[0].mxu0
      %3345 = vmatprep.mubr.bf16.mxu0 0
      %3346 = vmatmul.mubr.bf16.gmra.mrb[0].mxu0 %v3228
      %v3347 = vpop.f32.mrb[0].mxu0
      %v3348 = vadd.f32 0.0, %v3347
      %v3349 = vpop.f32.mrb[0].mxu0
      %v3350 = vpop.f32.mrb[0].mxu0
      %v3351 = vadd.f32 0.0, %v3350
      %v3352 = vpop.f32.mrb[0].mxu0
      %3353 = vmatprep.mubr.bf16.mxu0 0
      %3354 = vmatmul.mubr.bf16.gmra.mrb[0].mxu0 %v3231
      %v3355 = vpop.f32.mrb[0].mxu0
      %v3356 = vadd.f32 0.0, %v3355
      %v3357 = vpop.f32.mrb[0].mxu0
      %v3358 = vpop.f32.mrb[0].mxu0
      %v3359 = vadd.f32 0.0, %v3358
      %v3360 = vpop.f32.mrb[0].mxu0
      %3361 = vmatprep.mubr.bf16.mxu0 0
      %3362 = vmatmul.mubr.bf16.gmra.mrb[0].mxu0 %v3234
      %v3363 = vpop.f32.mrb[0].mxu0
      %v3364 = vadd.f32 0.0, %v3363
      %v3365 = vpop.f32.mrb[0].mxu0
      %v3366 = vpop.f32.mrb[0].mxu0
      %v3367 = vadd.f32 0.0, %v3366
      %v3368 = vpop.f32.mrb[0].mxu0
      %3369 = vmatprep.mubr.bf16.mxu0 0
      %3370 = vmatmul.mubr.bf16.gmra.mrb[0].mxu0 %v3237
      %v3371 = vpop.f32.mrb[0].mxu0
      %v3372 = vadd.f32 0.0, %v3371
      %v3373 = vpop.f32.mrb[0].mxu0
      %v3374 = vpop.f32.mrb[0].mxu0
      %v3375 = vadd.f32 0.0, %v3374
      %v3376 = vpop.f32.mrb[0].mxu0
      %3377 = vmatprep.mubr.bf16.mxu0 0
      %3378 = vmatmul.mubr.bf16.gmra.mrb[0].mxu0 %v3240
      %v3379 = vpop.f32.mrb[0].mxu0
      %v3380 = vadd.f32 0.0, %v3379
      %v3381 = vpop.f32.mrb[0].mxu0
      %v3382 = vpop.f32.mrb[0].mxu0
      %v3383 = vadd.f32 0.0, %v3382
      %v3384 = vpop.f32.mrb[0].mxu0
      %3385 = vmatprep.mubr.bf16.mxu0 0
      %3386 = vmatmul.mubr.bf16.gmra.mrb[0].mxu0 %v3243
      %v3387 = vpop.f32.mrb[0].mxu0
      %v3388 = vadd.f32 0.0, %v3387
      %v3389 = vpop.f32.mrb[0].mxu0
      %v3390 = vpop.f32.mrb[0].mxu0
      %v3391 = vadd.f32 0.0, %v3390
      %v3392 = vpop.f32.mrb[0].mxu0
      %3393 = vmatprep.mubr.bf16.mxu0 0
      %3394 = vmatmul.mubr.bf16.gmra.mrb[0].mxu0 %v3246
      %v3395 = vpop.f32.mrb[0].mxu0
      %v3396 = vadd.f32 0.0, %v3395
      %v3397 = vpop.f32.mrb[0].mxu0
      %v3398 = vpop.f32.mrb[0].mxu0
      %v3399 = vadd.f32 0.0, %v3398
      %v3400 = vpop.f32.mrb[0].mxu0
      %3401 = vmatprep.mubr.bf16.mxu0 0
      %3402 = vmatmul.mubr.bf16.gmra.mrb[0].mxu0 %v3249
      %v3403 = vpop.f32.mrb[0].mxu0
      %v3404 = vadd.f32 0.0, %v3403
      %v3405 = vpop.f32.mrb[0].mxu0
      %v3406 = vpop.f32.mrb[0].mxu0
      %v3407 = vadd.f32 0.0, %v3406
      %v3408 = vpop.f32.mrb[0].mxu0
      %3409 = vmatprep.mubr.bf16.mxu0 0
      %3410 = vmatmul.mubr.bf16.gmra.mrb[0].mxu0 %v3252
      %v3411 = vpop.f32.mrb[0].mxu0
      %v3412 = vadd.f32 0.0, %v3411
      %v3413 = vpop.f32.mrb[0].mxu0
      %v3414 = vpop.f32.mrb[0].mxu0
      %v3415 = vadd.f32 0.0, %v3414
      %v3416 = vpop.f32.mrb[0].mxu0
      %3417 = vdwg.mxu0
      %v3419 = vsel %vm582, %v199, 0
      %3421 = vmatprep.subr.bf16.mxu0 0
      %3422 = vmatpush1.bf16.msra.mxu0 %v3419
      %3423 = vmatprep.subr.bf16.mxu0 0
      %3424 = vmatpush1.bf16.msra.mxu0 0
      %3425 = vmatprep.subr.bf16.mxu0 0
      %3426 = vmatpush1.bf16.msra.mxu0 0
      %3427 = vmatprep.subr.bf16.mxu0 0
      %3428 = vmatpush1.bf16.msra.mxu0 0
      %3429 = vmatprep.subr.bf16.mxu0 0
      %3430 = vmatpush1.bf16.msra.mxu0 0
      %3431 = vmatprep.subr.bf16.mxu0 0
      %3432 = vmatpush1.bf16.msra.mxu0 0
      %3433 = vmatprep.subr.bf16.mxu0 0
      %3434 = vmatpush1.bf16.msra.mxu0 0
      %3435 = vmatprep.subr.bf16.mxu0 0
      %3436 = vmatpush1.bf16.msra.mxu0 0
      %3437 = vmatprep.subr.bf16.mxu0 0
      %3438 = vmatpush1.bf16.msra.mxu0 0
      %3439 = vmatprep.subr.bf16.mxu0 0
      %3440 = vmatpush1.bf16.msra.mxu0 0
      %3441 = vmatprep.subr.bf16.mxu0 0
      %3442 = vmatpush1.bf16.msra.mxu0 0
      %3443 = vmatprep.subr.bf16.mxu0 0
      %3444 = vmatpush1.bf16.msra.mxu0 0
      %3445 = vmatprep.subr.bf16.mxu0 0
      %3446 = vmatpush1.bf16.msra.mxu0 0
      %3447 = vmatprep.subr.bf16.mxu0 0
      %3448 = vmatpush1.bf16.msra.mxu0 0
      %3449 = vmatprep.subr.bf16.mxu0 0
      %3450 = vmatpush1.bf16.msra.mxu0 0
      %3451 = vmatprep.subr.bf16.mxu0 0
      %3452 = vmatpush1.bf16.msra.mxu0 0
      %3453 = vmatprep.mubr.bf16.mxu0 0
      %3454 = vmatmul.mubr.bf16.gmra.mrb[0].mxu0 %v3210
      %v3455 = vpop.f32.mrb[0].mxu0
      %v3456 = vadd.f32 %v3292, %v3455
      %v3457 = vpop.f32.mrb[0].mxu0
      %v3458 = vpop.f32.mrb[0].mxu0
      %v3459 = vadd.f32 %v3295, %v3458
      %v3460 = vpop.f32.mrb[0].mxu0
      %3461 = vmatprep.mubr.bf16.mxu0 0
      %3462 = vmatmul.mubr.bf16.gmra.mrb[0].mxu0 %v3207
      %v3463 = vpop.f32.mrb[0].mxu0
      %v3464 = vadd.f32 %v3300, %v3463
      %v3465 = vpop.f32.mrb[0].mxu0
      %v3466 = vpop.f32.mrb[0].mxu0
      %v3467 = vadd.f32 %v3303, %v3466
      %v3468 = vpop.f32.mrb[0].mxu0
      %3469 = vmatprep.mubr.bf16.mxu0 0
      %3470 = vmatmul.mubr.bf16.gmra.mrb[0].mxu0 %v3210
      %v3471 = vpop.f32.mrb[0].mxu0
      %v3472 = vadd.f32 %v3308, %v3471
      %v3473 = vpop.f32.mrb[0].mxu0
      %v3474 = vpop.f32.mrb[0].mxu0
      %v3475 = vadd.f32 %v3311, %v3474
      %v3476 = vpop.f32.mrb[0].mxu0
      %3477 = vmatprep.mubr.bf16.mxu0 0
      %3478 = vmatmul.mubr.bf16.gmra.mrb[0].mxu0 %v3213
      %v3479 = vpop.f32.mrb[0].mxu0
      %v3480 = vadd.f32 %v3316, %v3479
      %v3481 = vpop.f32.mrb[0].mxu0
      %v3482 = vpop.f32.mrb[0].mxu0
      %v3483 = vadd.f32 %v3319, %v3482
      %v3484 = vpop.f32.mrb[0].mxu0
      %3485 = vmatprep.mubr.bf16.mxu0 0
      %3486 = vmatmul.mubr.bf16.gmra.mrb[0].mxu0 %v3216
      %v3487 = vpop.f32.mrb[0].mxu0
      %v3488 = vadd.f32 %v3324, %v3487
      %v3489 = vpop.f32.mrb[0].mxu0
      %v3490 = vpop.f32.mrb[0].mxu0
      %v3491 = vadd.f32 %v3327, %v3490
      %v3492 = vpop.f32.mrb[0].mxu0
      %3493 = vmatprep.mubr.bf16.mxu0 0
      %3494 = vmatmul.mubr.bf16.gmra.mrb[0].mxu0 %v3219
      %v3495 = vpop.f32.mrb[0].mxu0
      %v3496 = vadd.f32 %v3332, %v3495
      %v3497 = vpop.f32.mrb[0].mxu0
      %v3498 = vpop.f32.mrb[0].mxu0
      %v3499 = vadd.f32 %v3335, %v3498
      %v3500 = vpop.f32.mrb[0].mxu0
      %3501 = vmatprep.mubr.bf16.mxu0 0
      %3502 = vmatmul.mubr.bf16.gmra.mrb[0].mxu0 %v3222
      %v3503 = vpop.f32.mrb[0].mxu0
      %v3504 = vadd.f32 %v3340, %v3503
      %v3505 = vpop.f32.mrb[0].mxu0
      %v3506 = vpop.f32.mrb[0].mxu0
      %v3507 = vadd.f32 %v3343, %v3506
      %v3508 = vpop.f32.mrb[0].mxu0
      %3509 = vmatprep.mubr.bf16.mxu0 0
      %3510 = vmatmul.mubr.bf16.gmra.mrb[0].mxu0 %v3225
      %v3511 = vpop.f32.mrb[0].mxu0
      %v3512 = vadd.f32 %v3348, %v3511
      %v3513 = vpop.f32.mrb[0].mxu0
      %v3514 = vpop.f32.mrb[0].mxu0
      %v3515 = vadd.f32 %v3351, %v3514
      %v3516 = vpop.f32.mrb[0].mxu0
      %3517 = vmatprep.mubr.bf16.mxu0 0
      %3518 = vmatmul.mubr.bf16.gmra.mrb[0].mxu0 %v3228
      %v3519 = vpop.f32.mrb[0].mxu0
      %v3520 = vadd.f32 %v3356, %v3519
      %v3521 = vpop.f32.mrb[0].mxu0
      %v3522 = vpop.f32.mrb[0].mxu0
      %v3523 = vadd.f32 %v3359, %v3522
      %v3524 = vpop.f32.mrb[0].mxu0
      %3525 = vmatprep.mubr.bf16.mxu0 0
      %3526 = vmatmul.mubr.bf16.gmra.mrb[0].mxu0 %v3231
      %v3527 = vpop.f32.mrb[0].mxu0
      %v3528 = vadd.f32 %v3364, %v3527
      %v3529 = vpop.f32.mrb[0].mxu0
      %v3530 = vpop.f32.mrb[0].mxu0
      %v3531 = vadd.f32 %v3367, %v3530
      %v3532 = vpop.f32.mrb[0].mxu0
      %3533 = vmatprep.mubr.bf16.mxu0 0
      %3534 = vmatmul.mubr.bf16.gmra.mrb[0].mxu0 %v3234
      %v3535 = vpop.f32.mrb[0].mxu0
      %v3536 = vadd.f32 %v3372, %v3535
      %v3537 = vpop.f32.mrb[0].mxu0
      %v3538 = vpop.f32.mrb[0].mxu0
      %v3539 = vadd.f32 %v3375, %v3538
      %v3540 = vpop.f32.mrb[0].mxu0
      %3541 = vmatprep.mubr.bf16.mxu0 0
      %3542 = vmatmul.mubr.bf16.gmra.mrb[0].mxu0 %v3237
      %v3543 = vpop.f32.mrb[0].mxu0
      %v3544 = vadd.f32 %v3380, %v3543
      %v3545 = vpop.f32.mrb[0].mxu0
      %v3546 = vpop.f32.mrb[0].mxu0
      %v3547 = vadd.f32 %v3383, %v3546
      %v3548 = vpop.f32.mrb[0].mxu0
      %3549 = vmatprep.mubr.bf16.mxu0 0
      %3550 = vmatmul.mubr.bf16.gmra.mrb[0].mxu0 %v3240
      %v3551 = vpop.f32.mrb[0].mxu0
      %v3552 = vadd.f32 %v3388, %v3551
      %v3553 = vpop.f32.mrb[0].mxu0
      %v3554 = vpop.f32.mrb[0].mxu0
      %v3555 = vadd.f32 %v3391, %v3554
      %v3556 = vpop.f32.mrb[0].mxu0
      %3557 = vmatprep.mubr.bf16.mxu0 0
      %3558 = vmatmul.mubr.bf16.gmra.mrb[0].mxu0 %v3243
      %v3559 = vpop.f32.mrb[0].mxu0
      %v3560 = vadd.f32 %v3396, %v3559
      %v3561 = vpop.f32.mrb[0].mxu0
      %v3562 = vpop.f32.mrb[0].mxu0
      %v3563 = vadd.f32 %v3399, %v3562
      %v3564 = vpop.f32.mrb[0].mxu0
      %3565 = vmatprep.mubr.bf16.mxu0 0
      %3566 = vmatmul.mubr.bf16.gmra.mrb[0].mxu0 %v3246
      %v3567 = vpop.f32.mrb[0].mxu0
      %v3568 = vadd.f32 %v3404, %v3567
      %v3569 = vpop.f32.mrb[0].mxu0
      %v3570 = vpop.f32.mrb[0].mxu0
      %v3571 = vadd.f32 %v3407, %v3570
      %v3572 = vpop.f32.mrb[0].mxu0
      %3573 = vmatprep.mubr.bf16.mxu0 0
      %3574 = vmatmul.mubr.bf16.gmra.mrb[0].mxu0 %v3249
      %v3575 = vpop.f32.mrb[0].mxu0
      %v3576 = vadd.f32 %v3412, %v3575
      %v3577 = vpop.f32.mrb[0].mxu0
      %v3578 = vpop.f32.mrb[0].mxu0
      %v3579 = vadd.f32 %v3415, %v3578
      %v3580 = vpop.f32.mrb[0].mxu0
      %3581 = vdwg.mxu0
      %v3583 = vsel %vm582, %v205, 0
      %3585 = vmatprep.subr.bf16.mxu0 0
      %3586 = vmatpush1.bf16.msra.mxu0 %v3583
      %3587 = vmatprep.subr.bf16.mxu0 0
      %3588 = vmatpush1.bf16.msra.mxu0 0
      %3589 = vmatprep.subr.bf16.mxu0 0
      %3590 = vmatpush1.bf16.msra.mxu0 0
      %3591 = vmatprep.subr.bf16.mxu0 0
      %3592 = vmatpush1.bf16.msra.mxu0 0
      %3593 = vmatprep.subr.bf16.mxu0 0
      %3594 = vmatpush1.bf16.msra.mxu0 0
      %3595 = vmatprep.subr.bf16.mxu0 0
      %3596 = vmatpush1.bf16.msra.mxu0 0
      %3597 = vmatprep.subr.bf16.mxu0 0
      %3598 = vmatpush1.bf16.msra.mxu0 0
      %3599 = vmatprep.subr.bf16.mxu0 0
      %3600 = vmatpush1.bf16.msra.mxu0 0
      %3601 = vmatprep.subr.bf16.mxu0 0
      %3602 = vmatpush1.bf16.msra.mxu0 0
      %3603 = vmatprep.subr.bf16.mxu0 0
      %3604 = vmatpush1.bf16.msra.mxu0 0
      %3605 = vmatprep.subr.bf16.mxu0 0
      %3606 = vmatpush1.bf16.msra.mxu0 0
      %3607 = vmatprep.subr.bf16.mxu0 0
      %3608 = vmatpush1.bf16.msra.mxu0 0
      %3609 = vmatprep.subr.bf16.mxu0 0
      %3610 = vmatpush1.bf16.msra.mxu0 0
      %3611 = vmatprep.subr.bf16.mxu0 0
      %3612 = vmatpush1.bf16.msra.mxu0 0
      %3613 = vmatprep.subr.bf16.mxu0 0
      %3614 = vmatpush1.bf16.msra.mxu0 0
      %3615 = vmatprep.subr.bf16.mxu0 0
      %3616 = vmatpush1.bf16.msra.mxu0 0
      %3617 = vmatprep.mubr.bf16.mxu0 0
      %3618 = vmatmul.mubr.bf16.gmra.mrb[0].mxu0 %v3210
      %v3619 = vpop.f32.mrb[0].mxu0
      %v3620 = vadd.f32 0.0, %v3619
      %v3621 = vpop.f32.mrb[0].mxu0
      %v3622 = vpop.f32.mrb[0].mxu0
      %v3623 = vadd.f32 0.0, %v3622
      %v3624 = vpop.f32.mrb[0].mxu0
      %3625 = vmatprep.mubr.bf16.mxu0 0
      %3626 = vmatmul.mubr.bf16.gmra.mrb[0].mxu0 %v3213
      %v3627 = vpop.f32.mrb[0].mxu0
      %v3628 = vadd.f32 0.0, %v3627
      %v3629 = vpop.f32.mrb[0].mxu0
      %v3630 = vpop.f32.mrb[0].mxu0
      %v3631 = vadd.f32 0.0, %v3630
      %v3632 = vpop.f32.mrb[0].mxu0
      %3633 = vmatprep.mubr.bf16.mxu0 0
      %3634 = vmatmul.mubr.bf16.gmra.mrb[0].mxu0 %v3216
      %v3635 = vpop.f32.mrb[0].mxu0
      %v3636 = vadd.f32 0.0, %v3635
      %v3637 = vpop.f32.mrb[0].mxu0
      %v3638 = vpop.f32.mrb[0].mxu0
      %v3639 = vadd.f32 0.0, %v3638
      %v3640 = vpop.f32.mrb[0].mxu0
      %3641 = vmatprep.mubr.bf16.mxu0 0
      %3642 = vmatmul.mubr.bf16.gmra.mrb[0].mxu0 %v3219
      %v3643 = vpop.f32.mrb[0].mxu0
      %v3644 = vadd.f32 0.0, %v3643
      %v3645 = vpop.f32.mrb[0].mxu0
      %v3646 = vpop.f32.mrb[0].mxu0
      %v3647 = vadd.f32 0.0, %v3646
      %v3648 = vpop.f32.mrb[0].mxu0
      %3649 = vmatprep.mubr.bf16.mxu0 0
      %3650 = vmatmul.mubr.bf16.gmra.mrb[0].mxu0 %v3222
      %v3651 = vpop.f32.mrb[0].mxu0
      %v3652 = vadd.f32 0.0, %v3651
      %v3653 = vpop.f32.mrb[0].mxu0
      %v3654 = vpop.f32.mrb[0].mxu0
      %v3655 = vadd.f32 0.0, %v3654
      %v3656 = vpop.f32.mrb[0].mxu0
      %3657 = vmatprep.mubr.bf16.mxu0 0
      %3658 = vmatmul.mubr.bf16.gmra.mrb[0].mxu0 %v3225
      %v3659 = vpop.f32.mrb[0].mxu0
      %v3660 = vadd.f32 0.0, %v3659
      %v3661 = vpop.f32.mrb[0].mxu0
      %v3662 = vpop.f32.mrb[0].mxu0
      %v3663 = vadd.f32 0.0, %v3662
      %v3664 = vpop.f32.mrb[0].mxu0
      %3665 = vmatprep.mubr.bf16.mxu0 0
      %3666 = vmatmul.mubr.bf16.gmra.mrb[0].mxu0 %v3228
      %v3667 = vpop.f32.mrb[0].mxu0
      %v3668 = vadd.f32 0.0, %v3667
      %v3669 = vpop.f32.mrb[0].mxu0
      %v3670 = vpop.f32.mrb[0].mxu0
      %v3671 = vadd.f32 0.0, %v3670
      %v3672 = vpop.f32.mrb[0].mxu0
      %3673 = vmatprep.mubr.bf16.mxu0 0
      %3674 = vmatmul.mubr.bf16.gmra.mrb[0].mxu0 %v3231
      %v3675 = vpop.f32.mrb[0].mxu0
      %v3676 = vadd.f32 0.0, %v3675
      %v3677 = vpop.f32.mrb[0].mxu0
      %v3678 = vpop.f32.mrb[0].mxu0
      %v3679 = vadd.f32 0.0, %v3678
      %v3680 = vpop.f32.mrb[0].mxu0
      %3681 = vmatprep.mubr.bf16.mxu0 0
      %3682 = vmatmul.mubr.bf16.gmra.mrb[0].mxu0 %v3234
      %v3683 = vpop.f32.mrb[0].mxu0
      %v3684 = vadd.f32 0.0, %v3683
      %v3685 = vpop.f32.mrb[0].mxu0
      %v3686 = vpop.f32.mrb[0].mxu0
      %v3687 = vadd.f32 0.0, %v3686
      %v3688 = vpop.f32.mrb[0].mxu0
      %3689 = vmatprep.mubr.bf16.mxu0 0
      %3690 = vmatmul.mubr.bf16.gmra.mrb[0].mxu0 %v3237
      %v3691 = vpop.f32.mrb[0].mxu0
      %v3692 = vadd.f32 0.0, %v3691
      %v3693 = vpop.f32.mrb[0].mxu0
      %v3694 = vpop.f32.mrb[0].mxu0
      %v3695 = vadd.f32 0.0, %v3694
      %v3696 = vpop.f32.mrb[0].mxu0
      %3697 = vmatprep.mubr.bf16.mxu0 0
      %3698 = vmatmul.mubr.bf16.gmra.mrb[0].mxu0 %v3240
      %v3699 = vpop.f32.mrb[0].mxu0
      %v3700 = vadd.f32 0.0, %v3699
      %v3701 = vpop.f32.mrb[0].mxu0
      %v3702 = vpop.f32.mrb[0].mxu0
      %v3703 = vadd.f32 0.0, %v3702
      %v3704 = vpop.f32.mrb[0].mxu0
      %3705 = vmatprep.mubr.bf16.mxu0 0
      %3706 = vmatmul.mubr.bf16.gmra.mrb[0].mxu0 %v3243
      %v3707 = vpop.f32.mrb[0].mxu0
      %v3708 = vadd.f32 0.0, %v3707
      %v3709 = vpop.f32.mrb[0].mxu0
      %v3710 = vpop.f32.mrb[0].mxu0
      %v3711 = vadd.f32 0.0, %v3710
      %v3712 = vpop.f32.mrb[0].mxu0
      %3713 = vmatprep.mubr.bf16.mxu0 0
      %3714 = vmatmul.mubr.bf16.gmra.mrb[0].mxu0 %v3246
      %v3715 = vpop.f32.mrb[0].mxu0
      %v3716 = vadd.f32 0.0, %v3715
      %v3717 = vpop.f32.mrb[0].mxu0
      %v3718 = vpop.f32.mrb[0].mxu0
      %v3719 = vadd.f32 0.0, %v3718
      %v3720 = vpop.f32.mrb[0].mxu0
      %3721 = vmatprep.mubr.bf16.mxu0 0
      %3722 = vmatmul.mubr.bf16.gmra.mrb[0].mxu0 %v3249
      %v3723 = vpop.f32.mrb[0].mxu0
      %v3724 = vadd.f32 0.0, %v3723
      %v3725 = vpop.f32.mrb[0].mxu0
      %v3726 = vpop.f32.mrb[0].mxu0
      %v3727 = vadd.f32 0.0, %v3726
      %v3728 = vpop.f32.mrb[0].mxu0
      %3729 = vmatprep.mubr.bf16.mxu0 0
      %3730 = vmatmul.mubr.bf16.gmra.mrb[0].mxu0 %v3252
      %v3731 = vpop.f32.mrb[0].mxu0
      %v3732 = vadd.f32 0.0, %v3731
      %v3733 = vpop.f32.mrb[0].mxu0
      %v3734 = vpop.f32.mrb[0].mxu0
      %v3735 = vadd.f32 0.0, %v3734
      %v3736 = vpop.f32.mrb[0].mxu0
      %3737 = vmatprep.mubr.bf16.mxu0 0
      %3738 = vmatmul.mubr.bf16.gmra.mrb[0].mxu0 %v3249
      %v3739 = vpop.f32.mrb[0].mxu0
      %v3740 = vadd.f32 0.0, %v3739
      %v3741 = vpop.f32.mrb[0].mxu0
      %v3742 = vpop.f32.mrb[0].mxu0
      %v3743 = vadd.f32 0.0, %v3742
      %v3744 = vpop.f32.mrb[0].mxu0
      %3745 = vdwg.mxu0
      %v3746 = vadd.f32 %v3456, %v3620
      %v3747 = vadd.f32 %v3459, %v3623
      %v3748 = vadd.f32 %v3464, %v3628
      %v3749 = vadd.f32 %v3467, %v3631
      %v3750 = vadd.f32 %v3472, %v3636
      %v3751 = vadd.f32 %v3475, %v3639
      %v3752 = vadd.f32 %v3480, %v3644
      %v3753 = vadd.f32 %v3483, %v3647
      %v3754 = vadd.f32 %v3488, %v3652
      %v3755 = vadd.f32 %v3491, %v3655
      %v3756 = vadd.f32 %v3496, %v3660
      %v3757 = vadd.f32 %v3499, %v3663
      %v3758 = vadd.f32 %v3504, %v3668
      %v3759 = vadd.f32 %v3507, %v3671
      %v3760 = vadd.f32 %v3512, %v3676
      %v3761 = vadd.f32 %v3515, %v3679
      %v3762 = vadd.f32 %v3520, %v3684
      %v3763 = vadd.f32 %v3523, %v3687
      %v3764 = vadd.f32 %v3528, %v3692
      %v3765 = vadd.f32 %v3531, %v3695
      %v3766 = vadd.f32 %v3536, %v3700
      %v3767 = vadd.f32 %v3539, %v3703
      %v3768 = vadd.f32 %v3544, %v3708
      %v3769 = vadd.f32 %v3547, %v3711
      %v3770 = vadd.f32 %v3552, %v3716
      %v3771 = vadd.f32 %v3555, %v3719
      %v3772 = vadd.f32 %v3560, %v3724
      %v3773 = vadd.f32 %v3563, %v3727
      %v3774 = vadd.f32 %v3568, %v3732
      %v3775 = vadd.f32 %v3571, %v3735
      %v3776 = vadd.f32 %v3576, %v3740
      %v3777 = vadd.f32 %v3579, %v3743
      %v3778 = vshrl.u32 %v3174, 16
      %v3780 = vshll.u32 %v3174, 16
      %v3782 = vrot.slane %v3780, 1
      %v3783 = vor.u32 %v3778, %v3782
      %v3785 = vshll.u32 %v3175, 16
      %v3787 = vrot.slane %v3785, 1
      %v3788 = vsel %vm1107, %v3783, %v3787
      %v3789 = vshrl.u32 %v3176, 16
      %v3791 = vshll.u32 %v3176, 16
      %v3793 = vrot.slane %v3791, 1
      %v3794 = vor.u32 %v3789, %v3793
      %v3796 = vshll.u32 %v3177, 16
      %v3798 = vrot.slane %v3796, 1
      %v3799 = vsel %vm1107, %v3794, %v3798
      %v3800 = vshrl.u32 %v3178, 16
      %v3802 = vshll.u32 %v3178, 16
      %v3804 = vrot.slane %v3802, 1
      %v3805 = vor.u32 %v3800, %v3804
      %v3807 = vshll.u32 %v3179, 16
      %v3809 = vrot.slane %v3807, 1
      %v3810 = vsel %vm1107, %v3805, %v3809
      %v3811 = vshrl.u32 %v3180, 16
      %v3813 = vshll.u32 %v3180, 16
      %v3815 = vrot.slane %v3813, 1
      %v3816 = vor.u32 %v3811, %v3815
      %v3818 = vshll.u32 %v3181, 16
      %v3820 = vrot.slane %v3818, 1
      %v3821 = vsel %vm1107, %v3816, %v3820
      %v3822 = vshrl.u32 %v3182, 16
      %v3824 = vshll.u32 %v3182, 16
      %v3826 = vrot.slane %v3824, 1
      %v3827 = vor.u32 %v3822, %v3826
      %v3829 = vshll.u32 %v3183, 16
      %v3831 = vrot.slane %v3829, 1
      %v3832 = vsel %vm1107, %v3827, %v3831
      %v3833 = vshrl.u32 %v3184, 16
      %v3835 = vshll.u32 %v3184, 16
      %v3837 = vrot.slane %v3835, 1
      %v3838 = vor.u32 %v3833, %v3837
      %v3840 = vshll.u32 %v3185, 16
      %v3842 = vrot.slane %v3840, 1
      %v3843 = vsel %vm1107, %v3838, %v3842
      %v3844 = vshrl.u32 %v3186, 16
      %v3846 = vshll.u32 %v3186, 16
      %v3848 = vrot.slane %v3846, 1
      %v3849 = vor.u32 %v3844, %v3848
      %v3851 = vshll.u32 %v3187, 16
      %v3853 = vrot.slane %v3851, 1
      %v3854 = vsel %vm1107, %v3849, %v3853
      %v3855 = vshrl.u32 %v3188, 16
      %v3857 = vshll.u32 %v3188, 16
      %v3859 = vrot.slane %v3857, 1
      %v3860 = vor.u32 %v3855, %v3859
      %v3862 = vshll.u32 %v3189, 16
      %v3864 = vrot.slane %v3862, 1
      %v3865 = vsel %vm1107, %v3860, %v3864
      %v3866 = vshrl.u32 %v3190, 16
      %v3868 = vshll.u32 %v3190, 16
      %v3870 = vrot.slane %v3868, 1
      %v3871 = vor.u32 %v3866, %v3870
      %v3873 = vshll.u32 %v3191, 16
      %v3875 = vrot.slane %v3873, 1
      %v3876 = vsel %vm1107, %v3871, %v3875
      %v3877 = vshrl.u32 %v3192, 16
      %v3879 = vshll.u32 %v3192, 16
      %v3881 = vrot.slane %v3879, 1
      %v3882 = vor.u32 %v3877, %v3881
      %v3884 = vshll.u32 %v3193, 16
      %v3886 = vrot.slane %v3884, 1
      %v3887 = vsel %vm1107, %v3882, %v3886
      %v3888 = vshrl.u32 %v3194, 16
      %v3890 = vshll.u32 %v3194, 16
      %v3892 = vrot.slane %v3890, 1
      %v3893 = vor.u32 %v3888, %v3892
      %v3895 = vshll.u32 %v3195, 16
      %v3897 = vrot.slane %v3895, 1
      %v3898 = vsel %vm1107, %v3893, %v3897
      %v3899 = vshrl.u32 %v3196, 16
      %v3901 = vshll.u32 %v3196, 16
      %v3903 = vrot.slane %v3901, 1
      %v3904 = vor.u32 %v3899, %v3903
      %v3906 = vshll.u32 %v3197, 16
      %v3908 = vrot.slane %v3906, 1
      %v3909 = vsel %vm1107, %v3904, %v3908
      %v3910 = vshrl.u32 %v3198, 16
      %v3912 = vshll.u32 %v3198, 16
      %v3914 = vrot.slane %v3912, 1
      %v3915 = vor.u32 %v3910, %v3914
      %v3917 = vshll.u32 %v3199, 16
      %v3919 = vrot.slane %v3917, 1
      %v3920 = vsel %vm1107, %v3915, %v3919
      %v3921 = vshrl.u32 %v3200, 16
      %v3923 = vshll.u32 %v3200, 16
      %v3925 = vrot.slane %v3923, 1
      %v3926 = vor.u32 %v3921, %v3925
      %v3928 = vshll.u32 %v3201, 16
      %v3930 = vrot.slane %v3928, 1
      %v3931 = vsel %vm1107, %v3926, %v3930
      %v3932 = vshrl.u32 %v3202, 16
      %v3934 = vshll.u32 %v3202, 16
      %v3936 = vrot.slane %v3934, 1
      %v3937 = vor.u32 %v3932, %v3936
      %v3939 = vshll.u32 %v3203, 16
      %v3941 = vrot.slane %v3939, 1
      %v3942 = vsel %vm1107, %v3937, %v3941
      %v3944 = vsel %vm533, %v3788, 0
      %v3947 = vsel %vm533, %v3799, 0
      %v3950 = vsel %vm533, %v3810, 0
      %v3953 = vsel %vm533, %v3821, 0
      %v3956 = vsel %vm533, %v3832, 0
      %v3959 = vsel %vm533, %v3843, 0
      %v3962 = vsel %vm533, %v3854, 0
      %v3965 = vsel %vm533, %v3865, 0
      %v3968 = vsel %vm533, %v3876, 0
      %v3971 = vsel %vm533, %v3887, 0
      %v3974 = vsel %vm533, %v3898, 0
      %v3977 = vsel %vm533, %v3909, 0
      %v3980 = vsel %vm533, %v3920, 0
      %v3983 = vsel %vm533, %v3931, 0
      %v3986 = vsel %vm533, %v3942, 0
      %v3989 = vsel %vm582, %v200, 0
      %3991 = vmatprep.subr.bf16.mxu0 0
      %3992 = vmatpush1.bf16.msra.mxu0 %v3989
      %3993 = vmatprep.subr.bf16.mxu0 0
      %3994 = vmatpush1.bf16.msra.mxu0 0
      %3995 = vmatprep.subr.bf16.mxu0 0
      %3996 = vmatpush1.bf16.msra.mxu0 0
      %3997 = vmatprep.subr.bf16.mxu0 0
      %3998 = vmatpush1.bf16.msra.mxu0 0
      %3999 = vmatprep.subr.bf16.mxu0 0
      %4000 = vmatpush1.bf16.msra.mxu0 0
      %4001 = vmatprep.subr.bf16.mxu0 0
      %4002 = vmatpush1.bf16.msra.mxu0 0
      %4003 = vmatprep.subr.bf16.mxu0 0
      %4004 = vmatpush1.bf16.msra.mxu0 0
      %4005 = vmatprep.subr.bf16.mxu0 0
      %4006 = vmatpush1.bf16.msra.mxu0 0
      %4007 = vmatprep.subr.bf16.mxu0 0
      %4008 = vmatpush1.bf16.msra.mxu0 0
      %4009 = vmatprep.subr.bf16.mxu0 0
      %4010 = vmatpush1.bf16.msra.mxu0 0
      %4011 = vmatprep.subr.bf16.mxu0 0
      %4012 = vmatpush1.bf16.msra.mxu0 0
      %4013 = vmatprep.subr.bf16.mxu0 0
      %4014 = vmatpush1.bf16.msra.mxu0 0
      %4015 = vmatprep.subr.bf16.mxu0 0
      %4016 = vmatpush1.bf16.msra.mxu0 0
      %4017 = vmatprep.subr.bf16.mxu0 0
      %4018 = vmatpush1.bf16.msra.mxu0 0
      %4019 = vmatprep.subr.bf16.mxu0 0
      %4020 = vmatpush1.bf16.msra.mxu0 0
      %4021 = vmatprep.subr.bf16.mxu0 0
      %4022 = vmatpush1.bf16.msra.mxu0 0
      %4023 = vmatprep.mubr.bf16.mxu0 0
      %4024 = vmatmul.mubr.bf16.gmra.mrb[0].mxu0 %v3944
      %v4025 = vpop.f32.mrb[0].mxu0
      %v4026 = vadd.f32 0.0, %v4025
      %v4027 = vpop.f32.mrb[0].mxu0
      %v4028 = vpop.f32.mrb[0].mxu0
      %v4029 = vadd.f32 0.0, %v4028
      %v4030 = vpop.f32.mrb[0].mxu0
      %4031 = vmatprep.mubr.bf16.mxu0 0
      %4032 = vmatmul.mubr.bf16.gmra.mrb[0].mxu0 %v3947
      %v4033 = vpop.f32.mrb[0].mxu0
      %v4034 = vadd.f32 0.0, %v4033
      %v4035 = vpop.f32.mrb[0].mxu0
      %v4036 = vpop.f32.mrb[0].mxu0
      %v4037 = vadd.f32 0.0, %v4036
      %v4038 = vpop.f32.mrb[0].mxu0
      %4039 = vmatprep.mubr.bf16.mxu0 0
      %4040 = vmatmul.mubr.bf16.gmra.mrb[0].mxu0 %v3944
      %v4041 = vpop.f32.mrb[0].mxu0
      %v4042 = vadd.f32 0.0, %v4041
      %v4043 = vpop.f32.mrb[0].mxu0
      %v4044 = vpop.f32.mrb[0].mxu0
      %v4045 = vadd.f32 0.0, %v4044
      %v4046 = vpop.f32.mrb[0].mxu0
      %4047 = vmatprep.mubr.bf16.mxu0 0
      %4048 = vmatmul.mubr.bf16.gmra.mrb[0].mxu0 %v3950
      %v4049 = vpop.f32.mrb[0].mxu0
      %v4050 = vadd.f32 0.0, %v4049
      %v4051 = vpop.f32.mrb[0].mxu0
      %v4052 = vpop.f32.mrb[0].mxu0
      %v4053 = vadd.f32 0.0, %v4052
      %v4054 = vpop.f32.mrb[0].mxu0
      %4055 = vmatprep.mubr.bf16.mxu0 0
      %4056 = vmatmul.mubr.bf16.gmra.mrb[0].mxu0 %v3953
      %v4057 = vpop.f32.mrb[0].mxu0
      %v4058 = vadd.f32 0.0, %v4057
      %v4059 = vpop.f32.mrb[0].mxu0
      %v4060 = vpop.f32.mrb[0].mxu0
      %v4061 = vadd.f32 0.0, %v4060
      %v4062 = vpop.f32.mrb[0].mxu0
      %4063 = vmatprep.mubr.bf16.mxu0 0
      %4064 = vmatmul.mubr.bf16.gmra.mrb[0].mxu0 %v3956
      %v4065 = vpop.f32.mrb[0].mxu0
      %v4066 = vadd.f32 0.0, %v4065
      %v4067 = vpop.f32.mrb[0].mxu0
      %v4068 = vpop.f32.mrb[0].mxu0
      %v4069 = vadd.f32 0.0, %v4068
      %v4070 = vpop.f32.mrb[0].mxu0
      %4071 = vmatprep.mubr.bf16.mxu0 0
      %4072 = vmatmul.mubr.bf16.gmra.mrb[0].mxu0 %v3959
      %v4073 = vpop.f32.mrb[0].mxu0
      %v4074 = vadd.f32 0.0, %v4073
      %v4075 = vpop.f32.mrb[0].mxu0
      %v4076 = vpop.f32.mrb[0].mxu0
      %v4077 = vadd.f32 0.0, %v4076
      %v4078 = vpop.f32.mrb[0].mxu0
      %4079 = vmatprep.mubr.bf16.mxu0 0
      %4080 = vmatmul.mubr.bf16.gmra.mrb[0].mxu0 %v3962
      %v4081 = vpop.f32.mrb[0].mxu0
      %v4082 = vadd.f32 0.0, %v4081
      %v4083 = vpop.f32.mrb[0].mxu0
      %v4084 = vpop.f32.mrb[0].mxu0
      %v4085 = vadd.f32 0.0, %v4084
      %v4086 = vpop.f32.mrb[0].mxu0
      %4087 = vmatprep.mubr.bf16.mxu0 0
      %4088 = vmatmul.mubr.bf16.gmra.mrb[0].mxu0 %v3965
      %v4089 = vpop.f32.mrb[0].mxu0
      %v4090 = vadd.f32 0.0, %v4089
      %v4091 = vpop.f32.mrb[0].mxu0
      %v4092 = vpop.f32.mrb[0].mxu0
      %v4093 = vadd.f32 0.0, %v4092
      %v4094 = vpop.f32.mrb[0].mxu0
      %4095 = vmatprep.mubr.bf16.mxu0 0
      %4096 = vmatmul.mubr.bf16.gmra.mrb[0].mxu0 %v3968
      %v4097 = vpop.f32.mrb[0].mxu0
      %v4098 = vadd.f32 0.0, %v4097
      %v4099 = vpop.f32.mrb[0].mxu0
      %v4100 = vpop.f32.mrb[0].mxu0
      %v4101 = vadd.f32 0.0, %v4100
      %v4102 = vpop.f32.mrb[0].mxu0
      %4103 = vmatprep.mubr.bf16.mxu0 0
      %4104 = vmatmul.mubr.bf16.gmra.mrb[0].mxu0 %v3971
      %v4105 = vpop.f32.mrb[0].mxu0
      %v4106 = vadd.f32 0.0, %v4105
      %v4107 = vpop.f32.mrb[0].mxu0
      %v4108 = vpop.f32.mrb[0].mxu0
      %v4109 = vadd.f32 0.0, %v4108
      %v4110 = vpop.f32.mrb[0].mxu0
      %4111 = vmatprep.mubr.bf16.mxu0 0
      %4112 = vmatmul.mubr.bf16.gmra.mrb[0].mxu0 %v3974
      %v4113 = vpop.f32.mrb[0].mxu0
      %v4114 = vadd.f32 0.0, %v4113
      %v4115 = vpop.f32.mrb[0].mxu0
      %v4116 = vpop.f32.mrb[0].mxu0
      %v4117 = vadd.f32 0.0, %v4116
      %v4118 = vpop.f32.mrb[0].mxu0
      %4119 = vmatprep.mubr.bf16.mxu0 0
      %4120 = vmatmul.mubr.bf16.gmra.mrb[0].mxu0 %v3977
      %v4121 = vpop.f32.mrb[0].mxu0
      %v4122 = vadd.f32 0.0, %v4121
      %v4123 = vpop.f32.mrb[0].mxu0
      %v4124 = vpop.f32.mrb[0].mxu0
      %v4125 = vadd.f32 0.0, %v4124
      %v4126 = vpop.f32.mrb[0].mxu0
      %4127 = vmatprep.mubr.bf16.mxu0 0
      %4128 = vmatmul.mubr.bf16.gmra.mrb[0].mxu0 %v3980
      %v4129 = vpop.f32.mrb[0].mxu0
      %v4130 = vadd.f32 0.0, %v4129
      %v4131 = vpop.f32.mrb[0].mxu0
      %v4132 = vpop.f32.mrb[0].mxu0
      %v4133 = vadd.f32 0.0, %v4132
      %v4134 = vpop.f32.mrb[0].mxu0
      %4135 = vmatprep.mubr.bf16.mxu0 0
      %4136 = vmatmul.mubr.bf16.gmra.mrb[0].mxu0 %v3983
      %v4137 = vpop.f32.mrb[0].mxu0
      %v4138 = vadd.f32 0.0, %v4137
      %v4139 = vpop.f32.mrb[0].mxu0
      %v4140 = vpop.f32.mrb[0].mxu0
      %v4141 = vadd.f32 0.0, %v4140
      %v4142 = vpop.f32.mrb[0].mxu0
      %4143 = vmatprep.mubr.bf16.mxu0 0
      %4144 = vmatmul.mubr.bf16.gmra.mrb[0].mxu0 %v3986
      %v4145 = vpop.f32.mrb[0].mxu0
      %v4146 = vadd.f32 0.0, %v4145
      %v4147 = vpop.f32.mrb[0].mxu0
      %v4148 = vpop.f32.mrb[0].mxu0
      %v4149 = vadd.f32 0.0, %v4148
      %v4150 = vpop.f32.mrb[0].mxu0
      %4151 = vdwg.mxu0
      %v4152 = vadd.f32 %v3746, %v4026
      %v4153 = vadd.f32 %v3747, %v4029
      %v4154 = vadd.f32 %v3748, %v4034
      %v4155 = vadd.f32 %v3749, %v4037
      %v4156 = vadd.f32 %v3750, %v4042
      %v4157 = vadd.f32 %v3751, %v4045
      %v4158 = vadd.f32 %v3752, %v4050
      %v4159 = vadd.f32 %v3753, %v4053
      %v4160 = vadd.f32 %v3754, %v4058
      %v4161 = vadd.f32 %v3755, %v4061
      %v4162 = vadd.f32 %v3756, %v4066
      %v4163 = vadd.f32 %v3757, %v4069
      %v4164 = vadd.f32 %v3758, %v4074
      %v4165 = vadd.f32 %v3759, %v4077
      %v4166 = vadd.f32 %v3760, %v4082
      %v4167 = vadd.f32 %v3761, %v4085
      %v4168 = vadd.f32 %v3762, %v4090
      %v4169 = vadd.f32 %v3763, %v4093
      %v4170 = vadd.f32 %v3764, %v4098
      %v4171 = vadd.f32 %v3765, %v4101
      %v4172 = vadd.f32 %v3766, %v4106
      %v4173 = vadd.f32 %v3767, %v4109
      %v4174 = vadd.f32 %v3768, %v4114
      %v4175 = vadd.f32 %v3769, %v4117
      %v4176 = vadd.f32 %v3770, %v4122
      %v4177 = vadd.f32 %v3771, %v4125
      %v4178 = vadd.f32 %v3772, %v4130
      %v4179 = vadd.f32 %v3773, %v4133
      %v4180 = vadd.f32 %v3774, %v4138
      %v4181 = vadd.f32 %v3775, %v4141
      %v4182 = vadd.f32 %v3776, %v4146
      %v4183 = vadd.f32 %v3777, %v4149
      %v4184 = vshrl.u32 %v3204, 16
      %v4186 = vshll.u32 %v3204, 16
      %v4188 = vrot.slane %v4186, 1
      %v4189 = vor.u32 %v4184, %v4188
      %v4191 = vshll.u32 %v3205, 16
      %v4193 = vrot.slane %v4191, 1
      %v4194 = vsel %vm1107, %v4189, %v4193
      %v4196 = vsel %vm533, %v4194, 0
      %v4199 = vsel %vm582, %v203, 0
      %4201 = vmatprep.subr.bf16.mxu0 0
      %4202 = vmatpush1.bf16.msra.mxu0 %v4199
      %4203 = vmatprep.subr.bf16.mxu0 0
      %4204 = vmatpush1.bf16.msra.mxu0 0
      %4205 = vmatprep.subr.bf16.mxu0 0
      %4206 = vmatpush1.bf16.msra.mxu0 0
      %4207 = vmatprep.subr.bf16.mxu0 0
      %4208 = vmatpush1.bf16.msra.mxu0 0
      %4209 = vmatprep.subr.bf16.mxu0 0
      %4210 = vmatpush1.bf16.msra.mxu0 0
      %4211 = vmatprep.subr.bf16.mxu0 0
      %4212 = vmatpush1.bf16.msra.mxu0 0
      %4213 = vmatprep.subr.bf16.mxu0 0
      %4214 = vmatpush1.bf16.msra.mxu0 0
      %4215 = vmatprep.subr.bf16.mxu0 0
      %4216 = vmatpush1.bf16.msra.mxu0 0
      %4217 = vmatprep.subr.bf16.mxu0 0
      %4218 = vmatpush1.bf16.msra.mxu0 0
      %4219 = vmatprep.subr.bf16.mxu0 0
      %4220 = vmatpush1.bf16.msra.mxu0 0
      %4221 = vmatprep.subr.bf16.mxu0 0
      %4222 = vmatpush1.bf16.msra.mxu0 0
      %4223 = vmatprep.subr.bf16.mxu0 0
      %4224 = vmatpush1.bf16.msra.mxu0 0
      %4225 = vmatprep.subr.bf16.mxu0 0
      %4226 = vmatpush1.bf16.msra.mxu0 0
      %4227 = vmatprep.subr.bf16.mxu0 0
      %4228 = vmatpush1.bf16.msra.mxu0 0
      %4229 = vmatprep.subr.bf16.mxu0 0
      %4230 = vmatpush1.bf16.msra.mxu0 0
      %4231 = vmatprep.subr.bf16.mxu0 0
      %4232 = vmatpush1.bf16.msra.mxu0 0
      %4233 = vmatprep.mubr.bf16.mxu0 0
      %4234 = vmatmul.mubr.bf16.gmra.mrb[0].mxu0 %v3947
      %v4235 = vpop.f32.mrb[0].mxu0
      %v4236 = vadd.f32 0.0, %v4235
      %v4237 = vpop.f32.mrb[0].mxu0
      %v4238 = vpop.f32.mrb[0].mxu0
      %v4239 = vadd.f32 0.0, %v4238
      %v4240 = vpop.f32.mrb[0].mxu0
      %4241 = vmatprep.mubr.bf16.mxu0 0
      %4242 = vmatmul.mubr.bf16.gmra.mrb[0].mxu0 %v3944
      %v4243 = vpop.f32.mrb[0].mxu0
      %v4244 = vadd.f32 0.0, %v4243
      %v4245 = vpop.f32.mrb[0].mxu0
      %v4246 = vpop.f32.mrb[0].mxu0
      %v4247 = vadd.f32 0.0, %v4246
      %v4248 = vpop.f32.mrb[0].mxu0
      %4249 = vmatprep.mubr.bf16.mxu0 0
      %4250 = vmatmul.mubr.bf16.gmra.mrb[0].mxu0 %v3950
      %v4251 = vpop.f32.mrb[0].mxu0
      %v4252 = vadd.f32 0.0, %v4251
      %v4253 = vpop.f32.mrb[0].mxu0
      %v4254 = vpop.f32.mrb[0].mxu0
      %v4255 = vadd.f32 0.0, %v4254
      %v4256 = vpop.f32.mrb[0].mxu0
      %4257 = vmatprep.mubr.bf16.mxu0 0
      %4258 = vmatmul.mubr.bf16.gmra.mrb[0].mxu0 %v3953
      %v4259 = vpop.f32.mrb[0].mxu0
      %v4260 = vadd.f32 0.0, %v4259
      %v4261 = vpop.f32.mrb[0].mxu0
      %v4262 = vpop.f32.mrb[0].mxu0
      %v4263 = vadd.f32 0.0, %v4262
      %v4264 = vpop.f32.mrb[0].mxu0
      %4265 = vmatprep.mubr.bf16.mxu0 0
      %4266 = vmatmul.mubr.bf16.gmra.mrb[0].mxu0 %v3956
      %v4267 = vpop.f32.mrb[0].mxu0
      %v4268 = vadd.f32 0.0, %v4267
      %v4269 = vpop.f32.mrb[0].mxu0
      %v4270 = vpop.f32.mrb[0].mxu0
      %v4271 = vadd.f32 0.0, %v4270
      %v4272 = vpop.f32.mrb[0].mxu0
      %4273 = vmatprep.mubr.bf16.mxu0 0
      %4274 = vmatmul.mubr.bf16.gmra.mrb[0].mxu0 %v3959
      %v4275 = vpop.f32.mrb[0].mxu0
      %v4276 = vadd.f32 0.0, %v4275
      %v4277 = vpop.f32.mrb[0].mxu0
      %v4278 = vpop.f32.mrb[0].mxu0
      %v4279 = vadd.f32 0.0, %v4278
      %v4280 = vpop.f32.mrb[0].mxu0
      %4281 = vmatprep.mubr.bf16.mxu0 0
      %4282 = vmatmul.mubr.bf16.gmra.mrb[0].mxu0 %v3962
      %v4283 = vpop.f32.mrb[0].mxu0
      %v4284 = vadd.f32 0.0, %v4283
      %v4285 = vpop.f32.mrb[0].mxu0
      %v4286 = vpop.f32.mrb[0].mxu0
      %v4287 = vadd.f32 0.0, %v4286
      %v4288 = vpop.f32.mrb[0].mxu0
      %4289 = vmatprep.mubr.bf16.mxu0 0
      %4290 = vmatmul.mubr.bf16.gmra.mrb[0].mxu0 %v3965
      %v4291 = vpop.f32.mrb[0].mxu0
      %v4292 = vadd.f32 0.0, %v4291
      %v4293 = vpop.f32.mrb[0].mxu0
      %v4294 = vpop.f32.mrb[0].mxu0
      %v4295 = vadd.f32 0.0, %v4294
      %v4296 = vpop.f32.mrb[0].mxu0
      %4297 = vmatprep.mubr.bf16.mxu0 0
      %4298 = vmatmul.mubr.bf16.gmra.mrb[0].mxu0 %v3968
      %v4299 = vpop.f32.mrb[0].mxu0
      %v4300 = vadd.f32 0.0, %v4299
      %v4301 = vpop.f32.mrb[0].mxu0
      %v4302 = vpop.f32.mrb[0].mxu0
      %v4303 = vadd.f32 0.0, %v4302
      %v4304 = vpop.f32.mrb[0].mxu0
      %4305 = vmatprep.mubr.bf16.mxu0 0
      %4306 = vmatmul.mubr.bf16.gmra.mrb[0].mxu0 %v3971
      %v4307 = vpop.f32.mrb[0].mxu0
      %v4308 = vadd.f32 0.0, %v4307
      %v4309 = vpop.f32.mrb[0].mxu0
      %v4310 = vpop.f32.mrb[0].mxu0
      %v4311 = vadd.f32 0.0, %v4310
      %v4312 = vpop.f32.mrb[0].mxu0
      %4313 = vmatprep.mubr.bf16.mxu0 0
      %4314 = vmatmul.mubr.bf16.gmra.mrb[0].mxu0 %v3974
      %v4315 = vpop.f32.mrb[0].mxu0
      %v4316 = vadd.f32 0.0, %v4315
      %v4317 = vpop.f32.mrb[0].mxu0
      %v4318 = vpop.f32.mrb[0].mxu0
      %v4319 = vadd.f32 0.0, %v4318
      %v4320 = vpop.f32.mrb[0].mxu0
      %4321 = vmatprep.mubr.bf16.mxu0 0
      %4322 = vmatmul.mubr.bf16.gmra.mrb[0].mxu0 %v3977
      %v4323 = vpop.f32.mrb[0].mxu0
      %v4324 = vadd.f32 0.0, %v4323
      %v4325 = vpop.f32.mrb[0].mxu0
      %v4326 = vpop.f32.mrb[0].mxu0
      %v4327 = vadd.f32 0.0, %v4326
      %v4328 = vpop.f32.mrb[0].mxu0
      %4329 = vmatprep.mubr.bf16.mxu0 0
      %4330 = vmatmul.mubr.bf16.gmra.mrb[0].mxu0 %v3980
      %v4331 = vpop.f32.mrb[0].mxu0
      %v4332 = vadd.f32 0.0, %v4331
      %v4333 = vpop.f32.mrb[0].mxu0
      %v4334 = vpop.f32.mrb[0].mxu0
      %v4335 = vadd.f32 0.0, %v4334
      %v4336 = vpop.f32.mrb[0].mxu0
      %4337 = vmatprep.mubr.bf16.mxu0 0
      %4338 = vmatmul.mubr.bf16.gmra.mrb[0].mxu0 %v3983
      %v4339 = vpop.f32.mrb[0].mxu0
      %v4340 = vadd.f32 0.0, %v4339
      %v4341 = vpop.f32.mrb[0].mxu0
      %v4342 = vpop.f32.mrb[0].mxu0
      %v4343 = vadd.f32 0.0, %v4342
      %v4344 = vpop.f32.mrb[0].mxu0
      %4345 = vmatprep.mubr.bf16.mxu0 0
      %4346 = vmatmul.mubr.bf16.gmra.mrb[0].mxu0 %v3986
      %v4347 = vpop.f32.mrb[0].mxu0
      %v4348 = vadd.f32 0.0, %v4347
      %v4349 = vpop.f32.mrb[0].mxu0
      %v4350 = vpop.f32.mrb[0].mxu0
      %v4351 = vadd.f32 0.0, %v4350
      %v4352 = vpop.f32.mrb[0].mxu0
      %4353 = vmatprep.mubr.bf16.mxu0 0
      %4354 = vmatmul.mubr.bf16.gmra.mrb[0].mxu0 %v4196
      %v4355 = vpop.f32.mrb[0].mxu0
      %v4356 = vadd.f32 0.0, %v4355
      %v4357 = vpop.f32.mrb[0].mxu0
      %v4358 = vpop.f32.mrb[0].mxu0
      %v4359 = vadd.f32 0.0, %v4358
      %v4360 = vpop.f32.mrb[0].mxu0
      %4361 = vdwg.mxu0
      %v4362 = vadd.f32 %v4152, %v4236
      %v4363 = vadd.f32 %v4153, %v4239
      %v4364 = vadd.f32 %v4154, %v4244
      %v4365 = vadd.f32 %v4155, %v4247
      %v4366 = vadd.f32 %v4156, %v4252
      %v4367 = vadd.f32 %v4157, %v4255
      %v4368 = vadd.f32 %v4158, %v4260
      %v4369 = vadd.f32 %v4159, %v4263
      %v4370 = vadd.f32 %v4160, %v4268
      %v4371 = vadd.f32 %v4161, %v4271
      %v4372 = vadd.f32 %v4162, %v4276
      %v4373 = vadd.f32 %v4163, %v4279
      %v4374 = vadd.f32 %v4164, %v4284
      %v4375 = vadd.f32 %v4165, %v4287
      %v4376 = vadd.f32 %v4166, %v4292
      %v4377 = vadd.f32 %v4167, %v4295
      %v4378 = vadd.f32 %v4168, %v4300
      %v4379 = vadd.f32 %v4169, %v4303
      %v4380 = vadd.f32 %v4170, %v4308
      %v4381 = vadd.f32 %v4171, %v4311
      %v4382 = vadd.f32 %v4172, %v4316
      %v4383 = vadd.f32 %v4173, %v4319
      %v4384 = vadd.f32 %v4174, %v4324
      %v4385 = vadd.f32 %v4175, %v4327
      %v4386 = vadd.f32 %v4176, %v4332
      %v4387 = vadd.f32 %v4177, %v4335
      %v4388 = vadd.f32 %v4178, %v4340
      %v4389 = vadd.f32 %v4179, %v4343
      %v4390 = vadd.f32 %v4180, %v4348
      %v4391 = vadd.f32 %v4181, %v4351
      %v4392 = vadd.f32 %v4182, %v4356
      %v4393 = vadd.f32 %v4183, %v4359
      %v4395 = vsel %vm582, %v206, 0
      %4397 = vmatprep.subr.bf16.mxu0 0
      %4398 = vmatpush1.bf16.msra.mxu0 %v4395
      %4399 = vmatprep.subr.bf16.mxu0 0
      %4400 = vmatpush1.bf16.msra.mxu0 0
      %4401 = vmatprep.subr.bf16.mxu0 0
      %4402 = vmatpush1.bf16.msra.mxu0 0
      %4403 = vmatprep.subr.bf16.mxu0 0
      %4404 = vmatpush1.bf16.msra.mxu0 0
      %4405 = vmatprep.subr.bf16.mxu0 0
      %4406 = vmatpush1.bf16.msra.mxu0 0
      %4407 = vmatprep.subr.bf16.mxu0 0
      %4408 = vmatpush1.bf16.msra.mxu0 0
      %4409 = vmatprep.subr.bf16.mxu0 0
      %4410 = vmatpush1.bf16.msra.mxu0 0
      %4411 = vmatprep.subr.bf16.mxu0 0
      %4412 = vmatpush1.bf16.msra.mxu0 0
      %4413 = vmatprep.subr.bf16.mxu0 0
      %4414 = vmatpush1.bf16.msra.mxu0 0
      %4415 = vmatprep.subr.bf16.mxu0 0
      %4416 = vmatpush1.bf16.msra.mxu0 0
      %4417 = vmatprep.subr.bf16.mxu0 0
      %4418 = vmatpush1.bf16.msra.mxu0 0
      %4419 = vmatprep.subr.bf16.mxu0 0
      %4420 = vmatpush1.bf16.msra.mxu0 0
      %4421 = vmatprep.subr.bf16.mxu0 0
      %4422 = vmatpush1.bf16.msra.mxu0 0
      %4423 = vmatprep.subr.bf16.mxu0 0
      %4424 = vmatpush1.bf16.msra.mxu0 0
      %4425 = vmatprep.subr.bf16.mxu0 0
      %4426 = vmatpush1.bf16.msra.mxu0 0
      %4427 = vmatprep.subr.bf16.mxu0 0
      %4428 = vmatpush1.bf16.msra.mxu0 0
      %4429 = vmatprep.mubr.bf16.mxu0 0
      %4430 = vmatmul.mubr.bf16.gmra.mrb[0].mxu0 %v3944
      %v4431 = vpop.f32.mrb[0].mxu0
      %v4432 = vadd.f32 0.0, %v4431
      %v4433 = vpop.f32.mrb[0].mxu0
      %v4434 = vpop.f32.mrb[0].mxu0
      %v4435 = vadd.f32 0.0, %v4434
      %v4436 = vpop.f32.mrb[0].mxu0
      %4437 = vmatprep.mubr.bf16.mxu0 0
      %4438 = vmatmul.mubr.bf16.gmra.mrb[0].mxu0 %v3950
      %v4439 = vpop.f32.mrb[0].mxu0
      %v4440 = vadd.f32 0.0, %v4439
      %v4441 = vpop.f32.mrb[0].mxu0
      %v4442 = vpop.f32.mrb[0].mxu0
      %v4443 = vadd.f32 0.0, %v4442
      %v4444 = vpop.f32.mrb[0].mxu0
      %4445 = vmatprep.mubr.bf16.mxu0 0
      %4446 = vmatmul.mubr.bf16.gmra.mrb[0].mxu0 %v3953
      %v4447 = vpop.f32.mrb[0].mxu0
      %v4448 = vadd.f32 0.0, %v4447
      %v4449 = vpop.f32.mrb[0].mxu0
      %v4450 = vpop.f32.mrb[0].mxu0
      %v4451 = vadd.f32 0.0, %v4450
      %v4452 = vpop.f32.mrb[0].mxu0
      %4453 = vmatprep.mubr.bf16.mxu0 0
      %4454 = vmatmul.mubr.bf16.gmra.mrb[0].mxu0 %v3956
      %v4455 = vpop.f32.mrb[0].mxu0
      %v4456 = vadd.f32 0.0, %v4455
      %v4457 = vpop.f32.mrb[0].mxu0
      %v4458 = vpop.f32.mrb[0].mxu0
      %v4459 = vadd.f32 0.0, %v4458
      %v4460 = vpop.f32.mrb[0].mxu0
      %4461 = vmatprep.mubr.bf16.mxu0 0
      %4462 = vmatmul.mubr.bf16.gmra.mrb[0].mxu0 %v3959
      %v4463 = vpop.f32.mrb[0].mxu0
      %v4464 = vadd.f32 0.0, %v4463
      %v4465 = vpop.f32.mrb[0].mxu0
      %v4466 = vpop.f32.mrb[0].mxu0
      %v4467 = vadd.f32 0.0, %v4466
      %v4468 = vpop.f32.mrb[0].mxu0
      %4469 = vmatprep.mubr.bf16.mxu0 0
      %4470 = vmatmul.mubr.bf16.gmra.mrb[0].mxu0 %v3962
      %v4471 = vpop.f32.mrb[0].mxu0
      %v4472 = vadd.f32 0.0, %v4471
      %v4473 = vpop.f32.mrb[0].mxu0
      %v4474 = vpop.f32.mrb[0].mxu0
      %v4475 = vadd.f32 0.0, %v4474
      %v4476 = vpop.f32.mrb[0].mxu0
      %4477 = vmatprep.mubr.bf16.mxu0 0
      %4478 = vmatmul.mubr.bf16.gmra.mrb[0].mxu0 %v3965
      %v4479 = vpop.f32.mrb[0].mxu0
      %v4480 = vadd.f32 0.0, %v4479
      %v4481 = vpop.f32.mrb[0].mxu0
      %v4482 = vpop.f32.mrb[0].mxu0
      %v4483 = vadd.f32 0.0, %v4482
      %v4484 = vpop.f32.mrb[0].mxu0
      %4485 = vmatprep.mubr.bf16.mxu0 0
      %4486 = vmatmul.mubr.bf16.gmra.mrb[0].mxu0 %v3968
      %v4487 = vpop.f32.mrb[0].mxu0
      %v4488 = vadd.f32 0.0, %v4487
      %v4489 = vpop.f32.mrb[0].mxu0
      %v4490 = vpop.f32.mrb[0].mxu0
      %v4491 = vadd.f32 0.0, %v4490
      %v4492 = vpop.f32.mrb[0].mxu0
      %4493 = vmatprep.mubr.bf16.mxu0 0
      %4494 = vmatmul.mubr.bf16.gmra.mrb[0].mxu0 %v3971
      %v4495 = vpop.f32.mrb[0].mxu0
      %v4496 = vadd.f32 0.0, %v4495
      %v4497 = vpop.f32.mrb[0].mxu0
      %v4498 = vpop.f32.mrb[0].mxu0
      %v4499 = vadd.f32 0.0, %v4498
      %v4500 = vpop.f32.mrb[0].mxu0
      %4501 = vmatprep.mubr.bf16.mxu0 0
      %4502 = vmatmul.mubr.bf16.gmra.mrb[0].mxu0 %v3974
      %v4503 = vpop.f32.mrb[0].mxu0
      %v4504 = vadd.f32 0.0, %v4503
      %v4505 = vpop.f32.mrb[0].mxu0
      %v4506 = vpop.f32.mrb[0].mxu0
      %v4507 = vadd.f32 0.0, %v4506
      %v4508 = vpop.f32.mrb[0].mxu0
      %4509 = vmatprep.mubr.bf16.mxu0 0
      %4510 = vmatmul.mubr.bf16.gmra.mrb[0].mxu0 %v3977
      %v4511 = vpop.f32.mrb[0].mxu0
      %v4512 = vadd.f32 0.0, %v4511
      %v4513 = vpop.f32.mrb[0].mxu0
      %v4514 = vpop.f32.mrb[0].mxu0
      %v4515 = vadd.f32 0.0, %v4514
      %v4516 = vpop.f32.mrb[0].mxu0
      %4517 = vmatprep.mubr.bf16.mxu0 0
      %4518 = vmatmul.mubr.bf16.gmra.mrb[0].mxu0 %v3980
      %v4519 = vpop.f32.mrb[0].mxu0
      %v4520 = vadd.f32 0.0, %v4519
      %v4521 = vpop.f32.mrb[0].mxu0
      %v4522 = vpop.f32.mrb[0].mxu0
      %v4523 = vadd.f32 0.0, %v4522
      %v4524 = vpop.f32.mrb[0].mxu0
      %4525 = vmatprep.mubr.bf16.mxu0 0
      %4526 = vmatmul.mubr.bf16.gmra.mrb[0].mxu0 %v3983
      %v4527 = vpop.f32.mrb[0].mxu0
      %v4528 = vadd.f32 0.0, %v4527
      %v4529 = vpop.f32.mrb[0].mxu0
      %v4530 = vpop.f32.mrb[0].mxu0
      %v4531 = vadd.f32 0.0, %v4530
      %v4532 = vpop.f32.mrb[0].mxu0
      %4533 = vmatprep.mubr.bf16.mxu0 0
      %4534 = vmatmul.mubr.bf16.gmra.mrb[0].mxu0 %v3986
      %v4535 = vpop.f32.mrb[0].mxu0
      %v4536 = vadd.f32 0.0, %v4535
      %v4537 = vpop.f32.mrb[0].mxu0
      %v4538 = vpop.f32.mrb[0].mxu0
      %v4539 = vadd.f32 0.0, %v4538
      %v4540 = vpop.f32.mrb[0].mxu0
      %4541 = vmatprep.mubr.bf16.mxu0 0
      %4542 = vmatmul.mubr.bf16.gmra.mrb[0].mxu0 %v4196
      %v4543 = vpop.f32.mrb[0].mxu0
      %v4544 = vadd.f32 0.0, %v4543
      %v4545 = vpop.f32.mrb[0].mxu0
      %v4546 = vpop.f32.mrb[0].mxu0
      %v4547 = vadd.f32 0.0, %v4546
      %v4548 = vpop.f32.mrb[0].mxu0
      %4549 = vmatprep.mubr.bf16.mxu0 0
      %4550 = vmatmul.mubr.bf16.gmra.mrb[0].mxu0 %v3986
      %v4551 = vpop.f32.mrb[0].mxu0
      %v4552 = vadd.f32 0.0, %v4551
      %v4553 = vpop.f32.mrb[0].mxu0
      %v4554 = vpop.f32.mrb[0].mxu0
      %v4555 = vadd.f32 0.0, %v4554
      %v4556 = vpop.f32.mrb[0].mxu0
      %4557 = vdwg.mxu0
      %v4558 = vadd.f32 %v4362, %v4432
      %v4559 = vadd.f32 %v4363, %v4435
      %v4560 = vadd.f32 %v4364, %v4440
      %v4561 = vadd.f32 %v4365, %v4443
      %v4562 = vadd.f32 %v4366, %v4448
      %v4563 = vadd.f32 %v4367, %v4451
      %v4564 = vadd.f32 %v4368, %v4456
      %v4565 = vadd.f32 %v4369, %v4459
      %v4566 = vadd.f32 %v4370, %v4464
      %v4567 = vadd.f32 %v4371, %v4467
      %v4568 = vadd.f32 %v4372, %v4472
      %v4569 = vadd.f32 %v4373, %v4475
      %v4570 = vadd.f32 %v4374, %v4480
      %v4571 = vadd.f32 %v4375, %v4483
      %v4572 = vadd.f32 %v4376, %v4488
      %v4573 = vadd.f32 %v4377, %v4491
      %v4574 = vadd.f32 %v4378, %v4496
      %v4575 = vadd.f32 %v4379, %v4499
      %v4576 = vadd.f32 %v4380, %v4504
      %v4577 = vadd.f32 %v4381, %v4507
      %v4578 = vadd.f32 %v4382, %v4512
      %v4579 = vadd.f32 %v4383, %v4515
      %v4580 = vadd.f32 %v4384, %v4520
      %v4581 = vadd.f32 %v4385, %v4523
      %v4582 = vadd.f32 %v4386, %v4528
      %v4583 = vadd.f32 %v4387, %v4531
      %v4584 = vadd.f32 %v4388, %v4536
      %v4585 = vadd.f32 %v4389, %v4539
      %v4586 = vadd.f32 %v4390, %v4544
      %v4587 = vadd.f32 %v4391, %v4547
      %v4588 = vadd.f32 %v4392, %v4552
      %v4589 = vadd.f32 %v4393, %v4555
      %v4620 = vrot.slane %v3174, 1
      %v4621 = vrot.slane %v3175, 1
      %v4622 = vsel %vm1950, %v4620, %v4621
      %v4623 = vrot.slane %v3176, 1
      %v4624 = vrot.slane %v3177, 1
      %v4625 = vsel %vm1950, %v4623, %v4624
      %v4626 = vrot.slane %v3178, 1
      %v4627 = vrot.slane %v3179, 1
      %v4628 = vsel %vm1950, %v4626, %v4627
      %v4629 = vrot.slane %v3180, 1
      %v4630 = vrot.slane %v3181, 1
      %v4631 = vsel %vm1950, %v4629, %v4630
      %v4632 = vrot.slane %v3182, 1
      %v4633 = vrot.slane %v3183, 1
      %v4634 = vsel %vm1950, %v4632, %v4633
      %v4635 = vrot.slane %v3184, 1
      %v4636 = vrot.slane %v3185, 1
      %v4637 = vsel %vm1950, %v4635, %v4636
      %v4638 = vrot.slane %v3186, 1
      %v4639 = vrot.slane %v3187, 1
      %v4640 = vsel %vm1950, %v4638, %v4639
      %v4641 = vrot.slane %v3188, 1
      %v4642 = vrot.slane %v3189, 1
      %v4643 = vsel %vm1950, %v4641, %v4642
      %v4644 = vrot.slane %v3190, 1
      %v4645 = vrot.slane %v3191, 1
      %v4646 = vsel %vm1950, %v4644, %v4645
      %v4647 = vrot.slane %v3192, 1
      %v4648 = vrot.slane %v3193, 1
      %v4649 = vsel %vm1950, %v4647, %v4648
      %v4650 = vrot.slane %v3194, 1
      %v4651 = vrot.slane %v3195, 1
      %v4652 = vsel %vm1950, %v4650, %v4651
      %v4653 = vrot.slane %v3196, 1
      %v4654 = vrot.slane %v3197, 1
      %v4655 = vsel %vm1950, %v4653, %v4654
      %v4656 = vrot.slane %v3198, 1
      %v4657 = vrot.slane %v3199, 1
      %v4658 = vsel %vm1950, %v4656, %v4657
      %v4659 = vrot.slane %v3200, 1
      %v4660 = vrot.slane %v3201, 1
      %v4661 = vsel %vm1950, %v4659, %v4660
      %v4662 = vrot.slane %v3202, 1
      %v4663 = vrot.slane %v3203, 1
      %v4664 = vsel %vm1950, %v4662, %v4663
      %v4666 = vsel %vm533, %v4622, 0
      %v4669 = vsel %vm533, %v4625, 0
      %v4672 = vsel %vm533, %v4628, 0
      %v4675 = vsel %vm533, %v4631, 0
      %v4678 = vsel %vm533, %v4634, 0
      %v4681 = vsel %vm533, %v4637, 0
      %v4684 = vsel %vm533, %v4640, 0
      %v4687 = vsel %vm533, %v4643, 0
      %v4690 = vsel %vm533, %v4646, 0
      %v4693 = vsel %vm533, %v4649, 0
      %v4696 = vsel %vm533, %v4652, 0
      %v4699 = vsel %vm533, %v4655, 0
      %v4702 = vsel %vm533, %v4658, 0
      %v4705 = vsel %vm533, %v4661, 0
      %v4708 = vsel %vm533, %v4664, 0
      %v4711 = vsel %vm582, %v201, 0
      %4713 = vmatprep.subr.bf16.mxu0 0
      %4714 = vmatpush1.bf16.msra.mxu0 %v4711
      %4715 = vmatprep.subr.bf16.mxu0 0
      %4716 = vmatpush1.bf16.msra.mxu0 0
      %4717 = vmatprep.subr.bf16.mxu0 0
      %4718 = vmatpush1.bf16.msra.mxu0 0
      %4719 = vmatprep.subr.bf16.mxu0 0
      %4720 = vmatpush1.bf16.msra.mxu0 0
      %4721 = vmatprep.subr.bf16.mxu0 0
      %4722 = vmatpush1.bf16.msra.mxu0 0
      %4723 = vmatprep.subr.bf16.mxu0 0
      %4724 = vmatpush1.bf16.msra.mxu0 0
      %4725 = vmatprep.subr.bf16.mxu0 0
      %4726 = vmatpush1.bf16.msra.mxu0 0
      %4727 = vmatprep.subr.bf16.mxu0 0
      %4728 = vmatpush1.bf16.msra.mxu0 0
      %4729 = vmatprep.subr.bf16.mxu0 0
      %4730 = vmatpush1.bf16.msra.mxu0 0
      %4731 = vmatprep.subr.bf16.mxu0 0
      %4732 = vmatpush1.bf16.msra.mxu0 0
      %4733 = vmatprep.subr.bf16.mxu0 0
      %4734 = vmatpush1.bf16.msra.mxu0 0
      %4735 = vmatprep.subr.bf16.mxu0 0
      %4736 = vmatpush1.bf16.msra.mxu0 0
      %4737 = vmatprep.subr.bf16.mxu0 0
      %4738 = vmatpush1.bf16.msra.mxu0 0
      %4739 = vmatprep.subr.bf16.mxu0 0
      %4740 = vmatpush1.bf16.msra.mxu0 0
      %4741 = vmatprep.subr.bf16.mxu0 0
      %4742 = vmatpush1.bf16.msra.mxu0 0
      %4743 = vmatprep.subr.bf16.mxu0 0
      %4744 = vmatpush1.bf16.msra.mxu0 0
      %4745 = vmatprep.mubr.bf16.mxu0 0
      %4746 = vmatmul.mubr.bf16.gmra.mrb[0].mxu0 %v4666
      %v4747 = vpop.f32.mrb[0].mxu0
      %v4748 = vadd.f32 0.0, %v4747
      %v4749 = vpop.f32.mrb[0].mxu0
      %v4750 = vpop.f32.mrb[0].mxu0
      %v4751 = vadd.f32 0.0, %v4750
      %v4752 = vpop.f32.mrb[0].mxu0
      %4753 = vmatprep.mubr.bf16.mxu0 0
      %4754 = vmatmul.mubr.bf16.gmra.mrb[0].mxu0 %v4669
      %v4755 = vpop.f32.mrb[0].mxu0
      %v4756 = vadd.f32 0.0, %v4755
      %v4757 = vpop.f32.mrb[0].mxu0
      %v4758 = vpop.f32.mrb[0].mxu0
      %v4759 = vadd.f32 0.0, %v4758
      %v4760 = vpop.f32.mrb[0].mxu0
      %4761 = vmatprep.mubr.bf16.mxu0 0
      %4762 = vmatmul.mubr.bf16.gmra.mrb[0].mxu0 %v4666
      %v4763 = vpop.f32.mrb[0].mxu0
      %v4764 = vadd.f32 0.0, %v4763
      %v4765 = vpop.f32.mrb[0].mxu0
      %v4766 = vpop.f32.mrb[0].mxu0
      %v4767 = vadd.f32 0.0, %v4766
      %v4768 = vpop.f32.mrb[0].mxu0
      %4769 = vmatprep.mubr.bf16.mxu0 0
      %4770 = vmatmul.mubr.bf16.gmra.mrb[0].mxu0 %v4672
      %v4771 = vpop.f32.mrb[0].mxu0
      %v4772 = vadd.f32 0.0, %v4771
      %v4773 = vpop.f32.mrb[0].mxu0
      %v4774 = vpop.f32.mrb[0].mxu0
      %v4775 = vadd.f32 0.0, %v4774
      %v4776 = vpop.f32.mrb[0].mxu0
      %4777 = vmatprep.mubr.bf16.mxu0 0
      %4778 = vmatmul.mubr.bf16.gmra.mrb[0].mxu0 %v4675
      %v4779 = vpop.f32.mrb[0].mxu0
      %v4780 = vadd.f32 0.0, %v4779
      %v4781 = vpop.f32.mrb[0].mxu0
      %v4782 = vpop.f32.mrb[0].mxu0
      %v4783 = vadd.f32 0.0, %v4782
      %v4784 = vpop.f32.mrb[0].mxu0
      %4785 = vmatprep.mubr.bf16.mxu0 0
      %4786 = vmatmul.mubr.bf16.gmra.mrb[0].mxu0 %v4678
      %v4787 = vpop.f32.mrb[0].mxu0
      %v4788 = vadd.f32 0.0, %v4787
      %v4789 = vpop.f32.mrb[0].mxu0
      %v4790 = vpop.f32.mrb[0].mxu0
      %v4791 = vadd.f32 0.0, %v4790
      %v4792 = vpop.f32.mrb[0].mxu0
      %4793 = vmatprep.mubr.bf16.mxu0 0
      %4794 = vmatmul.mubr.bf16.gmra.mrb[0].mxu0 %v4681
      %v4795 = vpop.f32.mrb[0].mxu0
      %v4796 = vadd.f32 0.0, %v4795
      %v4797 = vpop.f32.mrb[0].mxu0
      %v4798 = vpop.f32.mrb[0].mxu0
      %v4799 = vadd.f32 0.0, %v4798
      %v4800 = vpop.f32.mrb[0].mxu0
      %4801 = vmatprep.mubr.bf16.mxu0 0
      %4802 = vmatmul.mubr.bf16.gmra.mrb[0].mxu0 %v4684
      %v4803 = vpop.f32.mrb[0].mxu0
      %v4804 = vadd.f32 0.0, %v4803
      %v4805 = vpop.f32.mrb[0].mxu0
      %v4806 = vpop.f32.mrb[0].mxu0
      %v4807 = vadd.f32 0.0, %v4806
      %v4808 = vpop.f32.mrb[0].mxu0
      %4809 = vmatprep.mubr.bf16.mxu0 0
      %4810 = vmatmul.mubr.bf16.gmra.mrb[0].mxu0 %v4687
      %v4811 = vpop.f32.mrb[0].mxu0
      %v4812 = vadd.f32 0.0, %v4811
      %v4813 = vpop.f32.mrb[0].mxu0
      %v4814 = vpop.f32.mrb[0].mxu0
      %v4815 = vadd.f32 0.0, %v4814
      %v4816 = vpop.f32.mrb[0].mxu0
      %4817 = vmatprep.mubr.bf16.mxu0 0
      %4818 = vmatmul.mubr.bf16.gmra.mrb[0].mxu0 %v4690
      %v4819 = vpop.f32.mrb[0].mxu0
      %v4820 = vadd.f32 0.0, %v4819
      %v4821 = vpop.f32.mrb[0].mxu0
      %v4822 = vpop.f32.mrb[0].mxu0
      %v4823 = vadd.f32 0.0, %v4822
      %v4824 = vpop.f32.mrb[0].mxu0
      %4825 = vmatprep.mubr.bf16.mxu0 0
      %4826 = vmatmul.mubr.bf16.gmra.mrb[0].mxu0 %v4693
      %v4827 = vpop.f32.mrb[0].mxu0
      %v4828 = vadd.f32 0.0, %v4827
      %v4829 = vpop.f32.mrb[0].mxu0
      %v4830 = vpop.f32.mrb[0].mxu0
      %v4831 = vadd.f32 0.0, %v4830
      %v4832 = vpop.f32.mrb[0].mxu0
      %4833 = vmatprep.mubr.bf16.mxu0 0
      %4834 = vmatmul.mubr.bf16.gmra.mrb[0].mxu0 %v4696
      %v4835 = vpop.f32.mrb[0].mxu0
      %v4836 = vadd.f32 0.0, %v4835
      %v4837 = vpop.f32.mrb[0].mxu0
      %v4838 = vpop.f32.mrb[0].mxu0
      %v4839 = vadd.f32 0.0, %v4838
      %v4840 = vpop.f32.mrb[0].mxu0
      %4841 = vmatprep.mubr.bf16.mxu0 0
      %4842 = vmatmul.mubr.bf16.gmra.mrb[0].mxu0 %v4699
      %v4843 = vpop.f32.mrb[0].mxu0
      %v4844 = vadd.f32 0.0, %v4843
      %v4845 = vpop.f32.mrb[0].mxu0
      %v4846 = vpop.f32.mrb[0].mxu0
      %v4847 = vadd.f32 0.0, %v4846
      %v4848 = vpop.f32.mrb[0].mxu0
      %4849 = vmatprep.mubr.bf16.mxu0 0
      %4850 = vmatmul.mubr.bf16.gmra.mrb[0].mxu0 %v4702
      %v4851 = vpop.f32.mrb[0].mxu0
      %v4852 = vadd.f32 0.0, %v4851
      %v4853 = vpop.f32.mrb[0].mxu0
      %v4854 = vpop.f32.mrb[0].mxu0
      %v4855 = vadd.f32 0.0, %v4854
      %v4856 = vpop.f32.mrb[0].mxu0
      %4857 = vmatprep.mubr.bf16.mxu0 0
      %4858 = vmatmul.mubr.bf16.gmra.mrb[0].mxu0 %v4705
      %v4859 = vpop.f32.mrb[0].mxu0
      %v4860 = vadd.f32 0.0, %v4859
      %v4861 = vpop.f32.mrb[0].mxu0
      %v4862 = vpop.f32.mrb[0].mxu0
      %v4863 = vadd.f32 0.0, %v4862
      %v4864 = vpop.f32.mrb[0].mxu0
      %4865 = vmatprep.mubr.bf16.mxu0 0
      %4866 = vmatmul.mubr.bf16.gmra.mrb[0].mxu0 %v4708
      %v4867 = vpop.f32.mrb[0].mxu0
      %v4868 = vadd.f32 0.0, %v4867
      %v4869 = vpop.f32.mrb[0].mxu0
      %v4870 = vpop.f32.mrb[0].mxu0
      %v4871 = vadd.f32 0.0, %v4870
      %v4872 = vpop.f32.mrb[0].mxu0
      %4873 = vdwg.mxu0
      %v4874 = vadd.f32 %v4558, %v4748
      %v4875 = vadd.f32 %v4559, %v4751
      %v4876 = vadd.f32 %v4560, %v4756
      %v4877 = vadd.f32 %v4561, %v4759
      %v4878 = vadd.f32 %v4562, %v4764
      %v4879 = vadd.f32 %v4563, %v4767
      %v4880 = vadd.f32 %v4564, %v4772
      %v4881 = vadd.f32 %v4565, %v4775
      %v4882 = vadd.f32 %v4566, %v4780
      %v4883 = vadd.f32 %v4567, %v4783
      %v4884 = vadd.f32 %v4568, %v4788
      %v4885 = vadd.f32 %v4569, %v4791
      %v4886 = vadd.f32 %v4570, %v4796
      %v4887 = vadd.f32 %v4571, %v4799
      %v4888 = vadd.f32 %v4572, %v4804
      %v4889 = vadd.f32 %v4573, %v4807
      %v4890 = vadd.f32 %v4574, %v4812
      %v4891 = vadd.f32 %v4575, %v4815
      %v4892 = vadd.f32 %v4576, %v4820
      %v4893 = vadd.f32 %v4577, %v4823
      %v4894 = vadd.f32 %v4578, %v4828
      %v4895 = vadd.f32 %v4579, %v4831
      %v4896 = vadd.f32 %v4580, %v4836
      %v4897 = vadd.f32 %v4581, %v4839
      %v4898 = vadd.f32 %v4582, %v4844
      %v4899 = vadd.f32 %v4583, %v4847
      %v4900 = vadd.f32 %v4584, %v4852
      %v4901 = vadd.f32 %v4585, %v4855
      %v4902 = vadd.f32 %v4586, %v4860
      %v4903 = vadd.f32 %v4587, %v4863
      %v4904 = vadd.f32 %v4588, %v4868
      %v4905 = vadd.f32 %v4589, %v4871
      %v4908 = vrot.slane %v3204, 1
      %v4909 = vrot.slane %v3205, 1
      %v4910 = vsel %vm1950, %v4908, %v4909
      %v4912 = vsel %vm533, %v4910, 0
      %v4915 = vsel %vm582, %v204, 0
      %4917 = vmatprep.subr.bf16.mxu0 0
      %4918 = vmatpush1.bf16.msra.mxu0 %v4915
      %4919 = vmatprep.subr.bf16.mxu0 0
      %4920 = vmatpush1.bf16.msra.mxu0 0
      %4921 = vmatprep.subr.bf16.mxu0 0
      %4922 = vmatpush1.bf16.msra.mxu0 0
      %4923 = vmatprep.subr.bf16.mxu0 0
      %4924 = vmatpush1.bf16.msra.mxu0 0
      %4925 = vmatprep.subr.bf16.mxu0 0
      %4926 = vmatpush1.bf16.msra.mxu0 0
      %4927 = vmatprep.subr.bf16.mxu0 0
      %4928 = vmatpush1.bf16.msra.mxu0 0
      %4929 = vmatprep.subr.bf16.mxu0 0
      %4930 = vmatpush1.bf16.msra.mxu0 0
      %4931 = vmatprep.subr.bf16.mxu0 0
      %4932 = vmatpush1.bf16.msra.mxu0 0
      %4933 = vmatprep.subr.bf16.mxu0 0
      %4934 = vmatpush1.bf16.msra.mxu0 0
      %4935 = vmatprep.subr.bf16.mxu0 0
      %4936 = vmatpush1.bf16.msra.mxu0 0
      %4937 = vmatprep.subr.bf16.mxu0 0
      %4938 = vmatpush1.bf16.msra.mxu0 0
      %4939 = vmatprep.subr.bf16.mxu0 0
      %4940 = vmatpush1.bf16.msra.mxu0 0
      %4941 = vmatprep.subr.bf16.mxu0 0
      %4942 = vmatpush1.bf16.msra.mxu0 0
      %4943 = vmatprep.subr.bf16.mxu0 0
      %4944 = vmatpush1.bf16.msra.mxu0 0
      %4945 = vmatprep.subr.bf16.mxu0 0
      %4946 = vmatpush1.bf16.msra.mxu0 0
      %4947 = vmatprep.subr.bf16.mxu0 0
      %4948 = vmatpush1.bf16.msra.mxu0 0
      %4949 = vmatprep.mubr.bf16.mxu0 0
      %4950 = vmatmul.mubr.bf16.gmra.mrb[0].mxu0 %v4669
      %v4951 = vpop.f32.mrb[0].mxu0
      %v4952 = vadd.f32 0.0, %v4951
      %v4953 = vpop.f32.mrb[0].mxu0
      %v4954 = vpop.f32.mrb[0].mxu0
      %v4955 = vadd.f32 0.0, %v4954
      %v4956 = vpop.f32.mrb[0].mxu0
      %4957 = vmatprep.mubr.bf16.mxu0 0
      %4958 = vmatmul.mubr.bf16.gmra.mrb[0].mxu0 %v4666
      %v4959 = vpop.f32.mrb[0].mxu0
      %v4960 = vadd.f32 0.0, %v4959
      %v4961 = vpop.f32.mrb[0].mxu0
      %v4962 = vpop.f32.mrb[0].mxu0
      %v4963 = vadd.f32 0.0, %v4962
      %v4964 = vpop.f32.mrb[0].mxu0
      %4965 = vmatprep.mubr.bf16.mxu0 0
      %4966 = vmatmul.mubr.bf16.gmra.mrb[0].mxu0 %v4672
      %v4967 = vpop.f32.mrb[0].mxu0
      %v4968 = vadd.f32 0.0, %v4967
      %v4969 = vpop.f32.mrb[0].mxu0
      %v4970 = vpop.f32.mrb[0].mxu0
      %v4971 = vadd.f32 0.0, %v4970
      %v4972 = vpop.f32.mrb[0].mxu0
      %4973 = vmatprep.mubr.bf16.mxu0 0
      %4974 = vmatmul.mubr.bf16.gmra.mrb[0].mxu0 %v4675
      %v4975 = vpop.f32.mrb[0].mxu0
      %v4976 = vadd.f32 0.0, %v4975
      %v4977 = vpop.f32.mrb[0].mxu0
      %v4978 = vpop.f32.mrb[0].mxu0
      %v4979 = vadd.f32 0.0, %v4978
      %v4980 = vpop.f32.mrb[0].mxu0
      %4981 = vmatprep.mubr.bf16.mxu0 0
      %4982 = vmatmul.mubr.bf16.gmra.mrb[0].mxu0 %v4678
      %v4983 = vpop.f32.mrb[0].mxu0
      %v4984 = vadd.f32 0.0, %v4983
      %v4985 = vpop.f32.mrb[0].mxu0
      %v4986 = vpop.f32.mrb[0].mxu0
      %v4987 = vadd.f32 0.0, %v4986
      %v4988 = vpop.f32.mrb[0].mxu0
      %4989 = vmatprep.mubr.bf16.mxu0 0
      %4990 = vmatmul.mubr.bf16.gmra.mrb[0].mxu0 %v4681
      %v4991 = vpop.f32.mrb[0].mxu0
      %v4992 = vadd.f32 0.0, %v4991
      %v4993 = vpop.f32.mrb[0].mxu0
      %v4994 = vpop.f32.mrb[0].mxu0
      %v4995 = vadd.f32 0.0, %v4994
      %v4996 = vpop.f32.mrb[0].mxu0
      %4997 = vmatprep.mubr.bf16.mxu0 0
      %4998 = vmatmul.mubr.bf16.gmra.mrb[0].mxu0 %v4684
      %v4999 = vpop.f32.mrb[0].mxu0
      %v5000 = vadd.f32 0.0, %v4999
      %v5001 = vpop.f32.mrb[0].mxu0
      %v5002 = vpop.f32.mrb[0].mxu0
      %v5003 = vadd.f32 0.0, %v5002
      %v5004 = vpop.f32.mrb[0].mxu0
      %5005 = vmatprep.mubr.bf16.mxu0 0
      %5006 = vmatmul.mubr.bf16.gmra.mrb[0].mxu0 %v4687
      %v5007 = vpop.f32.mrb[0].mxu0
      %v5008 = vadd.f32 0.0, %v5007
      %v5009 = vpop.f32.mrb[0].mxu0
      %v5010 = vpop.f32.mrb[0].mxu0
      %v5011 = vadd.f32 0.0, %v5010
      %v5012 = vpop.f32.mrb[0].mxu0
      %5013 = vmatprep.mubr.bf16.mxu0 0
      %5014 = vmatmul.mubr.bf16.gmra.mrb[0].mxu0 %v4690
      %v5015 = vpop.f32.mrb[0].mxu0
      %v5016 = vadd.f32 0.0, %v5015
      %v5017 = vpop.f32.mrb[0].mxu0
      %v5018 = vpop.f32.mrb[0].mxu0
      %v5019 = vadd.f32 0.0, %v5018
      %v5020 = vpop.f32.mrb[0].mxu0
      %5021 = vmatprep.mubr.bf16.mxu0 0
      %5022 = vmatmul.mubr.bf16.gmra.mrb[0].mxu0 %v4693
      %v5023 = vpop.f32.mrb[0].mxu0
      %v5024 = vadd.f32 0.0, %v5023
      %v5025 = vpop.f32.mrb[0].mxu0
      %v5026 = vpop.f32.mrb[0].mxu0
      %v5027 = vadd.f32 0.0, %v5026
      %v5028 = vpop.f32.mrb[0].mxu0
      %5029 = vmatprep.mubr.bf16.mxu0 0
      %5030 = vmatmul.mubr.bf16.gmra.mrb[0].mxu0 %v4696
      %v5031 = vpop.f32.mrb[0].mxu0
      %v5032 = vadd.f32 0.0, %v5031
      %v5033 = vpop.f32.mrb[0].mxu0
      %v5034 = vpop.f32.mrb[0].mxu0
      %v5035 = vadd.f32 0.0, %v5034
      %v5036 = vpop.f32.mrb[0].mxu0
      %5037 = vmatprep.mubr.bf16.mxu0 0
      %5038 = vmatmul.mubr.bf16.gmra.mrb[0].mxu0 %v4699
      %v5039 = vpop.f32.mrb[0].mxu0
      %v5040 = vadd.f32 0.0, %v5039
      %v5041 = vpop.f32.mrb[0].mxu0
      %v5042 = vpop.f32.mrb[0].mxu0
      %v5043 = vadd.f32 0.0, %v5042
      %v5044 = vpop.f32.mrb[0].mxu0
      %5045 = vmatprep.mubr.bf16.mxu0 0
      %5046 = vmatmul.mubr.bf16.gmra.mrb[0].mxu0 %v4702
      %v5047 = vpop.f32.mrb[0].mxu0
      %v5048 = vadd.f32 0.0, %v5047
      %v5049 = vpop.f32.mrb[0].mxu0
      %v5050 = vpop.f32.mrb[0].mxu0
      %v5051 = vadd.f32 0.0, %v5050
      %v5052 = vpop.f32.mrb[0].mxu0
      %5053 = vmatprep.mubr.bf16.mxu0 0
      %5054 = vmatmul.mubr.bf16.gmra.mrb[0].mxu0 %v4705
      %v5055 = vpop.f32.mrb[0].mxu0
      %v5056 = vadd.f32 0.0, %v5055
      %v5057 = vpop.f32.mrb[0].mxu0
      %v5058 = vpop.f32.mrb[0].mxu0
      %v5059 = vadd.f32 0.0, %v5058
      %v5060 = vpop.f32.mrb[0].mxu0
      %5061 = vmatprep.mubr.bf16.mxu0 0
      %5062 = vmatmul.mubr.bf16.gmra.mrb[0].mxu0 %v4708
      %v5063 = vpop.f32.mrb[0].mxu0
      %v5064 = vadd.f32 0.0, %v5063
      %v5065 = vpop.f32.mrb[0].mxu0
      %v5066 = vpop.f32.mrb[0].mxu0
      %v5067 = vadd.f32 0.0, %v5066
      %v5068 = vpop.f32.mrb[0].mxu0
      %5069 = vmatprep.mubr.bf16.mxu0 0
      %5070 = vmatmul.mubr.bf16.gmra.mrb[0].mxu0 %v4912
      %v5071 = vpop.f32.mrb[0].mxu0
      %v5072 = vadd.f32 0.0, %v5071
      %v5073 = vpop.f32.mrb[0].mxu0
      %v5074 = vpop.f32.mrb[0].mxu0
      %v5075 = vadd.f32 0.0, %v5074
      %v5076 = vpop.f32.mrb[0].mxu0
      %5077 = vdwg.mxu0
      %v5078 = vadd.f32 %v4874, %v4952
      %v5079 = vadd.f32 %v4875, %v4955
      %v5080 = vadd.f32 %v4876, %v4960
      %v5081 = vadd.f32 %v4877, %v4963
      %v5082 = vadd.f32 %v4878, %v4968
      %v5083 = vadd.f32 %v4879, %v4971
      %v5084 = vadd.f32 %v4880, %v4976
      %v5085 = vadd.f32 %v4881, %v4979
      %v5086 = vadd.f32 %v4882, %v4984
      %v5087 = vadd.f32 %v4883, %v4987
      %v5088 = vadd.f32 %v4884, %v4992
      %v5089 = vadd.f32 %v4885, %v4995
      %v5090 = vadd.f32 %v4886, %v5000
      %v5091 = vadd.f32 %v4887, %v5003
      %v5092 = vadd.f32 %v4888, %v5008
      %v5093 = vadd.f32 %v4889, %v5011
      %v5094 = vadd.f32 %v4890, %v5016
      %v5095 = vadd.f32 %v4891, %v5019
      %v5096 = vadd.f32 %v4892, %v5024
      %v5097 = vadd.f32 %v4893, %v5027
      %v5098 = vadd.f32 %v4894, %v5032
      %v5099 = vadd.f32 %v4895, %v5035
      %v5100 = vadd.f32 %v4896, %v5040
      %v5101 = vadd.f32 %v4897, %v5043
      %v5102 = vadd.f32 %v4898, %v5048
      %v5103 = vadd.f32 %v4899, %v5051
      %v5104 = vadd.f32 %v4900, %v5056
      %v5105 = vadd.f32 %v4901, %v5059
      %v5106 = vadd.f32 %v4902, %v5064
      %v5107 = vadd.f32 %v4903, %v5067
      %v5108 = vadd.f32 %v4904, %v5072
      %v5109 = vadd.f32 %v4905, %v5075
      %v5111 = vsel %vm582, %v207, 0
      %5113 = vmatprep.subr.bf16.mxu0 0
      %5114 = vmatpush1.bf16.msra.mxu0 %v5111
      %5115 = vmatprep.subr.bf16.mxu0 0
      %5116 = vmatpush1.bf16.msra.mxu0 0
      %5117 = vmatprep.subr.bf16.mxu0 0
      %5118 = vmatpush1.bf16.msra.mxu0 0
      %5119 = vmatprep.subr.bf16.mxu0 0
      %5120 = vmatpush1.bf16.msra.mxu0 0
      %5121 = vmatprep.subr.bf16.mxu0 0
      %5122 = vmatpush1.bf16.msra.mxu0 0
      %5123 = vmatprep.subr.bf16.mxu0 0
      %5124 = vmatpush1.bf16.msra.mxu0 0
      %5125 = vmatprep.subr.bf16.mxu0 0
      %5126 = vmatpush1.bf16.msra.mxu0 0
      %5127 = vmatprep.subr.bf16.mxu0 0
      %5128 = vmatpush1.bf16.msra.mxu0 0
      %5129 = vmatprep.subr.bf16.mxu0 0
      %5130 = vmatpush1.bf16.msra.mxu0 0
      %5131 = vmatprep.subr.bf16.mxu0 0
      %5132 = vmatpush1.bf16.msra.mxu0 0
      %5133 = vmatprep.subr.bf16.mxu0 0
      %5134 = vmatpush1.bf16.msra.mxu0 0
      %5135 = vmatprep.subr.bf16.mxu0 0
      %5136 = vmatpush1.bf16.msra.mxu0 0
      %5137 = vmatprep.subr.bf16.mxu0 0
      %5138 = vmatpush1.bf16.msra.mxu0 0
      %5139 = vmatprep.subr.bf16.mxu0 0
      %5140 = vmatpush1.bf16.msra.mxu0 0
      %5141 = vmatprep.subr.bf16.mxu0 0
      %5142 = vmatpush1.bf16.msra.mxu0 0
      %5143 = vmatprep.subr.bf16.mxu0 0
      %5144 = vmatpush1.bf16.msra.mxu0 0
      %5145 = vmatprep.mubr.bf16.mxu0 0
      %5146 = vmatmul.mubr.bf16.gmra.mrb[0].mxu0 %v4666
      %v5147 = vpop.f32.mrb[0].mxu0
      %v5148 = vadd.f32 0.0, %v5147
      %v5149 = vpop.f32.mrb[0].mxu0
      %v5150 = vpop.f32.mrb[0].mxu0
      %v5151 = vadd.f32 0.0, %v5150
      %v5152 = vpop.f32.mrb[0].mxu0
      %5153 = vmatprep.mubr.bf16.mxu0 0
      %5154 = vmatmul.mubr.bf16.gmra.mrb[0].mxu0 %v4672
      %v5155 = vpop.f32.mrb[0].mxu0
      %v5156 = vadd.f32 0.0, %v5155
      %v5157 = vpop.f32.mrb[0].mxu0
      %v5158 = vpop.f32.mrb[0].mxu0
      %v5159 = vadd.f32 0.0, %v5158
      %v5160 = vpop.f32.mrb[0].mxu0
      %5161 = vmatprep.mubr.bf16.mxu0 0
      %5162 = vmatmul.mubr.bf16.gmra.mrb[0].mxu0 %v4675
      %v5163 = vpop.f32.mrb[0].mxu0
      %v5164 = vadd.f32 0.0, %v5163
      %v5165 = vpop.f32.mrb[0].mxu0
      %v5166 = vpop.f32.mrb[0].mxu0
      %v5167 = vadd.f32 0.0, %v5166
      %v5168 = vpop.f32.mrb[0].mxu0
      %5169 = vmatprep.mubr.bf16.mxu0 0
      %5170 = vmatmul.mubr.bf16.gmra.mrb[0].mxu0 %v4678
      %v5171 = vpop.f32.mrb[0].mxu0
      %v5172 = vadd.f32 0.0, %v5171
      %v5173 = vpop.f32.mrb[0].mxu0
      %v5174 = vpop.f32.mrb[0].mxu0
      %v5175 = vadd.f32 0.0, %v5174
      %v5176 = vpop.f32.mrb[0].mxu0
      %5177 = vmatprep.mubr.bf16.mxu0 0
      %5178 = vmatmul.mubr.bf16.gmra.mrb[0].mxu0 %v4681
      %v5179 = vpop.f32.mrb[0].mxu0
      %v5180 = vadd.f32 0.0, %v5179
      %v5181 = vpop.f32.mrb[0].mxu0
      %v5182 = vpop.f32.mrb[0].mxu0
      %v5183 = vadd.f32 0.0, %v5182
      %v5184 = vpop.f32.mrb[0].mxu0
      %5185 = vmatprep.mubr.bf16.mxu0 0
      %5186 = vmatmul.mubr.bf16.gmra.mrb[0].mxu0 %v4684
      %v5187 = vpop.f32.mrb[0].mxu0
      %v5188 = vadd.f32 0.0, %v5187
      %v5189 = vpop.f32.mrb[0].mxu0
      %v5190 = vpop.f32.mrb[0].mxu0
      %v5191 = vadd.f32 0.0, %v5190
      %v5192 = vpop.f32.mrb[0].mxu0
      %5193 = vmatprep.mubr.bf16.mxu0 0
      %5194 = vmatmul.mubr.bf16.gmra.mrb[0].mxu0 %v4687
      %v5195 = vpop.f32.mrb[0].mxu0
      %v5196 = vadd.f32 0.0, %v5195
      %v5197 = vpop.f32.mrb[0].mxu0
      %v5198 = vpop.f32.mrb[0].mxu0
      %v5199 = vadd.f32 0.0, %v5198
      %v5200 = vpop.f32.mrb[0].mxu0
      %5201 = vmatprep.mubr.bf16.mxu0 0
      %5202 = vmatmul.mubr.bf16.gmra.mrb[0].mxu0 %v4690
      %v5203 = vpop.f32.mrb[0].mxu0
      %v5204 = vadd.f32 0.0, %v5203
      %v5205 = vpop.f32.mrb[0].mxu0
      %v5206 = vpop.f32.mrb[0].mxu0
      %v5207 = vadd.f32 0.0, %v5206
      %v5208 = vpop.f32.mrb[0].mxu0
      %5209 = vmatprep.mubr.bf16.mxu0 0
      %5210 = vmatmul.mubr.bf16.gmra.mrb[0].mxu0 %v4693
      %v5211 = vpop.f32.mrb[0].mxu0
      %v5212 = vadd.f32 0.0, %v5211
      %v5213 = vpop.f32.mrb[0].mxu0
      %v5214 = vpop.f32.mrb[0].mxu0
      %v5215 = vadd.f32 0.0, %v5214
      %v5216 = vpop.f32.mrb[0].mxu0
      %5217 = vmatprep.mubr.bf16.mxu0 0
      %5218 = vmatmul.mubr.bf16.gmra.mrb[0].mxu0 %v4696
      %v5219 = vpop.f32.mrb[0].mxu0
      %v5220 = vadd.f32 0.0, %v5219
      %v5221 = vpop.f32.mrb[0].mxu0
      %v5222 = vpop.f32.mrb[0].mxu0
      %v5223 = vadd.f32 0.0, %v5222
      %v5224 = vpop.f32.mrb[0].mxu0
      %5225 = vmatprep.mubr.bf16.mxu0 0
      %5226 = vmatmul.mubr.bf16.gmra.mrb[0].mxu0 %v4699
      %v5227 = vpop.f32.mrb[0].mxu0
      %v5228 = vadd.f32 0.0, %v5227
      %v5229 = vpop.f32.mrb[0].mxu0
      %v5230 = vpop.f32.mrb[0].mxu0
      %v5231 = vadd.f32 0.0, %v5230
      %v5232 = vpop.f32.mrb[0].mxu0
      %5233 = vmatprep.mubr.bf16.mxu0 0
      %5234 = vmatmul.mubr.bf16.gmra.mrb[0].mxu0 %v4702
      %v5235 = vpop.f32.mrb[0].mxu0
      %v5236 = vadd.f32 0.0, %v5235
      %v5237 = vpop.f32.mrb[0].mxu0
      %v5238 = vpop.f32.mrb[0].mxu0
      %v5239 = vadd.f32 0.0, %v5238
      %v5240 = vpop.f32.mrb[0].mxu0
      %5241 = vmatprep.mubr.bf16.mxu0 0
      %5242 = vmatmul.mubr.bf16.gmra.mrb[0].mxu0 %v4705
      %v5243 = vpop.f32.mrb[0].mxu0
      %v5244 = vadd.f32 0.0, %v5243
      %v5245 = vpop.f32.mrb[0].mxu0
      %v5246 = vpop.f32.mrb[0].mxu0
      %v5247 = vadd.f32 0.0, %v5246
      %v5248 = vpop.f32.mrb[0].mxu0
      %5249 = vmatprep.mubr.bf16.mxu0 0
      %5250 = vmatmul.mubr.bf16.gmra.mrb[0].mxu0 %v4708
      %v5251 = vpop.f32.mrb[0].mxu0
      %v5252 = vadd.f32 0.0, %v5251
      %v5253 = vpop.f32.mrb[0].mxu0
      %v5254 = vpop.f32.mrb[0].mxu0
      %v5255 = vadd.f32 0.0, %v5254
      %v5256 = vpop.f32.mrb[0].mxu0
      %5257 = vmatprep.mubr.bf16.mxu0 0
      %5258 = vmatmul.mubr.bf16.gmra.mrb[0].mxu0 %v4912
      %v5259 = vpop.f32.mrb[0].mxu0
      %v5260 = vadd.f32 0.0, %v5259
      %v5261 = vpop.f32.mrb[0].mxu0
      %v5262 = vpop.f32.mrb[0].mxu0
      %v5263 = vadd.f32 0.0, %v5262
      %v5264 = vpop.f32.mrb[0].mxu0
      %5265 = vmatprep.mubr.bf16.mxu0 0
      %5266 = vmatmul.mubr.bf16.gmra.mrb[0].mxu0 %v4708
      %v5267 = vpop.f32.mrb[0].mxu0
      %v5268 = vadd.f32 0.0, %v5267
      %v5269 = vpop.f32.mrb[0].mxu0
      %v5270 = vpop.f32.mrb[0].mxu0
      %v5271 = vadd.f32 0.0, %v5270
      %v5272 = vpop.f32.mrb[0].mxu0
      %5273 = vdwg.mxu0
      %v5274 = vadd.f32 %v5078, %v5148
      %v5275 = vadd.f32 %v5079, %v5151
      %v5276 = vadd.f32 %v5080, %v5156
      %v5277 = vadd.f32 %v5081, %v5159
      %v5278 = vadd.f32 %v5082, %v5164
      %v5279 = vadd.f32 %v5083, %v5167
      %v5280 = vadd.f32 %v5084, %v5172
      %v5281 = vadd.f32 %v5085, %v5175
      %v5282 = vadd.f32 %v5086, %v5180
      %v5283 = vadd.f32 %v5087, %v5183
      %v5284 = vadd.f32 %v5088, %v5188
      %v5285 = vadd.f32 %v5089, %v5191
      %v5286 = vadd.f32 %v5090, %v5196
      %v5287 = vadd.f32 %v5091, %v5199
      %v5288 = vadd.f32 %v5092, %v5204
      %v5289 = vadd.f32 %v5093, %v5207
      %v5290 = vadd.f32 %v5094, %v5212
      %v5291 = vadd.f32 %v5095, %v5215
      %v5292 = vadd.f32 %v5096, %v5220
      %v5293 = vadd.f32 %v5097, %v5223
      %v5294 = vadd.f32 %v5098, %v5228
      %v5295 = vadd.f32 %v5099, %v5231
      %v5296 = vadd.f32 %v5100, %v5236
      %v5297 = vadd.f32 %v5101, %v5239
      %v5298 = vadd.f32 %v5102, %v5244
      %v5299 = vadd.f32 %v5103, %v5247
      %v5300 = vadd.f32 %v5104, %v5252
      %v5301 = vadd.f32 %v5105, %v5255
      %v5302 = vadd.f32 %v5106, %v5260
      %v5303 = vadd.f32 %v5107, %v5263
      %v5304 = vadd.f32 %v5108, %v5268
      %v5305 = vadd.f32 %v5109, %v5271
      %v5306 = vsel %vm533, %v5274, 0.0
      %v5307 = vsel %vm533, %v5275, 0.0
      %v5308 = vadd.f32 %v5306, %v5307
      %v5309 = vsel %vm533, %v5276, 0.0
      %v5310 = vadd.f32 %v5308, %v5309
      %v5311 = vsel %vm533, %v5277, 0.0
      %v5312 = vadd.f32 %v5310, %v5311
      %v5313 = vsel %vm533, %v5278, 0.0
      %v5314 = vadd.f32 %v5312, %v5313
      %v5315 = vsel %vm533, %v5279, 0.0
      %v5316 = vadd.f32 %v5314, %v5315
      %v5317 = vsel %vm533, %v5280, 0.0
      %v5318 = vadd.f32 %v5316, %v5317
      %v5319 = vsel %vm533, %v5281, 0.0
      %v5320 = vadd.f32 %v5318, %v5319
      %v5321 = vsel %vm533, %v5282, 0.0
      %v5322 = vadd.f32 %v5320, %v5321
      %v5323 = vsel %vm533, %v5283, 0.0
      %v5324 = vadd.f32 %v5322, %v5323
      %v5325 = vsel %vm533, %v5284, 0.0
      %v5326 = vadd.f32 %v5324, %v5325
      %v5327 = vsel %vm533, %v5285, 0.0
      %v5328 = vadd.f32 %v5326, %v5327
      %v5329 = vsel %vm533, %v5286, 0.0
      %v5330 = vadd.f32 %v5328, %v5329
      %v5331 = vsel %vm533, %v5287, 0.0
      %v5332 = vadd.f32 %v5330, %v5331
      %v5333 = vsel %vm533, %v5288, 0.0
      %v5334 = vadd.f32 %v5332, %v5333
      %v5335 = vsel %vm533, %v5289, 0.0
      %v5336 = vadd.f32 %v5334, %v5335
      %v5337 = vsel %vm533, %v5290, 0.0
      %v5338 = vadd.f32 %v5336, %v5337
      %v5339 = vsel %vm533, %v5291, 0.0
      %v5340 = vadd.f32 %v5338, %v5339
      %v5341 = vsel %vm533, %v5292, 0.0
      %v5342 = vadd.f32 %v5340, %v5341
      %v5343 = vsel %vm533, %v5293, 0.0
      %v5344 = vadd.f32 %v5342, %v5343
      %v5345 = vsel %vm533, %v5294, 0.0
      %v5346 = vadd.f32 %v5344, %v5345
      %v5347 = vsel %vm533, %v5295, 0.0
      %v5348 = vadd.f32 %v5346, %v5347
      %v5349 = vsel %vm533, %v5296, 0.0
      %v5350 = vadd.f32 %v5348, %v5349
      %v5351 = vsel %vm533, %v5297, 0.0
      %v5352 = vadd.f32 %v5350, %v5351
      %v5353 = vsel %vm533, %v5298, 0.0
      %v5354 = vadd.f32 %v5352, %v5353
      %v5355 = vsel %vm533, %v5299, 0.0
      %v5356 = vadd.f32 %v5354, %v5355
      %v5357 = vsel %vm533, %v5300, 0.0
      %v5358 = vadd.f32 %v5356, %v5357
      %v5359 = vsel %vm533, %v5301, 0.0
      %v5360 = vadd.f32 %v5358, %v5359
      %v5361 = vsel %vm533, %v5302, 0.0
      %v5362 = vadd.f32 %v5360, %v5361
      %v5363 = vsel %vm533, %v5303, 0.0
      %v5364 = vadd.f32 %v5362, %v5363
      %v5365 = vsel %vm533, %v5304, 0.0
      %v5366 = vadd.f32 %v5364, %v5365
      %v5367 = vsel %vm533, %v5305, 0.0
      %v5368 = vadd.f32 %v5366, %v5367
      %v5369 = vrot.slane %v5368, 4
      %v5370 = vadd.f32 %v5368, %v5369
      %v5371 = vrot.slane %v5370, 2
      %v5372 = vadd.f32 %v5370, %v5371
      %v5373 = vrot.slane %v5372, 1
      %v5374 = vadd.f32 %v5372, %v5373
      %v5375 = vmul.f32 %v5274, %v5274
      %v5376 = vmul.f32 %v5275, %v5275
      %v5377 = vmul.f32 %v5276, %v5276
      %v5378 = vmul.f32 %v5277, %v5277
      %v5379 = vmul.f32 %v5278, %v5278
      %v5380 = vmul.f32 %v5279, %v5279
      %v5381 = vmul.f32 %v5280, %v5280
      %v5382 = vmul.f32 %v5281, %v5281
      %v5383 = vmul.f32 %v5282, %v5282
      %v5384 = vmul.f32 %v5283, %v5283
      %v5385 = vmul.f32 %v5284, %v5284
      %v5386 = vmul.f32 %v5285, %v5285
      %v5387 = vmul.f32 %v5286, %v5286
      %v5388 = vmul.f32 %v5287, %v5287
      %v5389 = vmul.f32 %v5288, %v5288
      %v5390 = vmul.f32 %v5289, %v5289
      %v5391 = vmul.f32 %v5290, %v5290
      %v5392 = vmul.f32 %v5291, %v5291
      %v5393 = vmul.f32 %v5292, %v5292
      %v5394 = vmul.f32 %v5293, %v5293
      %v5395 = vmul.f32 %v5294, %v5294
      %v5396 = vmul.f32 %v5295, %v5295
      %v5397 = vmul.f32 %v5296, %v5296
      %v5398 = vmul.f32 %v5297, %v5297
      %v5399 = vmul.f32 %v5298, %v5298
      %v5400 = vmul.f32 %v5299, %v5299
      %v5401 = vmul.f32 %v5300, %v5300
      %v5402 = vmul.f32 %v5301, %v5301
      %v5403 = vmul.f32 %v5302, %v5302
      %v5404 = vmul.f32 %v5303, %v5303
      %v5405 = vmul.f32 %v5304, %v5304
      %v5406 = vmul.f32 %v5305, %v5305
      %v5407 = vsel %vm533, %v5375, 0.0
      %v5408 = vsel %vm533, %v5376, 0.0
      %v5409 = vadd.f32 %v5407, %v5408
      %v5410 = vsel %vm533, %v5377, 0.0
      %v5411 = vadd.f32 %v5409, %v5410
      %v5412 = vsel %vm533, %v5378, 0.0
      %v5413 = vadd.f32 %v5411, %v5412
      %v5414 = vsel %vm533, %v5379, 0.0
      %v5415 = vadd.f32 %v5413, %v5414
      %v5416 = vsel %vm533, %v5380, 0.0
      %v5417 = vadd.f32 %v5415, %v5416
      %v5418 = vsel %vm533, %v5381, 0.0
      %v5419 = vadd.f32 %v5417, %v5418
      %v5420 = vsel %vm533, %v5382, 0.0
      %v5421 = vadd.f32 %v5419, %v5420
      %v5422 = vsel %vm533, %v5383, 0.0
      %v5423 = vadd.f32 %v5421, %v5422
      %v5424 = vsel %vm533, %v5384, 0.0
      %v5425 = vadd.f32 %v5423, %v5424
      %v5426 = vsel %vm533, %v5385, 0.0
      %v5427 = vadd.f32 %v5425, %v5426
      %v5428 = vsel %vm533, %v5386, 0.0
      %v5429 = vadd.f32 %v5427, %v5428
      %v5430 = vsel %vm533, %v5387, 0.0
      %v5431 = vadd.f32 %v5429, %v5430
      %v5432 = vsel %vm533, %v5388, 0.0
      %v5433 = vadd.f32 %v5431, %v5432
      %v5434 = vsel %vm533, %v5389, 0.0
      %v5435 = vadd.f32 %v5433, %v5434
      %v5436 = vsel %vm533, %v5390, 0.0
      %v5437 = vadd.f32 %v5435, %v5436
      %v5438 = vsel %vm533, %v5391, 0.0
      %v5439 = vadd.f32 %v5437, %v5438
      %v5440 = vsel %vm533, %v5392, 0.0
      %v5441 = vadd.f32 %v5439, %v5440
      %v5442 = vsel %vm533, %v5393, 0.0
      %v5443 = vadd.f32 %v5441, %v5442
      %v5444 = vsel %vm533, %v5394, 0.0
      %v5445 = vadd.f32 %v5443, %v5444
      %v5446 = vsel %vm533, %v5395, 0.0
      %v5447 = vadd.f32 %v5445, %v5446
      %v5448 = vsel %vm533, %v5396, 0.0
      %v5449 = vadd.f32 %v5447, %v5448
      %v5450 = vsel %vm533, %v5397, 0.0
      %v5451 = vadd.f32 %v5449, %v5450
      %v5452 = vsel %vm533, %v5398, 0.0
      %v5453 = vadd.f32 %v5451, %v5452
      %v5454 = vsel %vm533, %v5399, 0.0
      %v5455 = vadd.f32 %v5453, %v5454
      %v5456 = vsel %vm533, %v5400, 0.0
      %v5457 = vadd.f32 %v5455, %v5456
      %v5458 = vsel %vm533, %v5401, 0.0
      %v5459 = vadd.f32 %v5457, %v5458
      %v5460 = vsel %vm533, %v5402, 0.0
      %v5461 = vadd.f32 %v5459, %v5460
      %v5462 = vsel %vm533, %v5403, 0.0
      %v5463 = vadd.f32 %v5461, %v5462
      %v5464 = vsel %vm533, %v5404, 0.0
      %v5465 = vadd.f32 %v5463, %v5464
      %v5466 = vsel %vm533, %v5405, 0.0
      %v5467 = vadd.f32 %v5465, %v5466
      %v5468 = vsel %vm533, %v5406, 0.0
      %v5469 = vadd.f32 %v5467, %v5468
      %v5470 = vrot.slane %v5469, 4
      %v5471 = vadd.f32 %v5469, %v5470
      %v5472 = vrot.slane %v5471, 2
      %v5473 = vadd.f32 %v5471, %v5472
      %v5474 = vrot.slane %v5473, 1
      %v5475 = vadd.f32 %v5473, %v5474
      %v5476 = vmul.f32 %v5374, 0.00390625
      %v5477 = vmul.f32 %v5476, %v5374
      %v5478 = vsub.f32 %v5475, %v5477
      %v5479 = vmul.f32 %v5478, 0.003921569
      %v5480 = vadd.f32 %v5479, 1e-05
      %v5481 = vrsqrt.pop %v5480
      %v5482 = vsel %vm533, %v5374, 0.0
      %5483 = vadd.xlane.f32.xlu0 %v5482
      %v5484 = vpop.xlane.xlu0 %5483
      %v5485 = vsel %vm533, %v5475, 0.0
      %5486 = vadd.xlane.f32.xlu0 %v5485
      %v5487 = vpop.xlane.xlu0 %5486
      %v5488 = vmul.f32 %v5484, 0.0009765625
      %v5489 = vmul.f32 %v5488, %v5484
      %v5490 = vsub.f32 %v5487, %v5489
      %v5491 = vmul.f32 %v5490, 0.0009775171
      %v5492 = vadd.f32 %v5491, 1e-05
      %v5493 = vrsqrt.pop %v5492
      %v5494 = vmul.f32 %v208, %v5481
      %v5495 = vmul.f32 %v2826, %v5493
      %v5496 = vadd.f32 %v5494, %v5495
      %v5498 = vrot.slane %v5496, 3
      %v5500 = vmul.f32 %v208, %v5498
      %v5501 = vmul.f32 %v208, %v5476
      %v5502 = vmul.f32 %v5501, %v5481
      %v5503 = vmul.f32 %v2826, %v5488
      %v5504 = vmul.f32 %v5503, %v5493
      %v5505 = vadd.f32 %v5502, %v5504
      %v5507 = vrot.slane %v5505, 3
      %v5509 = vmul.f32 %v208, %v5507
      %v5511 = vrot.slane %v5509, 7
      %v5513 = vsub.f32 %v208, %v5511
      %v5514 = vlaneseq
      %v5515 = vshrl.u32 %v5514, 7
      %v5516 = vsub.s32 0, %v5515
      %v5517 = vrot.slane %v5500, %v5516
      %v5518 = vmul.f32 %v5274, %v5517
      %v5519 = vmul.f32 %v5275, %v5517
      %v5520 = vmul.f32 %v5276, %v5517
      %v5521 = vmul.f32 %v5277, %v5517
      %v5522 = vmul.f32 %v5278, %v5517
      %v5523 = vmul.f32 %v5279, %v5517
      %v5524 = vmul.f32 %v5280, %v5517
      %v5525 = vmul.f32 %v5281, %v5517
      %v5526 = vmul.f32 %v5282, %v5517
      %v5527 = vmul.f32 %v5283, %v5517
      %v5528 = vmul.f32 %v5284, %v5517
      %v5529 = vmul.f32 %v5285, %v5517
      %v5530 = vmul.f32 %v5286, %v5517
      %v5531 = vmul.f32 %v5287, %v5517
      %v5532 = vmul.f32 %v5288, %v5517
      %v5533 = vmul.f32 %v5289, %v5517
      %v5534 = vmul.f32 %v5290, %v5517
      %v5535 = vmul.f32 %v5291, %v5517
      %v5536 = vmul.f32 %v5292, %v5517
      %v5537 = vmul.f32 %v5293, %v5517
      %v5538 = vmul.f32 %v5294, %v5517
      %v5539 = vmul.f32 %v5295, %v5517
      %v5540 = vmul.f32 %v5296, %v5517
      %v5541 = vmul.f32 %v5297, %v5517
      %v5542 = vmul.f32 %v5298, %v5517
      %v5543 = vmul.f32 %v5299, %v5517
      %v5544 = vmul.f32 %v5300, %v5517
      %v5545 = vmul.f32 %v5301, %v5517
      %v5546 = vmul.f32 %v5302, %v5517
      %v5547 = vmul.f32 %v5303, %v5517
      %v5548 = vmul.f32 %v5304, %v5517
      %v5549 = vmul.f32 %v5305, %v5517
      %v5550 = vlaneseq
      %v5551 = vshrl.u32 %v5550, 7
      %v5552 = vsub.s32 1, %v5551
      %v5553 = vrot.slane %v5513, %v5552
      %v5554 = vadd.f32 %v5518, %v5553
      %v5555 = vadd.f32 %v5519, %v5553
      %v5556 = vadd.f32 %v5520, %v5553
      %v5557 = vadd.f32 %v5521, %v5553
      %v5558 = vadd.f32 %v5522, %v5553
      %v5559 = vadd.f32 %v5523, %v5553
      %v5560 = vadd.f32 %v5524, %v5553
      %v5561 = vadd.f32 %v5525, %v5553
      %v5562 = vadd.f32 %v5526, %v5553
      %v5563 = vadd.f32 %v5527, %v5553
      %v5564 = vadd.f32 %v5528, %v5553
      %v5565 = vadd.f32 %v5529, %v5553
      %v5566 = vadd.f32 %v5530, %v5553
      %v5567 = vadd.f32 %v5531, %v5553
      %v5568 = vadd.f32 %v5532, %v5553
      %v5569 = vadd.f32 %v5533, %v5553
      %v5570 = vadd.f32 %v5534, %v5553
      %v5571 = vadd.f32 %v5535, %v5553
      %v5572 = vadd.f32 %v5536, %v5553
      %v5573 = vadd.f32 %v5537, %v5553
      %v5574 = vadd.f32 %v5538, %v5553
      %v5575 = vadd.f32 %v5539, %v5553
      %v5576 = vadd.f32 %v5540, %v5553
      %v5577 = vadd.f32 %v5541, %v5553
      %v5578 = vadd.f32 %v5542, %v5553
      %v5579 = vadd.f32 %v5543, %v5553
      %v5580 = vadd.f32 %v5544, %v5553
      %v5581 = vadd.f32 %v5545, %v5553
      %v5582 = vadd.f32 %v5546, %v5553
      %v5583 = vadd.f32 %v5547, %v5553
      %v5584 = vadd.f32 %v5548, %v5553
      %v5585 = vadd.f32 %v5549, %v5553
      %5586 = vxpose.xlu0.b32.start [1/16] %v5554, 128
      %5587 = vxpose.xlu0.b32.cont [2/16] %v5555, 128
      %5588 = vxpose.xlu0.b32.cont [3/16] %v5556, 128
      %5589 = vxpose.xlu0.b32.cont [4/16] %v5557, 128
      %5590 = vxpose.xlu0.b32.cont [5/16] %v5558, 128
      %5591 = vxpose.xlu0.b32.cont [6/16] %v5559, 128
      %5592 = vxpose.xlu0.b32.cont [7/16] %v5560, 128
      %5593 = vxpose.xlu0.b32.cont [8/16] %v5561, 128
      %5594 = vxpose.xlu0.b32.cont [9/16] %v5562, 128
      %5595 = vxpose.xlu0.b32.cont [10/16] %v5563, 128
      %5596 = vxpose.xlu0.b32.cont [11/16] %v5564, 128
      %5597 = vxpose.xlu0.b32.cont [12/16] %v5565, 128
      %5598 = vxpose.xlu0.b32.cont [13/16] %v5566, 128
      %5599 = vxpose.xlu0.b32.cont [14/16] %v5567, 128
      %5600 = vxpose.xlu0.b32.cont [15/16] %v5568, 128
      %5601 = vxpose.xlu0.b32.end [16/16] %v5569, 128
      %v5602 = vpop.trf.xlu0
      %v5603 = vpop.trf.xlu0
      %v5604 = vpop.trf.xlu0
      %v5605 = vpop.trf.xlu0
      %v5606 = vpop.trf.xlu0
      %v5607 = vpop.trf.xlu0
      %v5608 = vpop.trf.xlu0
      %v5609 = vpop.trf.xlu0
      %v5610 = vpop.trf.xlu0
      %v5611 = vpop.trf.xlu0
      %v5612 = vpop.trf.xlu0
      %v5613 = vpop.trf.xlu0
      %v5614 = vpop.trf.xlu0
      %v5615 = vpop.trf.xlu0
      %v5616 = vpop.trf.xlu0
      %v5617 = vpop.trf.xlu0
      %5618 = vxpose.xlu0.b32.start [1/16] %v5570, 128
      %5619 = vxpose.xlu0.b32.cont [2/16] %v5571, 128
      %5620 = vxpose.xlu0.b32.cont [3/16] %v5572, 128
      %5621 = vxpose.xlu0.b32.cont [4/16] %v5573, 128
      %5622 = vxpose.xlu0.b32.cont [5/16] %v5574, 128
      %5623 = vxpose.xlu0.b32.cont [6/16] %v5575, 128
      %5624 = vxpose.xlu0.b32.cont [7/16] %v5576, 128
      %5625 = vxpose.xlu0.b32.cont [8/16] %v5577, 128
      %5626 = vxpose.xlu0.b32.cont [9/16] %v5578, 128
      %5627 = vxpose.xlu0.b32.cont [10/16] %v5579, 128
      %5628 = vxpose.xlu0.b32.cont [11/16] %v5580, 128
      %5629 = vxpose.xlu0.b32.cont [12/16] %v5581, 128
      %5630 = vxpose.xlu0.b32.cont [13/16] %v5582, 128
      %5631 = vxpose.xlu0.b32.cont [14/16] %v5583, 128
      %5632 = vxpose.xlu0.b32.cont [15/16] %v5584, 128
      %5633 = vxpose.xlu0.b32.end [16/16] %v5585, 128
      %v5634 = vpop.trf.xlu0
      %v5635 = vpop.trf.xlu0
      %v5636 = vpop.trf.xlu0
      %v5637 = vpop.trf.xlu0
      %v5638 = vpop.trf.xlu0
      %v5639 = vpop.trf.xlu0
      %v5640 = vpop.trf.xlu0
      %v5641 = vpop.trf.xlu0
      %v5642 = vpop.trf.xlu0
      %v5643 = vpop.trf.xlu0
      %v5644 = vpop.trf.xlu0
      %v5645 = vpop.trf.xlu0
      %v5646 = vpop.trf.xlu0
      %v5647 = vpop.trf.xlu0
      %v5648 = vpop.trf.xlu0
      %v5649 = vpop.trf.xlu0
      %v5650 = vadd.f32 %v5602, %v189
      %v5651 = vadd.f32 %v5634, %v210
      %v5654 = vcombine.low %v5650, %v5651
      %5656 = vst [vmem:[%s187] sm:$0xff] %v5654
      %p5657 = scmp.lt.s32.totalorder %s14, 1
      %s5658 = scalar_select %p5657, %s14, 1
      %s5659 = smul.addr %s5658, 2
      %s5660 = smul.addr %s5659, 4
      %s5661 = scalar_lea.vmem %s3, %s5660
      // Predicated region
      $region33: #{resnet_adalin_block.1} parent=31 // pred_check
        %p5662 = pneg %p105
      $region34: #{resnet_adalin_block.1} parent=31 // pred_check_branch
        %5664 = sbr.rel (%p5662) target = $region36
      $region35: #{resnet_adalin_block.1} parent=31 // pred_region
        _
      $region36: #{resnet_adalin_block.1} parent=31 // pred_fallthru
        _
    $region32: #{resnet_adalin_block.1} parent=5 // pred_fallthru
      _
    %p5665 = scmp.le.s32.totalorder 2, %s9
    // Predicated region
    $region37: #{resnet_adalin_block.1} parent=5 // pred_check
      %p5666 = pneg %p5665
    $region38: #{resnet_adalin_block.1} parent=5 // pred_check_branch
      %5668 = sbr.rel (%p5666) target = $region40
    $region39: #{resnet_adalin_block.1} parent=5 // pred_region
      %s5669 = ssub.s32 %s9, 2
      // Predicated region
      $region41: #{resnet_adalin_block.1} parent=39 // pred_check
        %p5670 = pneg %p111
      $region42: #{resnet_adalin_block.1} parent=39 // pred_check_branch
        %5672 = sbr.rel (%p5670) target = $region44
      $region43: #{resnet_adalin_block.1} parent=39 // pred_region
        %p5673 = scmp.lt.s32.totalorder %s15, 1
        %s5674 = scalar_select %p5673, %s15, 1
        %s5675 = smul.addr %s5674, 2
        %s5676 = smul.addr %s5675, 4
        %s5677 = scalar_lea.vmem %s3, %s5676
      $region44: #{resnet_adalin_block.1} parent=39 // pred_fallthru
        _
    $region40: #{resnet_adalin_block.1} parent=5 // pred_fallthru
      _
  $region6: #{resnet_adalin_block.1} parent=0 // loop_footer
    %s13 = sadd.s32 1, %s9
  $region7: #{resnet_adalin_block.1} parent=0 // loop_footer_branch
    %8 = sbr.rel target = $region3
  $region8: #{resnet_adalin_block.1} parent=0 // loop_exit
    _

</llo_original>
